<compile_context>
chip_gen: v7x
topology: tpu7x:2x2x1
jax: 0.10.0
libtpu: 0.0.40
codegen_flags: <defaults>
</compile_context>

<pallas_src>
import functools

import jax
import jax.numpy as jnp
from jax.experimental import pallas as pl
from jax.experimental.pallas import tpu as pltpu


def _esa_kernel(*refs, head, eps, has_sr):
    if has_sr:
        (xq_ref, xp_ref, wsr_ref, bsr_ref,
         wq_ref, bq_ref, wk_ref, bk_ref, wv_ref, bv_ref, wp_ref, bp_ref,
         out_ref, k_scr, v_scr) = refs
    else:
        (xq_ref, xkv_ref,
         wq_ref, bq_ref, wk_ref, bk_ref, wv_ref, bv_ref, wp_ref, bp_ref,
         out_ref, k_scr, v_scr) = refs

    c = xq_ref.shape[-1]
    dh = c // head
    n_r = k_scr.shape[1]

    # ---- K/V path: run once per batch element (first query tile); results
    #      stay resident in VMEM scratch for all subsequent query tiles. ----
    @pl.when(pl.program_id(1) == 0)
    def _compute_kv():
        if has_sr:
            # sr-conv (kernel = stride = sr, no padding) as a dense matmul on
            # pre-extracted patches, followed by LayerNorm.  Stats in f32; the
            # LayerNorm affine (gamma/beta) is folded into w_k/w_v/b_k/b_v in
            # the wrapper, so only the normalization itself happens here.
            xp = xp_ref[0]                                         # (n_r, c*sr*sr) bf16
            xr = jnp.dot(xp, wsr_ref[...],
                         preferred_element_type=jnp.float32) + bsr_ref[...]
            mu = jnp.mean(xr, axis=-1, keepdims=True)
            var = jnp.mean((xr - mu) ** 2, axis=-1, keepdims=True)
            xr = ((xr - mu) * jax.lax.rsqrt(var + eps)).astype(jnp.bfloat16)
        else:
            xr = xkv_ref[0].astype(jnp.bfloat16)                   # (n_r, c)

        k = jnp.dot(xr, wk_ref[...], preferred_element_type=jnp.float32) + bk_ref[...]
        v = jnp.dot(xr, wv_ref[...], preferred_element_type=jnp.float32) + bv_ref[...]
        k_scr[...] = jnp.transpose(k.reshape(n_r, head, dh), (1, 0, 2)).astype(jnp.bfloat16)
        v_scr[...] = jnp.transpose(v.reshape(n_r, head, dh), (1, 0, 2)).astype(jnp.bfloat16)

    # ---- Q path + attention for the current query tile. ----
    xq = xq_ref[0].astype(jnp.bfloat16)                            # (tq, c)
    tq = xq.shape[0]
    # softmax scale is folded into w_q / b_q in the wrapper
    q = jnp.dot(xq, wq_ref[...], preferred_element_type=jnp.float32) + bq_ref[...]
    qh = jnp.transpose(q.reshape(tq, head, dh), (1, 0, 2)).astype(jnp.bfloat16)

    kh = k_scr[...]                                                # (head, n_r, dh) bf16
    vh = v_scr[...]

    s = jnp.einsum("hqd,hkd->hqk", qh, kh,
                   preferred_element_type=jnp.float32)             # (head, tq, n_r) f32
    m = jnp.max(s, axis=-1, keepdims=True)
    p = jnp.exp(s - m)
    l = jnp.sum(p, axis=-1, keepdims=True)
    o = jnp.einsum("hqk,hkd->hqd", p.astype(jnp.bfloat16), vh,
                   preferred_element_type=jnp.float32)             # (head, tq, dh) f32
    o = o * pl.reciprocal(l, approx=True)

    o = jnp.transpose(o, (1, 0, 2)).reshape(tq, c).astype(jnp.bfloat16)
    y = jnp.dot(o, wp_ref[...], preferred_element_type=jnp.float32) + bp_ref[...]
    out_ref[0] = y.astype(out_ref.dtype)


def _pick_tile_q(n, head, n_r, max_tile=512):
    """Largest tile that divides n, respects max_tile, and keeps the f32 score
    block (head, tile_q, n_r) at roughly <= 8 MiB of live VMEM."""
    cap = max(8, (8 << 20) // (4 * head * max(n_r, 1)))
    limit = min(max_tile, cap)
    if n <= limit:
        return n
    for t in (512, 384, 256, 128, 64, 32, 16, 8):
        if t <= limit and n % t == 0:
            return t
    return n


def efficient_self_attention(x, params, h, w, head, sr_ratio, tile_q=None):
    """x: (B, N, C) with N == h*w.  Weights stored as (in, out); conv weight OIHW."""
    b, n, c = x.shape
    assert n == h * w and c % head == 0
    dh = c // head
    scale = dh ** (-0.5)
    cdt = jnp.bfloat16  # MXU operand dtype

    if sr_ratio > 1:
        assert h % sr_ratio == 0 and w % sr_ratio == 0
        n_r = (h // sr_ratio) * (w // sr_ratio)
    else:
        n_r = n

    if tile_q is None:
        tile_q = _pick_tile_q(n, head, n_r)
    assert n % tile_q == 0 and (tile_q % 8 == 0 or tile_q == n)
    n_tiles = n // tile_q

    def full_spec(shape):
        return pl.BlockSpec(shape, lambda i, j: (0,) * len(shape))

    # q-path input: tiled over queries.
    args = [x]
    in_specs = [pl.BlockSpec((1, tile_q, c), lambda i, j: (i, j, 0))]

    # k/v projection weights; LayerNorm affine folded in when sr_ratio > 1.
    w_k = params["w_kv"][:, :c]
    w_v = params["w_kv"][:, c:]
    b_k = params["b_kv"][:c]
    b_v = params["b_kv"][c:]

    flops = 2 * b * (n * c * c            # q projection
                     + 2 * n_r * c * c    # k, v projections
                     + 2 * n * n_r * c    # scores + PV
                     + n * c * c)         # output projection

    if sr_ratio > 1:
        hr, wr = h // sr_ratio, w // sr_ratio
        csr = c * sr_ratio * sr_ratio
        # Patch extraction (non-overlapping sr x sr) as reshape/transpose glue,
        # emitted in bf16 to halve its HBM traffic.
        # TODO(synk): fuse the patch gather into the kernel (strided reads of x
        # into a VMEM scratch) so xp is never materialized in HBM.
        ximg = x.transpose(0, 2, 1).reshape(b, c, h, w)
        xp = ximg.reshape(b, c, hr, sr_ratio, wr, sr_ratio)
        xp = xp.transpose(0, 2, 4, 1, 3, 5).reshape(b, n_r, csr).astype(cdt)
        wsr = params["w_sr"].reshape(c, csr).T.astype(cdt)             # (csr, c)
        args += [xp, wsr, params["b_sr"][None].astype(jnp.float32)]
        in_specs += [pl.BlockSpec((1, n_r, csr), lambda i, j: (i, 0, 0)),
                     full_spec((csr, c)), full_spec((1, c))]
        # Fold LayerNorm affine into the k/v projections:
        #   (xhat*g + be) @ W + bias == xhat @ (g[:,None]*W) + (bias + be @ W)
        g, be = params["gamma"], params["beta"]
        b_k = b_k + be @ w_k
        b_v = b_v + be @ w_v
        w_k = g[:, None] * w_k
        w_v = g[:, None] * w_v
        flops += 2 * b * n_r * csr * c
    else:
        args += [x]   # full per-batch block for the kv path
        in_specs += [pl.BlockSpec((1, n, c), lambda i, j: (i, 0, 0))]

    # bf16 weights; softmax scale folded into the q projection; kv split into
    # separate k / v projections (no lane-unaligned slicing in the kernel).
    wq = (params["w_q"] * scale).astype(cdt)
    bq = (params["b_q"] * scale)[None].astype(jnp.float32)
    wk = w_k.astype(cdt)
    wv = w_v.astype(cdt)
    bk = b_k[None].astype(jnp.float32)
    bv = b_v[None].astype(jnp.float32)
    wp = params["w_proj"].astype(cdt)
    bp = params["b_proj"][None].astype(jnp.float32)

    args += [wq, bq, wk, bk, wv, bv, wp, bp]
    in_specs += [full_spec((c, c)), full_spec((1, c)),
                 full_spec((c, c)), full_spec((1, c)),
                 full_spec((c, c)), full_spec((1, c)),
                 full_spec((c, c)), full_spec((1, c))]

    kernel = functools.partial(_esa_kernel, head=head, eps=1e-5,
                               has_sr=(sr_ratio > 1))

    bytes_accessed = int(sum(a.size * a.dtype.itemsize for a in args)
                         + b * n * c * x.dtype.itemsize)
    cost = pl.CostEstimate(flops=int(flops),
                           transcendentals=int(b * head * n * n_r),
                           bytes_accessed=bytes_accessed)

    return pl.pallas_call(
        kernel,
        out_shape=jax.ShapeDtypeStruct((b, n, c), x.dtype),
        grid=(b, n_tiles),
        in_specs=in_specs,
        out_specs=pl.BlockSpec((1, tile_q, c), lambda i, j: (i, j, 0)),
        scratch_shapes=[pltpu.VMEM((head, n_r, dh), jnp.bfloat16),
                        pltpu.VMEM((head, n_r, dh), jnp.bfloat16)],
        compiler_params=pltpu.CompilerParams(
            dimension_semantics=("parallel", "arbitrary"),
            vmem_limit_bytes=32 * 1024 * 1024),
        cost_estimate=cost,
    )(*args)


def ref_esa(x, params, h, w, head, sr_ratio):
    """Pure-JAX f32 reference mirroring the PyTorch forward exactly."""
    b, n, c = x.shape
    dh = c // head
    scale = dh ** (-0.5)
    q = (x @ params["w_q"] + params["b_q"]).reshape(b, n, head, dh).transpose(0, 2, 1, 3)
    if sr_ratio > 1:
        ximg = x.transpose(0, 2, 1).reshape(b, c, h, w)
        y = jax.lax.conv_general_dilated(
            ximg, params["w_sr"], window_strides=(sr_ratio, sr_ratio),
            padding="VALID", dimension_numbers=("NCHW", "OIHW", "NCHW"))
        y = y + params["b_sr"][None, :, None, None]
        xr = y.reshape(b, c, -1).transpose(0, 2, 1)
        mu = xr.mean(-1, keepdims=True)
        var = ((xr - mu) ** 2).mean(-1, keepdims=True)
        xr = (xr - mu) / jnp.sqrt(var + 1e-5) * params["gamma"] + params["beta"]
    else:
        xr = x
    nr = xr.shape[1]
    kv = (xr @ params["w_kv"] + params["b_kv"]).reshape(b, nr, 2, head, dh)
    kv = kv.transpose(2, 0, 3, 1, 4)
    k, v = kv[0], kv[1]
    attn = jnp.einsum("bhqd,bhkd->bhqk", q, k) * scale
    attn = jax.nn.softmax(attn, axis=-1)
    o = jnp.einsum("bhqk,bhkd->bhqd", attn, v).transpose(0, 2, 1, 3).reshape(b, n, c)
    return o @ params["w_proj"] + params["b_proj"]


def make_params(key, dim, sr_ratio):
    ks = jax.random.split(key, 8)
    s = 0.05
    p = {
        "w_q": s * jax.random.normal(ks[0], (dim, dim), jnp.float32),
        "b_q": s * jax.random.normal(ks[1], (dim,), jnp.float32),
        "w_kv": s * jax.random.normal(ks[2], (dim, 2 * dim), jnp.float32),
        "b_kv": s * jax.random.normal(ks[3], (2 * dim,), jnp.float32),
        "w_proj": s * jax.random.normal(ks[4], (dim, dim), jnp.float32),
        "b_proj": s * jax.random.normal(ks[5], (dim,), jnp.float32),
    }
    if sr_ratio > 1:
        p["w_sr"] = s * jax.random.normal(ks[6], (dim, dim, sr_ratio, sr_ratio), jnp.float32)
        p["b_sr"] = s * jax.random.normal(ks[7], (dim,), jnp.float32)
        p["gamma"] = jnp.ones((dim,), jnp.float32)
        p["beta"] = jnp.zeros((dim,), jnp.float32)
    return p


if __name__ == "__main__":
    key = jax.random.PRNGKey(0)
    kx, kp, kx2, kp2 = jax.random.split(key, 4)

    # sr_ratio > 1 path: B=2, C=32, H=W=16 -> N=256, heads=2, sr=2, tile_q=64
    # (multiple query tiles exercise the resident-KV scratch carry).
    B, DIM, H, W, HEAD, SR = 2, 32, 16, 16, 2, 2
    x = jax.random.normal(kx, (B, H * W, DIM), jnp.float32)
    params = make_params(kp, DIM, SR)
    out = jax.block_until_ready(
        efficient_self_attention(x, params, H, W, HEAD, SR, tile_q=64))
    ref = ref_esa(x, params, H, W, HEAD, SR)
    assert out.shape == (B, H * W, DIM)
    # Tolerance relaxed vs. an all-f32 version: MXU operands are bf16.
    assert jnp.allclose(out, ref, rtol=2e-2, atol=2e-2), (
        f"max abs diff = {jnp.max(jnp.abs(out - ref))}")

    # sr_ratio == 1 path: B=2, C=32, H=W=8 -> N=64, heads=2, tile_q=32.
    B2, DIM2, H2, W2, HEAD2, SR2 = 2, 32, 8, 8, 2, 1
    x2 = jax.random.normal(kx2, (B2, H2 * W2, DIM2), jnp.float32)
    params2 = make_params(kp2, DIM2, SR2)
    out2 = jax.block_until_ready(
        efficient_self_attention(x2, params2, H2, W2, HEAD2, SR2, tile_q=32))
    ref2 = ref_esa(x2, params2, H2, W2, HEAD2, SR2)
    assert jnp.allclose(out2, ref2, rtol=2e-2, atol=2e-2), (
        f"max abs diff = {jnp.max(jnp.abs(out2 - ref2))}")

    print("KERNEL_OK")
</pallas_src>

<mosaic_0001>
module attributes {stable_mosaic.version = 11 : i64} {
  func.func @_esa_kernel(%arg0: i32, %arg1: i32, %arg2: memref<1x64x32xf32, #tpu.memory_space<vmem>>, %arg3: memref<1x64x128xbf16, #tpu.memory_space<vmem>>, %arg4: memref<128x32xbf16, #tpu.memory_space<vmem>>, %arg5: memref<1x32xf32, #tpu.memory_space<vmem>>, %arg6: memref<32x32xbf16, #tpu.memory_space<vmem>>, %arg7: memref<1x32xf32, #tpu.memory_space<vmem>>, %arg8: memref<32x32xbf16, #tpu.memory_space<vmem>>, %arg9: memref<1x32xf32, #tpu.memory_space<vmem>>, %arg10: memref<32x32xbf16, #tpu.memory_space<vmem>>, %arg11: memref<1x32xf32, #tpu.memory_space<vmem>>, %arg12: memref<32x32xbf16, #tpu.memory_space<vmem>>, %arg13: memref<1x32xf32, #tpu.memory_space<vmem>>, %arg14: memref<1x64x32xf32, #tpu.memory_space<vmem>>, %arg15: memref<2x64x16xbf16, #tpu.memory_space<vmem>>, %arg16: memref<2x64x16xbf16, #tpu.memory_space<vmem>>) attributes {dimension_semantics = [#tpu.dimension_semantics<parallel>, #tpu.dimension_semantics<arbitrary>], iteration_bounds = array<i64: 2, 4>, scalar_prefetch = 0 : i64, scratch_operands = 2 : i64, tpu.core_type = #tpu.core_type<tc>, window_params = [{transform_indices = @transform_0, window_bounds = array<i64: 1, 64, 32>}, {transform_indices = @transform_1, window_bounds = array<i64: 1, 64, 128>}, {pipeline_mode = #tpu.pipeline_mode<synchronous>, transform_indices = @transform_2, window_bounds = array<i64: 128, 32>}, {pipeline_mode = #tpu.pipeline_mode<synchronous>, transform_indices = @transform_3, window_bounds = array<i64: 1, 32>}, {pipeline_mode = #tpu.pipeline_mode<synchronous>, transform_indices = @transform_4, window_bounds = array<i64: 32, 32>}, {pipeline_mode = #tpu.pipeline_mode<synchronous>, transform_indices = @transform_5, window_bounds = array<i64: 1, 32>}, {pipeline_mode = #tpu.pipeline_mode<synchronous>, transform_indices = @transform_6, window_bounds = array<i64: 32, 32>}, {pipeline_mode = #tpu.pipeline_mode<synchronous>, transform_indices = @transform_7, window_bounds = array<i64: 1, 32>}, {pipeline_mode = #tpu.pipeline_mode<synchronous>, transform_indices = @transform_8, window_bounds = array<i64: 32, 32>}, {pipeline_mode = #tpu.pipeline_mode<synchronous>, transform_indices = @transform_9, window_bounds = array<i64: 1, 32>}, {pipeline_mode = #tpu.pipeline_mode<synchronous>, transform_indices = @transform_10, window_bounds = array<i64: 32, 32>}, {pipeline_mode = #tpu.pipeline_mode<synchronous>, transform_indices = @transform_11, window_bounds = array<i64: 1, 32>}, {transform_indices = @transform_12, window_bounds = array<i64: 1, 64, 32>}]} {
    %c0_i32 = arith.constant 0 : i32
    %0 = arith.cmpi eq, %arg1, %c0_i32 : i32
    %1 = arith.extui %0 : i1 to i32
    %c0_i32_0 = arith.constant 0 : i32
    %2 = arith.cmpi ne, %1, %c0_i32_0 : i32
    scf.if %2 {
      %c0_25 = arith.constant 0 : index
      %c0_26 = arith.constant 0 : index
      %c0_27 = arith.constant 0 : index
      %40 = vector.load %arg3[%c0_25, %c0_26, %c0_27] : memref<1x64x128xbf16, #tpu.memory_space<vmem>>, vector<1x64x128xbf16>
      %41 = vector.shape_cast %40 : vector<1x64x128xbf16> to vector<64x128xbf16>
      %c0_28 = arith.constant 0 : index
      %c0_29 = arith.constant 0 : index
      %42 = vector.load %arg4[%c0_28, %c0_29] : memref<128x32xbf16, #tpu.memory_space<vmem>>, vector<128x32xbf16>
      %cst_30 = arith.constant dense<0.000000e+00> : vector<64x32xf32>
      %43 = tpu.matmul %41, %42, %cst_30 {dimension_numbers = #tpu.dot_dimension_numbers<[1], [0], [0], [1], [0, 0, 1, 1], [], []>} : vector<64x128xbf16>, vector<128x32xbf16>, vector<64x32xf32> -> vector<64x32xf32>
      %c0_31 = arith.constant 0 : index
      %c0_32 = arith.constant 0 : index
      %44 = vector.load %arg5[%c0_31, %c0_32] : memref<1x32xf32, #tpu.memory_space<vmem>>, vector<1x32xf32>
      %45 = vector.broadcast %44 : vector<1x32xf32> to vector<64x32xf32>
      %46 = arith.addf %43, %45 : vector<64x32xf32>
      %cst_33 = arith.constant dense<0.000000e+00> : vector<64xf32>
      %47 = vector.multi_reduction <add>, %46, %cst_33 [1] : vector<64x32xf32> to vector<64xf32>
      %48 = vector.shape_cast %47 : vector<64xf32> to vector<64x1xf32>
      %cst_34 = arith.constant 3.200000e+01 : f32
      %49 = vector.broadcast %cst_34 : f32 to vector<64x1xf32>
      %50 = arith.divf %48, %49 : vector<64x1xf32>
      %51 = vector.broadcast %50 : vector<64x1xf32> to vector<64x32xf32>
      %52 = arith.subf %46, %51 : vector<64x32xf32>
      %53 = arith.mulf %52, %52 : vector<64x32xf32>
      %cst_35 = arith.constant dense<0.000000e+00> : vector<64xf32>
      %54 = vector.multi_reduction <add>, %53, %cst_35 [1] : vector<64x32xf32> to vector<64xf32>
      %55 = vector.shape_cast %54 : vector<64xf32> to vector<64x1xf32>
      %cst_36 = arith.constant 3.200000e+01 : f32
      %56 = vector.broadcast %cst_36 : f32 to vector<64x1xf32>
      %57 = arith.divf %55, %56 : vector<64x1xf32>
      %58 = vector.broadcast %50 : vector<64x1xf32> to vector<64x32xf32>
      %59 = arith.subf %46, %58 : vector<64x32xf32>
      %cst_37 = arith.constant 9.99999974E-6 : f32
      %60 = vector.broadcast %cst_37 : f32 to vector<64x1xf32>
      %61 = arith.addf %57, %60 : vector<64x1xf32>
      %62 = math.rsqrt %61 : vector<64x1xf32>
      %63 = vector.broadcast %62 : vector<64x1xf32> to vector<64x32xf32>
      %64 = arith.mulf %59, %63 : vector<64x32xf32>
      %65 = arith.truncf %64 : vector<64x32xf32> to vector<64x32xbf16>
      %c0_38 = arith.constant 0 : index
      %c0_39 = arith.constant 0 : index
      %66 = vector.load %arg8[%c0_38, %c0_39] : memref<32x32xbf16, #tpu.memory_space<vmem>>, vector<32x32xbf16>
      %cst_40 = arith.constant dense<0.000000e+00> : vector<64x32xf32>
      %67 = tpu.matmul %65, %66, %cst_40 {dimension_numbers = #tpu.dot_dimension_numbers<[1], [0], [0], [1], [0, 0, 1, 1], [], []>} : vector<64x32xbf16>, vector<32x32xbf16>, vector<64x32xf32> -> vector<64x32xf32>
      %c0_41 = arith.constant 0 : index
      %c0_42 = arith.constant 0 : index
      %68 = vector.load %arg9[%c0_41, %c0_42] : memref<1x32xf32, #tpu.memory_space<vmem>>, vector<1x32xf32>
      %69 = vector.broadcast %68 : vector<1x32xf32> to vector<64x32xf32>
      %70 = arith.addf %67, %69 : vector<64x32xf32>
      %c0_43 = arith.constant 0 : index
      %c0_44 = arith.constant 0 : index
      %71 = vector.load %arg10[%c0_43, %c0_44] : memref<32x32xbf16, #tpu.memory_space<vmem>>, vector<32x32xbf16>
      %cst_45 = arith.constant dense<0.000000e+00> : vector<64x32xf32>
      %72 = tpu.matmul %65, %71, %cst_45 {dimension_numbers = #tpu.dot_dimension_numbers<[1], [0], [0], [1], [0, 0, 1, 1], [], []>} : vector<64x32xbf16>, vector<32x32xbf16>, vector<64x32xf32> -> vector<64x32xf32>
      %c0_46 = arith.constant 0 : index
      %c0_47 = arith.constant 0 : index
      %73 = vector.load %arg11[%c0_46, %c0_47] : memref<1x32xf32, #tpu.memory_space<vmem>>, vector<1x32xf32>
      %74 = vector.broadcast %73 : vector<1x32xf32> to vector<64x32xf32>
      %75 = arith.addf %72, %74 : vector<64x32xf32>
      %76 = vector.shape_cast %70 : vector<64x32xf32> to vector<64x2x16xf32>
      %77 = tpu.transpose %76, [1, 0, 2] : vector<64x2x16xf32> -> vector<2x64x16xf32>
      %78 = arith.truncf %77 : vector<2x64x16xf32> to vector<2x64x16xbf16>
      %c0_48 = arith.constant 0 : index
      %c0_49 = arith.constant 0 : index
      %c0_50 = arith.constant 0 : index
      %79 = vector.load %arg15[%c0_48, %c0_49, %c0_50] : memref<2x64x16xbf16, #tpu.memory_space<vmem>>, vector<2x64x16xbf16>
      tpu.vector_store %arg15[%c0_48, %c0_49, %c0_50], %78 {strides = array<i32>} : memref<2x64x16xbf16, #tpu.memory_space<vmem>>, vector<2x64x16xbf16>,
      %80 = vector.shape_cast %75 : vector<64x32xf32> to vector<64x2x16xf32>
      %81 = tpu.transpose %80, [1, 0, 2] : vector<64x2x16xf32> -> vector<2x64x16xf32>
      %82 = arith.truncf %81 : vector<2x64x16xf32> to vector<2x64x16xbf16>
      %c0_51 = arith.constant 0 : index
      %c0_52 = arith.constant 0 : index
      %c0_53 = arith.constant 0 : index
      %83 = vector.load %arg16[%c0_51, %c0_52, %c0_53] : memref<2x64x16xbf16, #tpu.memory_space<vmem>>, vector<2x64x16xbf16>
      tpu.vector_store %arg16[%c0_51, %c0_52, %c0_53], %82 {strides = array<i32>} : memref<2x64x16xbf16, #tpu.memory_space<vmem>>, vector<2x64x16xbf16>,
    } else {
    }
    %c0 = arith.constant 0 : index
    %c0_1 = arith.constant 0 : index
    %c0_2 = arith.constant 0 : index
    %3 = vector.load %arg2[%c0, %c0_1, %c0_2] : memref<1x64x32xf32, #tpu.memory_space<vmem>>, vector<1x64x32xf32>
    %4 = vector.shape_cast %3 : vector<1x64x32xf32> to vector<64x32xf32>
    %5 = arith.truncf %4 : vector<64x32xf32> to vector<64x32xbf16>
    %c0_3 = arith.constant 0 : index
    %c0_4 = arith.constant 0 : index
    %6 = vector.load %arg6[%c0_3, %c0_4] : memref<32x32xbf16, #tpu.memory_space<vmem>>, vector<32x32xbf16>
    %cst = arith.constant dense<0.000000e+00> : vector<64x32xf32>
    %7 = tpu.matmul %5, %6, %cst {dimension_numbers = #tpu.dot_dimension_numbers<[1], [0], [0], [1], [0, 0, 1, 1], [], []>} : vector<64x32xbf16>, vector<32x32xbf16>, vector<64x32xf32> -> vector<64x32xf32>
    %c0_5 = arith.constant 0 : index
    %c0_6 = arith.constant 0 : index
    %8 = vector.load %arg7[%c0_5, %c0_6] : memref<1x32xf32, #tpu.memory_space<vmem>>, vector<1x32xf32>
    %9 = vector.broadcast %8 : vector<1x32xf32> to vector<64x32xf32>
    %10 = arith.addf %7, %9 : vector<64x32xf32>
    %11 = vector.shape_cast %10 : vector<64x32xf32> to vector<64x2x16xf32>
    %12 = tpu.transpose %11, [1, 0, 2] : vector<64x2x16xf32> -> vector<2x64x16xf32>
    %13 = arith.truncf %12 : vector<2x64x16xf32> to vector<2x64x16xbf16>
    %c0_7 = arith.constant 0 : index
    %c0_8 = arith.constant 0 : index
    %c0_9 = arith.constant 0 : index
    %14 = vector.load %arg15[%c0_7, %c0_8, %c0_9] : memref<2x64x16xbf16, #tpu.memory_space<vmem>>, vector<2x64x16xbf16>
    %c0_10 = arith.constant 0 : index
    %c0_11 = arith.constant 0 : index
    %c0_12 = arith.constant 0 : index
    %15 = vector.load %arg16[%c0_10, %c0_11, %c0_12] : memref<2x64x16xbf16, #tpu.memory_space<vmem>>, vector<2x64x16xbf16>
    "tpu.trace_start"() <{level = 10 : i32, message = "hqd,hkd->hqk"}> : () -> ()
    %cst_13 = arith.constant dense<0.000000e+00> : vector<2x64x64xf32>
    %16 = tpu.matmul %13, %14, %cst_13 {dimension_numbers = #tpu.dot_dimension_numbers<[2], [2], [1], [1], [0, 0, 0, 1, 1, 1], [0], [0]>} : vector<2x64x16xbf16>, vector<2x64x16xbf16>, vector<2x64x64xf32> -> vector<2x64x64xf32>
    "tpu.trace_stop"() : () -> ()
    %cst_14 = arith.constant dense<0xFF800000> : vector<2x64xf32>
    %17 = vector.multi_reduction <maximumf>, %16, %cst_14 [2] : vector<2x64x64xf32> to vector<2x64xf32>
    %18 = vector.shape_cast %17 : vector<2x64xf32> to vector<2x64x1xf32>
    %19 = vector.broadcast %18 : vector<2x64x1xf32> to vector<2x64x64xf32>
    %20 = arith.subf %16, %19 : vector<2x64x64xf32>
    %21 = math.exp %20 : vector<2x64x64xf32>
    %cst_15 = arith.constant dense<0.000000e+00> : vector<2x64xf32>
    %22 = vector.multi_reduction <add>, %21, %cst_15 [2] : vector<2x64x64xf32> to vector<2x64xf32>
    %23 = vector.shape_cast %22 : vector<2x64xf32> to vector<2x64x1xf32>
    %24 = arith.truncf %21 : vector<2x64x64xf32> to vector<2x64x64xbf16>
    "tpu.trace_start"() <{level = 10 : i32, message = "hqk,hkd->hqd"}> : () -> ()
    %cst_16 = arith.constant dense<0.000000e+00> : vector<2x64x16xf32>
    %25 = tpu.matmul %24, %15, %cst_16 {dimension_numbers = #tpu.dot_dimension_numbers<[2], [1], [1], [2], [0, 0, 0, 1, 1, 2], [0], [0]>} : vector<2x64x64xbf16>, vector<2x64x16xbf16>, vector<2x64x16xf32> -> vector<2x64x16xf32>
    "tpu.trace_stop"() : () -> ()
    %26 = tpu.reciprocal %23 {approx = true} : vector<2x64x1xf32> -> vector<2x64x1xf32>
    %27 = vector.broadcast %26 : vector<2x64x1xf32> to vector<2x64x16xf32>
    %28 = arith.mulf %25, %27 : vector<2x64x16xf32>
    %29 = tpu.transpose %28, [1, 0, 2] : vector<2x64x16xf32> -> vector<64x2x16xf32>
    %30 = vector.shape_cast %29 : vector<64x2x16xf32> to vector<64x32xf32>
    %31 = arith.truncf %30 : vector<64x32xf32> to vector<64x32xbf16>
    %c0_17 = arith.constant 0 : index
    %c0_18 = arith.constant 0 : index
    %32 = vector.load %arg12[%c0_17, %c0_18] : memref<32x32xbf16, #tpu.memory_space<vmem>>, vector<32x32xbf16>
    %cst_19 = arith.constant dense<0.000000e+00> : vector<64x32xf32>
    %33 = tpu.matmul %31, %32, %cst_19 {dimension_numbers = #tpu.dot_dimension_numbers<[1], [0], [0], [1], [0, 0, 1, 1], [], []>} : vector<64x32xbf16>, vector<32x32xbf16>, vector<64x32xf32> -> vector<64x32xf32>
    %c0_20 = arith.constant 0 : index
    %c0_21 = arith.constant 0 : index
    %34 = vector.load %arg13[%c0_20, %c0_21] : memref<1x32xf32, #tpu.memory_space<vmem>>, vector<1x32xf32>
    %35 = vector.broadcast %34 : vector<1x32xf32> to vector<64x32xf32>
    %36 = arith.addf %33, %35 : vector<64x32xf32>
    %c0_22 = arith.constant 0 : index
    %c0_23 = arith.constant 0 : index
    %c0_24 = arith.constant 0 : index
    %37 = vector.load %arg14[%c0_22, %c0_23, %c0_24] : memref<1x64x32xf32, #tpu.memory_space<vmem>>, vector<1x64x32xf32>
    %38 = vector.shape_cast %37 : vector<1x64x32xf32> to vector<64x32xf32>
    %39 = vector.shape_cast %36 : vector<64x32xf32> to vector<1x64x32xf32>
    tpu.vector_store %arg14[%c0_22, %c0_23, %c0_24], %39 {strides = array<i32>} : memref<1x64x32xf32, #tpu.memory_space<vmem>>, vector<1x64x32xf32>,
    return
  }
  func.func @transform_0(%arg0: i32, %arg1: i32) -> (i32, i32, i32) {
    %c0_i32 = arith.constant 0 : i32
    %c0_i32_0 = arith.constant 0 : i32
    return %arg0, %arg1, %c0_i32 : i32, i32, i32
  }
  func.func @transform_1(%arg0: i32, %arg1: i32) -> (i32, i32, i32) {
    %c0_i32 = arith.constant 0 : i32
    %c0_i32_0 = arith.constant 0 : i32
    %c0_i32_1 = arith.constant 0 : i32
    return %arg0, %c0_i32, %c0_i32_0 : i32, i32, i32
  }
  func.func @transform_2(%arg0: i32, %arg1: i32) -> (i32, i32) {
    %c0_i32 = arith.constant 0 : i32
    %c0_i32_0 = arith.constant 0 : i32
    %c0_i32_1 = arith.constant 0 : i32
    return %c0_i32, %c0_i32_0 : i32, i32
  }
  func.func @transform_3(%arg0: i32, %arg1: i32) -> (i32, i32) {
    %c0_i32 = arith.constant 0 : i32
    %c0_i32_0 = arith.constant 0 : i32
    %c0_i32_1 = arith.constant 0 : i32
    return %c0_i32, %c0_i32_0 : i32, i32
  }
  func.func @transform_4(%arg0: i32, %arg1: i32) -> (i32, i32) {
    %c0_i32 = arith.constant 0 : i32
    %c0_i32_0 = arith.constant 0 : i32
    %c0_i32_1 = arith.constant 0 : i32
    return %c0_i32, %c0_i32_0 : i32, i32
  }
  func.func @transform_5(%arg0: i32, %arg1: i32) -> (i32, i32) {
    %c0_i32 = arith.constant 0 : i32
    %c0_i32_0 = arith.constant 0 : i32
    %c0_i32_1 = arith.constant 0 : i32
    return %c0_i32, %c0_i32_0 : i32, i32
  }
  func.func @transform_6(%arg0: i32, %arg1: i32) -> (i32, i32) {
    %c0_i32 = arith.constant 0 : i32
    %c0_i32_0 = arith.constant 0 : i32
    %c0_i32_1 = arith.constant 0 : i32
    return %c0_i32, %c0_i32_0 : i32, i32
  }
  func.func @transform_7(%arg0: i32, %arg1: i32) -> (i32, i32) {
    %c0_i32 = arith.constant 0 : i32
    %c0_i32_0 = arith.constant 0 : i32
    %c0_i32_1 = arith.constant 0 : i32
    return %c0_i32, %c0_i32_0 : i32, i32
  }
  func.func @transform_8(%arg0: i32, %arg1: i32) -> (i32, i32) {
    %c0_i32 = arith.constant 0 : i32
    %c0_i32_0 = arith.constant 0 : i32
    %c0_i32_1 = arith.constant 0 : i32
    return %c0_i32, %c0_i32_0 : i32, i32
  }
  func.func @transform_9(%arg0: i32, %arg1: i32) -> (i32, i32) {
    %c0_i32 = arith.constant 0 : i32
    %c0_i32_0 = arith.constant 0 : i32
    %c0_i32_1 = arith.constant 0 : i32
    return %c0_i32, %c0_i32_0 : i32, i32
  }
  func.func @transform_10(%arg0: i32, %arg1: i32) -> (i32, i32) {
    %c0_i32 = arith.constant 0 : i32
    %c0_i32_0 = arith.constant 0 : i32
    %c0_i32_1 = arith.constant 0 : i32
    return %c0_i32, %c0_i32_0 : i32, i32
  }
  func.func @transform_11(%arg0: i32, %arg1: i32) -> (i32, i32) {
    %c0_i32 = arith.constant 0 : i32
    %c0_i32_0 = arith.constant 0 : i32
    %c0_i32_1 = arith.constant 0 : i32
    return %c0_i32, %c0_i32_0 : i32, i32
  }
  func.func @transform_12(%arg0: i32, %arg1: i32) -> (i32, i32, i32) {
    %c0_i32 = arith.constant 0 : i32
    %c0_i32_0 = arith.constant 0 : i32
    return %arg0, %arg1, %c0_i32 : i32, i32, i32
  }
}

</mosaic_0001>

<llo_original>
// kernel: tpu_custom_call.1
$region0: #{tpu_custom_call.1}
  #allocation0 [shape = 'u32[]', space=smem, size = 0x4, offset = 0x4, fixed_abs, tag = 'smem constant byte address 0x4 - core index']
  #allocation1 [shape = 'u32[144,128]{1,0:T(1,128)}', space=vmem, size = 0x12000, scoped, tag = 'internal scratch']
  #allocation2 [shape = 'bf16[2,64,16]{2,1,0:T(16,128)(2,1)}', space=vmem, size = 0x8000, scoped, tag = 'scratch operand']
  #allocation3 [shape = 'bf16[2,64,16]{2,1,0:T(16,128)(2,1)}', space=vmem, size = 0x8000, scoped, tag = 'scratch operand']
  %s0 = inlined_call_operand.vmem [shape: f32[2,256,32], index: 0, kind: input, shape index: {}]
  %s1 = inlined_call_operand.vmem [shape: bf16[2,64,128], index: 1, kind: input, shape index: {}]
  %s2 = inlined_call_operand.vmem [shape: bf16[128,32], index: 2, kind: input, shape index: {}]
  %s3 = inlined_call_operand.vmem [shape: f32[1,32], index: 3, kind: input, shape index: {}]
  %s4 = inlined_call_operand.vmem [shape: bf16[32,32], index: 4, kind: input, shape index: {}]
  %s5 = inlined_call_operand.vmem [shape: f32[1,32], index: 5, kind: input, shape index: {}]
  %s6 = inlined_call_operand.vmem [shape: bf16[32,32], index: 6, kind: input, shape index: {}]
  %s7 = inlined_call_operand.vmem [shape: f32[1,32], index: 7, kind: input, shape index: {}]
  %s8 = inlined_call_operand.vmem [shape: bf16[32,32], index: 8, kind: input, shape index: {}]
  %s9 = inlined_call_operand.vmem [shape: f32[1,32], index: 9, kind: input, shape index: {}]
  %s10 = inlined_call_operand.vmem [shape: bf16[32,32], index: 10, kind: input, shape index: {}]
  %s11 = inlined_call_operand.vmem [shape: f32[1,32], index: 11, kind: input, shape index: {}]
  %s12 = inlined_call_operand.vmem [shape: f32[2,256,32], index: 12, kind: output, shape index: {}]
  %s13 = sld [smem:[#allocation0]]
  $region85: #{tpu_custom_call.1} parent=0
    _
  %s15 = ssub.s32 1, %s13
  %s16 = scalar_select 0, %s15, %s13
  loop: start=0, step=1, limit=10
  $region2: #{tpu_custom_call.1} parent=0 // loop_pre_header
    _
  $region3: #{tpu_custom_call.1} parent=0 // loop_header
    %s18 = sphi 0, %s22
    %p19 = scmp.ge.s32.totalorder %s18, 10
    %s25 = sphi 0, %s37
    %s26 = sphi 0, %s33
    %s27 = sphi 0, %s25
    %s28 = sphi 0, %s26
    %s29 = sphi 0, %s27
    %s30 = sphi 0, %s28
    %s42 = sphi 0, %s44
    %s45 = sphi 0, %s42
    %s46 = sphi 0, %s45
    %s62 = sphi 0, %s46
    %s68 = sphi 0, %s70
    %s71 = sphi 0, %s68
    %s72 = sphi 0, %s71
    %s88 = sphi 0, %s72
    %s92 = sphi 0, %s92
    %s94 = sphi 0, %s92
    %s95 = sphi 0, %s94
    %s109 = sphi 0, %s95
    %s113 = sphi 0, %s113
    %s115 = sphi 0, %s113
    %s116 = sphi 0, %s115
    %s130 = sphi 0, %s116
    %s134 = sphi 0, %s134
    %s136 = sphi 0, %s134
    %s137 = sphi 0, %s136
    %s151 = sphi 0, %s137
    %s155 = sphi 0, %s155
    %s157 = sphi 0, %s155
    %s158 = sphi 0, %s157
    %s172 = sphi 0, %s158
    %s176 = sphi 0, %s176
    %s178 = sphi 0, %s176
    %s179 = sphi 0, %s178
    %s193 = sphi 0, %s179
    %s197 = sphi 0, %s197
    %s199 = sphi 0, %s197
    %s200 = sphi 0, %s199
    %s214 = sphi 0, %s200
    %s218 = sphi 0, %s218
    %s220 = sphi 0, %s218
    %s221 = sphi 0, %s220
    %s235 = sphi 0, %s221
    %s239 = sphi 0, %s239
    %s241 = sphi 0, %s239
    %s242 = sphi 0, %s241
    %s256 = sphi 0, %s242
    %s260 = sphi 0, %s260
    %s262 = sphi 0, %s260
    %s263 = sphi 0, %s262
    %s277 = sphi 0, %s263
    %s281 = sphi 0, %s281
    %s283 = sphi 0, %s281
    %s284 = sphi 0, %s283
    %s298 = sphi 0, %s284
    %s306 = sphi 0, %s308
    %s309 = sphi 0, %s306
    %s310 = sphi 0, %s309
    %s326 = sphi 0, %s310
  $region4: #{tpu_custom_call.1} parent=0 // loop_header_branch
    %21 = sbr.rel (%p19) target = $region8
  $region5: #{tpu_custom_call.1} parent=0 // loop_body
    %s23 = ssub.s32 %s18, 1
    %s24 = ssub.s32 %s18, 2
    %s31 = sadd.s32 1, %s26
    %p32 = scmp.ge.s32.totalorder %s31, 4
    %s33 = scalar_select %p32, 0, %s31
    %s34 = sadd.s32 1, %s25
    %s35 = scalar_select %p32, %s34, %s25
    %p36 = scmp.ge.s32.totalorder %s35, 2
    %s37 = scalar_select %p36, 0, %s35
    %s38 = ssub.s32 %s25, %s37
    %s39 = ssub.s32 %s26, %s33
    %s40 = sor.u32 %s38, %s39
    %p41 = scmp.eq.s32.totalorder %s40, 0
    %s43 = sadd.s32 %s42, 1
    %s44 = scalar_select %p41, %s42, %s43
    %p47 = pneg %p41
    %p48 = scmp.eq.s32.totalorder %s18, 7
    %p49 = por %p47, %p48
    %p50 = scmp.ne.s32.totalorder %s42, %s45
    %p51 = scmp.eq.s32.totalorder %s18, 0
    %p52 = por %p50, %p51
    %p53 = scmp.ne.s32.totalorder %s42, %s45
    %p54 = scmp.eq.s32.totalorder %s23, 7
    %p55 = por %p53, %p54
    %p56 = scmp.ne.s32.totalorder %s45, %s46
    %p57 = scmp.eq.s32.totalorder %s23, 0
    %p58 = por %p56, %p57
    %p59 = scmp.ne.s32.totalorder %s45, %s46
    %p60 = scmp.eq.s32.totalorder %s24, 7
    %p61 = por %p59, %p60
    %p63 = scmp.ne.s32.totalorder %s46, %s62
    %p64 = scmp.eq.s32.totalorder %s24, 0
    %p65 = por %p63, %p64
    %s66 = ssub.s32 %s25, %s37
    %p67 = scmp.eq.s32.totalorder %s66, 0
    %s69 = sadd.s32 %s68, 1
    %s70 = scalar_select %p67, %s68, %s69
    %p73 = pneg %p67
    %p74 = scmp.eq.s32.totalorder %s18, 7
    %p75 = por %p73, %p74
    %p76 = scmp.ne.s32.totalorder %s68, %s71
    %p77 = scmp.eq.s32.totalorder %s18, 0
    %p78 = por %p76, %p77
    %p79 = scmp.ne.s32.totalorder %s68, %s71
    %p80 = scmp.eq.s32.totalorder %s23, 7
    %p81 = por %p79, %p80
    %p82 = scmp.ne.s32.totalorder %s71, %s72
    %p83 = scmp.eq.s32.totalorder %s23, 0
    %p84 = por %p82, %p83
    %p85 = scmp.ne.s32.totalorder %s71, %s72
    %p86 = scmp.eq.s32.totalorder %s24, 7
    %p87 = por %p85, %p86
    %p89 = scmp.ne.s32.totalorder %s72, %s88
    %p90 = scmp.eq.s32.totalorder %s24, 0
    %p91 = por %p89, %p90
    %s93 = sadd.s32 %s92, 1
    %p96 = scmp.eq.s32.totalorder %s18, 7
    %p97 = scmp.ne.s32.totalorder %s92, %s94
    %p98 = scmp.eq.s32.totalorder %s18, 0
    %p99 = por %p97, %p98
    %p100 = scmp.ne.s32.totalorder %s92, %s94
    %p101 = scmp.eq.s32.totalorder %s23, 7
    %p102 = por %p100, %p101
    %p103 = scmp.ne.s32.totalorder %s94, %s95
    %p104 = scmp.eq.s32.totalorder %s23, 0
    %p105 = por %p103, %p104
    %p106 = scmp.ne.s32.totalorder %s94, %s95
    %p107 = scmp.eq.s32.totalorder %s24, 7
    %p108 = por %p106, %p107
    %p110 = scmp.ne.s32.totalorder %s95, %s109
    %p111 = scmp.eq.s32.totalorder %s24, 0
    %p112 = por %p110, %p111
    %s114 = sadd.s32 %s113, 1
    %p117 = scmp.eq.s32.totalorder %s18, 7
    %p118 = scmp.ne.s32.totalorder %s113, %s115
    %p119 = scmp.eq.s32.totalorder %s18, 0
    %p120 = por %p118, %p119
    %p121 = scmp.ne.s32.totalorder %s113, %s115
    %p122 = scmp.eq.s32.totalorder %s23, 7
    %p123 = por %p121, %p122
    %p124 = scmp.ne.s32.totalorder %s115, %s116
    %p125 = scmp.eq.s32.totalorder %s23, 0
    %p126 = por %p124, %p125
    %p127 = scmp.ne.s32.totalorder %s115, %s116
    %p128 = scmp.eq.s32.totalorder %s24, 7
    %p129 = por %p127, %p128
    %p131 = scmp.ne.s32.totalorder %s116, %s130
    %p132 = scmp.eq.s32.totalorder %s24, 0
    %p133 = por %p131, %p132
    %s135 = sadd.s32 %s134, 1
    %p138 = scmp.eq.s32.totalorder %s18, 7
    %p139 = scmp.ne.s32.totalorder %s134, %s136
    %p140 = scmp.eq.s32.totalorder %s18, 0
    %p141 = por %p139, %p140
    %p142 = scmp.ne.s32.totalorder %s134, %s136
    %p143 = scmp.eq.s32.totalorder %s23, 7
    %p144 = por %p142, %p143
    %p145 = scmp.ne.s32.totalorder %s136, %s137
    %p146 = scmp.eq.s32.totalorder %s23, 0
    %p147 = por %p145, %p146
    %p148 = scmp.ne.s32.totalorder %s136, %s137
    %p149 = scmp.eq.s32.totalorder %s24, 7
    %p150 = por %p148, %p149
    %p152 = scmp.ne.s32.totalorder %s137, %s151
    %p153 = scmp.eq.s32.totalorder %s24, 0
    %p154 = por %p152, %p153
    %s156 = sadd.s32 %s155, 1
    %p159 = scmp.eq.s32.totalorder %s18, 7
    %p160 = scmp.ne.s32.totalorder %s155, %s157
    %p161 = scmp.eq.s32.totalorder %s18, 0
    %p162 = por %p160, %p161
    %p163 = scmp.ne.s32.totalorder %s155, %s157
    %p164 = scmp.eq.s32.totalorder %s23, 7
    %p165 = por %p163, %p164
    %p166 = scmp.ne.s32.totalorder %s157, %s158
    %p167 = scmp.eq.s32.totalorder %s23, 0
    %p168 = por %p166, %p167
    %p169 = scmp.ne.s32.totalorder %s157, %s158
    %p170 = scmp.eq.s32.totalorder %s24, 7
    %p171 = por %p169, %p170
    %p173 = scmp.ne.s32.totalorder %s158, %s172
    %p174 = scmp.eq.s32.totalorder %s24, 0
    %p175 = por %p173, %p174
    %s177 = sadd.s32 %s176, 1
    %p180 = scmp.eq.s32.totalorder %s18, 7
    %p181 = scmp.ne.s32.totalorder %s176, %s178
    %p182 = scmp.eq.s32.totalorder %s18, 0
    %p183 = por %p181, %p182
    %p184 = scmp.ne.s32.totalorder %s176, %s178
    %p185 = scmp.eq.s32.totalorder %s23, 7
    %p186 = por %p184, %p185
    %p187 = scmp.ne.s32.totalorder %s178, %s179
    %p188 = scmp.eq.s32.totalorder %s23, 0
    %p189 = por %p187, %p188
    %p190 = scmp.ne.s32.totalorder %s178, %s179
    %p191 = scmp.eq.s32.totalorder %s24, 7
    %p192 = por %p190, %p191
    %p194 = scmp.ne.s32.totalorder %s179, %s193
    %p195 = scmp.eq.s32.totalorder %s24, 0
    %p196 = por %p194, %p195
    %s198 = sadd.s32 %s197, 1
    %p201 = scmp.eq.s32.totalorder %s18, 7
    %p202 = scmp.ne.s32.totalorder %s197, %s199
    %p203 = scmp.eq.s32.totalorder %s18, 0
    %p204 = por %p202, %p203
    %p205 = scmp.ne.s32.totalorder %s197, %s199
    %p206 = scmp.eq.s32.totalorder %s23, 7
    %p207 = por %p205, %p206
    %p208 = scmp.ne.s32.totalorder %s199, %s200
    %p209 = scmp.eq.s32.totalorder %s23, 0
    %p210 = por %p208, %p209
    %p211 = scmp.ne.s32.totalorder %s199, %s200
    %p212 = scmp.eq.s32.totalorder %s24, 7
    %p213 = por %p211, %p212
    %p215 = scmp.ne.s32.totalorder %s200, %s214
    %p216 = scmp.eq.s32.totalorder %s24, 0
    %p217 = por %p215, %p216
    %s219 = sadd.s32 %s218, 1
    %p222 = scmp.eq.s32.totalorder %s18, 7
    %p223 = scmp.ne.s32.totalorder %s218, %s220
    %p224 = scmp.eq.s32.totalorder %s18, 0
    %p225 = por %p223, %p224
    %p226 = scmp.ne.s32.totalorder %s218, %s220
    %p227 = scmp.eq.s32.totalorder %s23, 7
    %p228 = por %p226, %p227
    %p229 = scmp.ne.s32.totalorder %s220, %s221
    %p230 = scmp.eq.s32.totalorder %s23, 0
    %p231 = por %p229, %p230
    %p232 = scmp.ne.s32.totalorder %s220, %s221
    %p233 = scmp.eq.s32.totalorder %s24, 7
    %p234 = por %p232, %p233
    %p236 = scmp.ne.s32.totalorder %s221, %s235
    %p237 = scmp.eq.s32.totalorder %s24, 0
    %p238 = por %p236, %p237
    %s240 = sadd.s32 %s239, 1
    %p243 = scmp.eq.s32.totalorder %s18, 7
    %p244 = scmp.ne.s32.totalorder %s239, %s241
    %p245 = scmp.eq.s32.totalorder %s18, 0
    %p246 = por %p244, %p245
    %p247 = scmp.ne.s32.totalorder %s239, %s241
    %p248 = scmp.eq.s32.totalorder %s23, 7
    %p249 = por %p247, %p248
    %p250 = scmp.ne.s32.totalorder %s241, %s242
    %p251 = scmp.eq.s32.totalorder %s23, 0
    %p252 = por %p250, %p251
    %p253 = scmp.ne.s32.totalorder %s241, %s242
    %p254 = scmp.eq.s32.totalorder %s24, 7
    %p255 = por %p253, %p254
    %p257 = scmp.ne.s32.totalorder %s242, %s256
    %p258 = scmp.eq.s32.totalorder %s24, 0
    %p259 = por %p257, %p258
    %s261 = sadd.s32 %s260, 1
    %p264 = scmp.eq.s32.totalorder %s18, 7
    %p265 = scmp.ne.s32.totalorder %s260, %s262
    %p266 = scmp.eq.s32.totalorder %s18, 0
    %p267 = por %p265, %p266
    %p268 = scmp.ne.s32.totalorder %s260, %s262
    %p269 = scmp.eq.s32.totalorder %s23, 7
    %p270 = por %p268, %p269
    %p271 = scmp.ne.s32.totalorder %s262, %s263
    %p272 = scmp.eq.s32.totalorder %s23, 0
    %p273 = por %p271, %p272
    %p274 = scmp.ne.s32.totalorder %s262, %s263
    %p275 = scmp.eq.s32.totalorder %s24, 7
    %p276 = por %p274, %p275
    %p278 = scmp.ne.s32.totalorder %s263, %s277
    %p279 = scmp.eq.s32.totalorder %s24, 0
    %p280 = por %p278, %p279
    %s282 = sadd.s32 %s281, 1
    %p285 = scmp.eq.s32.totalorder %s18, 7
    %p286 = scmp.ne.s32.totalorder %s281, %s283
    %p287 = scmp.eq.s32.totalorder %s18, 0
    %p288 = por %p286, %p287
    %p289 = scmp.ne.s32.totalorder %s281, %s283
    %p290 = scmp.eq.s32.totalorder %s23, 7
    %p291 = por %p289, %p290
    %p292 = scmp.ne.s32.totalorder %s283, %s284
    %p293 = scmp.eq.s32.totalorder %s23, 0
    %p294 = por %p292, %p293
    %p295 = scmp.ne.s32.totalorder %s283, %s284
    %p296 = scmp.eq.s32.totalorder %s24, 7
    %p297 = por %p295, %p296
    %p299 = scmp.ne.s32.totalorder %s284, %s298
    %p300 = scmp.eq.s32.totalorder %s24, 0
    %p301 = por %p299, %p300
    %s302 = ssub.s32 %s25, %s37
    %s303 = ssub.s32 %s26, %s33
    %s304 = sor.u32 %s302, %s303
    %p305 = scmp.eq.s32.totalorder %s304, 0
    %s307 = sadd.s32 %s306, 1
    %s308 = scalar_select %p305, %s306, %s307
    %p311 = pneg %p305
    %p312 = scmp.eq.s32.totalorder %s18, 7
    %p313 = por %p311, %p312
    %p314 = scmp.ne.s32.totalorder %s306, %s309
    %p315 = scmp.eq.s32.totalorder %s18, 0
    %p316 = por %p314, %p315
    %p317 = scmp.ne.s32.totalorder %s306, %s309
    %p318 = scmp.eq.s32.totalorder %s23, 7
    %p319 = por %p317, %p318
    %p320 = scmp.ne.s32.totalorder %s309, %s310
    %p321 = scmp.eq.s32.totalorder %s23, 0
    %p322 = por %p320, %p321
    %p323 = scmp.ne.s32.totalorder %s309, %s310
    %p324 = scmp.eq.s32.totalorder %s24, 7
    %p325 = por %p323, %p324
    %p327 = scmp.ne.s32.totalorder %s310, %s326
    %p328 = scmp.eq.s32.totalorder %s24, 0
    %p329 = por %p327, %p328
    %p330 = scmp.le.s32.totalorder 1, %s18
    %p331 = scmp.lt.s32.totalorder %s18, 9
    %p332 = pnand %p330, %p331
    %p333 = pneg %p332
    // Predicated region
    $region9: #{tpu_custom_call.1} parent=5 // pred_check
      _
    $region10: #{tpu_custom_call.1} parent=5 // pred_check_branch
      %335 = sbr.rel (%p332) target = $region12
    $region11: #{tpu_custom_call.1} parent=5 // pred_region
      %s336 = ssub.s32 %s18, 1
      // Predicated region
      $region13: #{tpu_custom_call.1} parent=11 // pred_check
        %p337 = pneg %p105
      $region14: #{tpu_custom_call.1} parent=11 // pred_check_branch
        %339 = sbr.rel (%p337) target = $region16
      $region15: #{tpu_custom_call.1} parent=11 // pred_region
        _
      $region16: #{tpu_custom_call.1} parent=11 // pred_fallthru
        _
      // Predicated region
      $region17: #{tpu_custom_call.1} parent=11 // pred_check
        %p340 = pneg %p126
      $region18: #{tpu_custom_call.1} parent=11 // pred_check_branch
        %342 = sbr.rel (%p340) target = $region20
      $region19: #{tpu_custom_call.1} parent=11 // pred_region
        _
      $region20: #{tpu_custom_call.1} parent=11 // pred_fallthru
        _
      // Predicated region
      $region21: #{tpu_custom_call.1} parent=11 // pred_check
        %p343 = pneg %p147
      $region22: #{tpu_custom_call.1} parent=11 // pred_check_branch
        %345 = sbr.rel (%p343) target = $region24
      $region23: #{tpu_custom_call.1} parent=11 // pred_region
        _
      $region24: #{tpu_custom_call.1} parent=11 // pred_fallthru
        _
      // Predicated region
      $region25: #{tpu_custom_call.1} parent=11 // pred_check
        %p346 = pneg %p168
      $region26: #{tpu_custom_call.1} parent=11 // pred_check_branch
        %348 = sbr.rel (%p346) target = $region28
      $region27: #{tpu_custom_call.1} parent=11 // pred_region
        _
      $region28: #{tpu_custom_call.1} parent=11 // pred_fallthru
        _
      // Predicated region
      $region29: #{tpu_custom_call.1} parent=11 // pred_check
        %p349 = pneg %p189
      $region30: #{tpu_custom_call.1} parent=11 // pred_check_branch
        %351 = sbr.rel (%p349) target = $region32
      $region31: #{tpu_custom_call.1} parent=11 // pred_region
        _
      $region32: #{tpu_custom_call.1} parent=11 // pred_fallthru
        _
      // Predicated region
      $region33: #{tpu_custom_call.1} parent=11 // pred_check
        %p352 = pneg %p210
      $region34: #{tpu_custom_call.1} parent=11 // pred_check_branch
        %354 = sbr.rel (%p352) target = $region36
      $region35: #{tpu_custom_call.1} parent=11 // pred_region
        _
      $region36: #{tpu_custom_call.1} parent=11 // pred_fallthru
        _
      // Predicated region
      $region37: #{tpu_custom_call.1} parent=11 // pred_check
        %p355 = pneg %p231
      $region38: #{tpu_custom_call.1} parent=11 // pred_check_branch
        %357 = sbr.rel (%p355) target = $region40
      $region39: #{tpu_custom_call.1} parent=11 // pred_region
        _
      $region40: #{tpu_custom_call.1} parent=11 // pred_fallthru
        _
      // Predicated region
      $region41: #{tpu_custom_call.1} parent=11 // pred_check
        %p358 = pneg %p252
      $region42: #{tpu_custom_call.1} parent=11 // pred_check_branch
        %360 = sbr.rel (%p358) target = $region44
      $region43: #{tpu_custom_call.1} parent=11 // pred_region
        _
      $region44: #{tpu_custom_call.1} parent=11 // pred_fallthru
        _
      // Predicated region
      $region45: #{tpu_custom_call.1} parent=11 // pred_check
        %p361 = pneg %p273
      $region46: #{tpu_custom_call.1} parent=11 // pred_check_branch
        %363 = sbr.rel (%p361) target = $region48
      $region47: #{tpu_custom_call.1} parent=11 // pred_region
        _
      $region48: #{tpu_custom_call.1} parent=11 // pred_fallthru
        _
      // Predicated region
      $region49: #{tpu_custom_call.1} parent=11 // pred_check
        %p364 = pneg %p294
      $region50: #{tpu_custom_call.1} parent=11 // pred_check_branch
        %366 = sbr.rel (%p364) target = $region52
      $region51: #{tpu_custom_call.1} parent=11 // pred_region
        _
      $region52: #{tpu_custom_call.1} parent=11 // pred_fallthru
        _
    $region12: #{tpu_custom_call.1} parent=5 // pred_fallthru
      _
    %p367 = scmp.lt.s32.totalorder %s18, 8
    // Predicated region
    $region53: #{tpu_custom_call.1} parent=5 // pred_check
      %p368 = pneg %p367
    $region54: #{tpu_custom_call.1} parent=5 // pred_check_branch
      %370 = sbr.rel (%p368) target = $region56
    $region55: #{tpu_custom_call.1} parent=5 // pred_region
      // Predicated region
      $region57: #{tpu_custom_call.1} parent=55 // pred_check
        %p371 = pneg %p52
      $region58: #{tpu_custom_call.1} parent=55 // pred_check_branch
        %373 = sbr.rel (%p371) target = $region60
      $region59: #{tpu_custom_call.1} parent=55 // pred_region
        %s374 = smul.u32 8, %s26
        %p375 = scmp.lt.s32.totalorder %s25, 1
        %s376 = scalar_select %p375, %s25, 1
        %p377 = scmp.lt.s32.totalorder %s374, 31
        %s378 = scalar_select %p377, %s374, 31
        %s379 = smul.addr %s376, 32
        %s380 = sadd.s32 %s378, %s379
        %s381 = smul.addr %s380, 8
        %s382 = scalar_lea.vmem %s0, %s381
        %s383 = smul.u32 8, %s26
      $region60: #{tpu_custom_call.1} parent=55 // pred_fallthru
        _
      // Predicated region
      $region61: #{tpu_custom_call.1} parent=55 // pred_check
        %p384 = pneg %p78
      $region62: #{tpu_custom_call.1} parent=55 // pred_check_branch
        %386 = sbr.rel (%p384) target = $region64
      $region63: #{tpu_custom_call.1} parent=55 // pred_region
        %p387 = scmp.lt.s32.totalorder %s25, 1
        %s388 = scalar_select %p387, %s25, 1
        %s389 = smul.addr %s388, 8
        %s390 = smul.addr %s389, 4
        %s391 = scalar_lea.vmem %s1, %s390
      $region64: #{tpu_custom_call.1} parent=55 // pred_fallthru
        _
    $region56: #{tpu_custom_call.1} parent=5 // pred_fallthru
      _
    %p392 = scmp.le.s32.totalorder 1, %s18
    %p393 = scmp.lt.s32.totalorder %s18, 9
    %p394 = pnand %p392, %p393
    %p395 = pneg %p394
    // Predicated region
    $region65: #{tpu_custom_call.1} parent=5 // pred_check
      _
    $region66: #{tpu_custom_call.1} parent=5 // pred_check_branch
      %397 = sbr.rel (%p394) target = $region68
    $region67: #{tpu_custom_call.1} parent=5 // pred_region
      %s398 = ssub.s32 %s18, 1
      %s399 = smul.u32 8, %s28
      %p400 = scmp.lt.s32.totalorder %s27, 1
      %s401 = scalar_select %p400, %s27, 1
      %p402 = scmp.lt.s32.totalorder %s399, 31
      %s403 = scalar_select %p402, %s399, 31
      %s404 = smul.addr %s401, 32
      %s405 = sadd.s32 %s403, %s404
      %s406 = smul.addr %s405, 8
      %s407 = scalar_lea.vmem %s0, %s406
      %p408 = pneg %p58
      %p409 = pneg %p55
      %p410 = scmp.lt.s32.totalorder %s27, 1
      %s411 = scalar_select %p410, %s27, 1
      %s412 = smul.addr %s411, 8
      %s413 = smul.addr %s412, 4
      %s414 = scalar_lea.vmem %s1, %s413
      %p415 = pneg %p84
      %p416 = pneg %p81
      %p417 = pneg %p105
      %p418 = pneg %p102
      %p419 = pneg %p126
      %p420 = pneg %p123
      %p421 = pneg %p147
      %p422 = pneg %p144
      %p423 = pneg %p168
      %p424 = pneg %p165
      %p425 = pneg %p189
      %p426 = pneg %p186
      %p427 = pneg %p210
      %p428 = pneg %p207
      %p429 = pneg %p231
      %p430 = pneg %p228
      %p431 = pneg %p252
      %p432 = pneg %p249
      %p433 = pneg %p273
      %p434 = pneg %p270
      %p435 = pneg %p294
      %p436 = pneg %p291
      %p437 = pneg %p322
      %p438 = pneg %p319
      %s439 = smul.u32 8, %s28
      %p440 = scmp.lt.s32.totalorder %s27, 1
      %s441 = scalar_select %p440, %s27, 1
      %p442 = scmp.lt.s32.totalorder %s439, 31
      %s443 = scalar_select %p442, %s439, 31
      %s444 = smul.addr %s441, 32
      %s445 = sadd.s32 %s443, %s444
      %s446 = smul.addr %s445, 8
      %s447 = scalar_lea.vmem %s12, %s446
      %s448 = smul.u32 8, %s28
      %p449 = scmp.lt.s32.totalorder %s27, 1
      %s450 = scalar_select %p449, %s27, 1
      %p451 = scmp.lt.s32.totalorder %s448, 31
      %s452 = scalar_select %p451, %s448, 31
      %s453 = smul.addr %s450, 32
      %s454 = sadd.s32 %s452, %s453
      %s455 = smul.addr %s454, 8
      %s456 = scalar_lea.vmem %s0, %s455
      %s457 = smul.u32 8, %s28
      %p458 = scmp.lt.s32.totalorder %s27, 1
      %s459 = scalar_select %p458, %s27, 1
      %s460 = smul.addr %s459, 8
      %s461 = smul.addr %s460, 4
      %s462 = scalar_lea.vmem %s1, %s461
      %s463 = smul.u32 8, %s28
      %p464 = scmp.lt.s32.totalorder %s27, 1
      %s465 = scalar_select %p464, %s27, 1
      %p466 = scmp.lt.s32.totalorder %s463, 31
      %s467 = scalar_select %p466, %s463, 31
      %s468 = smul.addr %s465, 32
      %s469 = sadd.s32 %s467, %s468
      %s470 = smul.addr %s469, 8
      %s471 = scalar_lea.vmem %s12, %s470
      %s472 = smul.u32 8, %s28
      %p474 = scmp.eq.s32.totalorder %s28, 0
      // Predicated region
      $region69: #{tpu_custom_call.1} parent=67 // pred_check
        %p475 = pneg %p474
      $region70: #{tpu_custom_call.1} parent=67 // pred_check_branch
        %477 = sbr.rel (%p475) target = $region72
      $region71: #{tpu_custom_call.1} parent=67 // pred_region
        %v478 = vld [vmem:[%s462] sm:$0xf]
        %v479 = vld [vmem:[%s462 + $0x4] sm:$0xf]
        %v480 = vld [vmem:[%s462 + $0x8] sm:$0xf]
        %v481 = vld [vmem:[%s462 + $0xc] sm:$0xf]
        %v482 = vld [vmem:[%s462 + $0x10] sm:$0xf]
        %v483 = vld [vmem:[%s462 + $0x14] sm:$0xf]
        %v484 = vld [vmem:[%s462 + $0x18] sm:$0xf]
        %v485 = vld [vmem:[%s462 + $0x1c] sm:$0xf]
        %v486 = vld [vmem:[%s2] sm:$0xf]
        %v487 = vld [vmem:[%s2 + $0x4] sm:$0xf]
        %v488 = vld [vmem:[%s2 + $0x8] sm:$0xf]
        %v489 = vld [vmem:[%s2 + $0xc] sm:$0xf]
        %v490 = vld [vmem:[%s2 + $0x10] sm:$0xf]
        %v491 = vld [vmem:[%s2 + $0x14] sm:$0xf]
        %v492 = vld [vmem:[%s2 + $0x18] sm:$0xf]
        %v493 = vld [vmem:[%s2 + $0x1c] sm:$0xf]
        %v494 = vld [vmem:[%s2 + $0x20] sm:$0xf]
        %v495 = vld [vmem:[%s2 + $0x24] sm:$0xf]
        %v496 = vld [vmem:[%s2 + $0x28] sm:$0xf]
        %v497 = vld [vmem:[%s2 + $0x2c] sm:$0xf]
        %v498 = vld [vmem:[%s2 + $0x30] sm:$0xf]
        %v499 = vld [vmem:[%s2 + $0x34] sm:$0xf]
        %v500 = vld [vmem:[%s2 + $0x38] sm:$0xf]
        %v501 = vld [vmem:[%s2 + $0x3c] sm:$0xf]
        %v502 = vld [vmem:[%s3] sm:$0x1]
        %v504 = vlaneseq
        %v505 = vshrl.u32 %v504, 7
        %v506 = vsub.s32 0, %v505
        %v507 = vrot.slane %v502, %v506
        %v517 = vunpack.c.l.b16 %v478
        %v518 = vunpack.c.l.b16 %v479
        %v519 = vunpack.c.l.b16 %v480
        %v520 = vunpack.c.l.b16 %v481
        %v521 = vunpack.c.l.b16 %v482
        %v522 = vunpack.c.l.b16 %v483
        %v523 = vunpack.c.l.b16 %v484
        %v524 = vunpack.c.l.b16 %v485
        %v525 = vpack.c.b16 %v518, %v517
        %v526 = vpack.c.b16 %v520, %v519
        %v527 = vpack.c.b16 %v522, %v521
        %v528 = vpack.c.b16 %v524, %v523
        %v549 = vunpack.c.l.b16 %v486
        %v550 = vunpack.c.l.b16 %v487
        %v551 = vunpack.c.l.b16 %v488
        %v552 = vunpack.c.l.b16 %v489
        %v553 = vunpack.c.l.b16 %v490
        %v554 = vunpack.c.l.b16 %v491
        %v555 = vunpack.c.l.b16 %v492
        %v556 = vunpack.c.l.b16 %v493
        %v557 = vunpack.c.l.b16 %v494
        %v558 = vunpack.c.l.b16 %v495
        %v559 = vunpack.c.l.b16 %v496
        %v560 = vunpack.c.l.b16 %v497
        %v561 = vunpack.c.l.b16 %v498
        %v562 = vunpack.c.l.b16 %v499
        %v563 = vunpack.c.l.b16 %v500
        %v564 = vunpack.c.l.b16 %v501
        %v565 = vpack.c.b16 %v550, %v549
        %v566 = vpack.c.b16 %v552, %v551
        %v567 = vpack.c.b16 %v554, %v553
        %v568 = vpack.c.b16 %v556, %v555
        %v569 = vpack.c.b16 %v558, %v557
        %v570 = vpack.c.b16 %v560, %v559
        %v571 = vpack.c.b16 %v562, %v561
        %v572 = vpack.c.b16 %v564, %v563
        %581 = vmatprep.subr.bf16.mxu0 0
        %582 = vmatpush1.bf16.msra.mxu0 %v565
        %583 = vmatprep.subr.bf16.mxu0 0
        %584 = vmatpush1.bf16.msra.mxu0 %v566
        %585 = vmatprep.subr.bf16.mxu0 0
        %586 = vmatpush1.bf16.msra.mxu0 %v567
        %587 = vmatprep.subr.bf16.mxu0 0
        %588 = vmatpush1.bf16.msra.mxu0 %v568
        %589 = vmatprep.subr.bf16.mxu0 0
        %590 = vmatpush1.bf16.msra.mxu0 %v569
        %591 = vmatprep.subr.bf16.mxu0 0
        %592 = vmatpush1.bf16.msra.mxu0 %v570
        %593 = vmatprep.subr.bf16.mxu0 0
        %594 = vmatpush1.bf16.msra.mxu0 %v571
        %595 = vmatprep.subr.bf16.mxu0 0
        %596 = vmatpush1.bf16.msra.mxu0 %v572
        %597 = vmatprep.subr.bf16.mxu0 0
        %598 = vmatpush1.bf16.msra.mxu0 0
        %599 = vmatprep.subr.bf16.mxu0 0
        %600 = vmatpush1.bf16.msra.mxu0 0
        %601 = vmatprep.subr.bf16.mxu0 0
        %602 = vmatpush1.bf16.msra.mxu0 0
        %603 = vmatprep.subr.bf16.mxu0 0
        %604 = vmatpush1.bf16.msra.mxu0 0
        %605 = vmatprep.subr.bf16.mxu0 0
        %606 = vmatpush1.bf16.msra.mxu0 0
        %607 = vmatprep.subr.bf16.mxu0 0
        %608 = vmatpush1.bf16.msra.mxu0 0
        %609 = vmatprep.subr.bf16.mxu0 0
        %610 = vmatpush1.bf16.msra.mxu0 0
        %611 = vmatprep.subr.bf16.mxu0 0
        %612 = vmatpush1.bf16.msra.mxu0 0
        %613 = vmatprep.mubr.bf16.mxu0 0
        %614 = vmatmul.mubr.bf16.gmra.mrb[0].mxu0 %v525
        %v615 = vpop.f32.mrb[0].mxu0
        %v616 = vadd.f32 %v507, %v615
        %v617 = vpop.f32.mrb[0].mxu0
        %v618 = vpop.f32.mrb[0].mxu0
        %v619 = vadd.f32 %v507, %v618
        %v620 = vpop.f32.mrb[0].mxu0
        %621 = vmatprep.mubr.bf16.mxu0 0
        %622 = vmatmul.mubr.bf16.gmra.mrb[0].mxu0 %v526
        %v623 = vpop.f32.mrb[0].mxu0
        %v624 = vadd.f32 %v507, %v623
        %v625 = vpop.f32.mrb[0].mxu0
        %v626 = vpop.f32.mrb[0].mxu0
        %v627 = vadd.f32 %v507, %v626
        %v628 = vpop.f32.mrb[0].mxu0
        %629 = vmatprep.mubr.bf16.mxu0 0
        %630 = vmatmul.mubr.bf16.gmra.mrb[0].mxu0 %v527
        %v631 = vpop.f32.mrb[0].mxu0
        %v632 = vadd.f32 %v507, %v631
        %v633 = vpop.f32.mrb[0].mxu0
        %v634 = vpop.f32.mrb[0].mxu0
        %v635 = vadd.f32 %v507, %v634
        %v636 = vpop.f32.mrb[0].mxu0
        %637 = vmatprep.mubr.bf16.mxu0 0
        %638 = vmatmul.mubr.bf16.gmra.mrb[0].mxu0 %v528
        %v639 = vpop.f32.mrb[0].mxu0
        %v640 = vadd.f32 %v507, %v639
        %v641 = vpop.f32.mrb[0].mxu0
        %v642 = vpop.f32.mrb[0].mxu0
        %v643 = vadd.f32 %v507, %v642
        %v644 = vpop.f32.mrb[0].mxu0
        %645 = vdwg.mxu0
        %vm646 = vcmask 261120
        %v647 = vsel %vm646, %v616, 0.0
        %648 = vadd.xlane.f32.xlu0 %v647
        %v649 = vpop.xlane.xlu0 %648
        %v650 = vsel %vm646, %v619, 0.0
        %651 = vadd.xlane.f32.xlu0 %v650
        %v652 = vpop.xlane.xlu0 %651
        %v653 = vsel %vm646, %v624, 0.0
        %654 = vadd.xlane.f32.xlu0 %v653
        %v655 = vpop.xlane.xlu0 %654
        %v656 = vsel %vm646, %v627, 0.0
        %657 = vadd.xlane.f32.xlu0 %v656
        %v658 = vpop.xlane.xlu0 %657
        %v659 = vsel %vm646, %v632, 0.0
        %660 = vadd.xlane.f32.xlu0 %v659
        %v661 = vpop.xlane.xlu0 %660
        %v662 = vsel %vm646, %v635, 0.0
        %663 = vadd.xlane.f32.xlu0 %v662
        %v664 = vpop.xlane.xlu0 %663
        %v665 = vsel %vm646, %v640, 0.0
        %666 = vadd.xlane.f32.xlu0 %v665
        %v667 = vpop.xlane.xlu0 %666
        %v668 = vsel %vm646, %v643, 0.0
        %669 = vadd.xlane.f32.xlu0 %v668
        %v670 = vpop.xlane.xlu0 %669
        %v671 = vrcp.pop 32.0
        %v672 = vmul.f32 %v649, %v671
        %v673 = vmul.f32 %v652, %v671
        %v674 = vmul.f32 %v655, %v671
        %v675 = vmul.f32 %v658, %v671
        %v676 = vmul.f32 %v661, %v671
        %v677 = vmul.f32 %v664, %v671
        %v678 = vmul.f32 %v667, %v671
        %v679 = vmul.f32 %v670, %v671
        %v680 = vsub.f32 %v616, %v672
        %v681 = vsub.f32 %v619, %v673
        %v682 = vsub.f32 %v624, %v674
        %v683 = vsub.f32 %v627, %v675
        %v684 = vsub.f32 %v632, %v676
        %v685 = vsub.f32 %v635, %v677
        %v686 = vsub.f32 %v640, %v678
        %v687 = vsub.f32 %v643, %v679
        %v688 = vmul.f32 %v680, %v680
        %v689 = vmul.f32 %v681, %v681
        %v690 = vmul.f32 %v682, %v682
        %v691 = vmul.f32 %v683, %v683
        %v692 = vmul.f32 %v684, %v684
        %v693 = vmul.f32 %v685, %v685
        %v694 = vmul.f32 %v686, %v686
        %v695 = vmul.f32 %v687, %v687
        %v696 = vsel %vm646, %v688, 0.0
        %697 = vadd.xlane.f32.xlu0 %v696
        %v698 = vpop.xlane.xlu0 %697
        %v699 = vsel %vm646, %v689, 0.0
        %700 = vadd.xlane.f32.xlu0 %v699
        %v701 = vpop.xlane.xlu0 %700
        %v702 = vsel %vm646, %v690, 0.0
        %703 = vadd.xlane.f32.xlu0 %v702
        %v704 = vpop.xlane.xlu0 %703
        %v705 = vsel %vm646, %v691, 0.0
        %706 = vadd.xlane.f32.xlu0 %v705
        %v707 = vpop.xlane.xlu0 %706
        %v708 = vsel %vm646, %v692, 0.0
        %709 = vadd.xlane.f32.xlu0 %v708
        %v710 = vpop.xlane.xlu0 %709
        %v711 = vsel %vm646, %v693, 0.0
        %712 = vadd.xlane.f32.xlu0 %v711
        %v713 = vpop.xlane.xlu0 %712
        %v714 = vsel %vm646, %v694, 0.0
        %715 = vadd.xlane.f32.xlu0 %v714
        %v716 = vpop.xlane.xlu0 %715
        %v717 = vsel %vm646, %v695, 0.0
        %718 = vadd.xlane.f32.xlu0 %v717
        %v719 = vpop.xlane.xlu0 %718
        %v720 = vmul.f32 %v698, %v671
        %v721 = vmul.f32 %v701, %v671
        %v722 = vmul.f32 %v704, %v671
        %v723 = vmul.f32 %v707, %v671
        %v724 = vmul.f32 %v710, %v671
        %v725 = vmul.f32 %v713, %v671
        %v726 = vmul.f32 %v716, %v671
        %v727 = vmul.f32 %v719, %v671
        %v728 = vadd.f32 %v720, 1e-05
        %v729 = vadd.f32 %v721, 1e-05
        %v730 = vadd.f32 %v722, 1e-05
        %v731 = vadd.f32 %v723, 1e-05
        %v732 = vadd.f32 %v724, 1e-05
        %v733 = vadd.f32 %v725, 1e-05
        %v734 = vadd.f32 %v726, 1e-05
        %v735 = vadd.f32 %v727, 1e-05
        %v736 = vrsqrt.pop %v728
        %v737 = vrsqrt.pop %v729
        %v738 = vrsqrt.pop %v730
        %v739 = vrsqrt.pop %v731
        %v740 = vrsqrt.pop %v732
        %v741 = vrsqrt.pop %v733
        %v742 = vrsqrt.pop %v734
        %v743 = vrsqrt.pop %v735
        %v744 = vmul.f32 %v680, %v736
        %v745 = vmul.f32 %v681, %v737
        %v746 = vmul.f32 %v682, %v738
        %v747 = vmul.f32 %v683, %v739
        %v748 = vmul.f32 %v684, %v740
        %v749 = vmul.f32 %v685, %v741
        %v750 = vmul.f32 %v686, %v742
        %v751 = vmul.f32 %v687, %v743
        %v752 = vpack.c.bf16 %v745, %v744
        %v753 = vpack.c.bf16 %v747, %v746
        %v754 = vpack.c.bf16 %v749, %v748
        %v755 = vpack.c.bf16 %v751, %v750
        %v756 = vld [vmem:[%s6] sm:$0xf]
        %v757 = vld [vmem:[%s6 + $0x4] sm:$0xf]
        %v758 = vld [vmem:[%s6 + $0x8] sm:$0xf]
        %v759 = vld [vmem:[%s6 + $0xc] sm:$0xf]
        %v760 = vld [vmem:[%s7] sm:$0x1]
        %v762 = vlaneseq
        %v763 = vshrl.u32 %v762, 7
        %v764 = vsub.s32 0, %v763
        %v765 = vrot.slane %v760, %v764
        %v771 = vunpack.c.l.b16 %v756
        %v772 = vunpack.c.l.b16 %v757
        %v773 = vunpack.c.l.b16 %v758
        %v774 = vunpack.c.l.b16 %v759
        %v775 = vpack.c.b16 %v772, %v771
        %v776 = vpack.c.b16 %v774, %v773
        %v780 = vsel %vm646, %v752, 0
        %v783 = vsel %vm646, %v753, 0
        %v786 = vsel %vm646, %v754, 0
        %v789 = vsel %vm646, %v755, 0
        %791 = vmatprep.subr.bf16.mxu0 0
        %792 = vmatpush1.bf16.msra.mxu0 %v775
        %793 = vmatprep.subr.bf16.mxu0 0
        %794 = vmatpush1.bf16.msra.mxu0 %v776
        %795 = vmatprep.subr.bf16.mxu0 0
        %796 = vmatpush1.bf16.msra.mxu0 0
        %797 = vmatprep.subr.bf16.mxu0 0
        %798 = vmatpush1.bf16.msra.mxu0 0
        %799 = vmatprep.subr.bf16.mxu0 0
        %800 = vmatpush1.bf16.msra.mxu0 0
        %801 = vmatprep.subr.bf16.mxu0 0
        %802 = vmatpush1.bf16.msra.mxu0 0
        %803 = vmatprep.subr.bf16.mxu0 0
        %804 = vmatpush1.bf16.msra.mxu0 0
        %805 = vmatprep.subr.bf16.mxu0 0
        %806 = vmatpush1.bf16.msra.mxu0 0
        %807 = vmatprep.subr.bf16.mxu0 0
        %808 = vmatpush1.bf16.msra.mxu0 0
        %809 = vmatprep.subr.bf16.mxu0 0
        %810 = vmatpush1.bf16.msra.mxu0 0
        %811 = vmatprep.subr.bf16.mxu0 0
        %812 = vmatpush1.bf16.msra.mxu0 0
        %813 = vmatprep.subr.bf16.mxu0 0
        %814 = vmatpush1.bf16.msra.mxu0 0
        %815 = vmatprep.subr.bf16.mxu0 0
        %816 = vmatpush1.bf16.msra.mxu0 0
        %817 = vmatprep.subr.bf16.mxu0 0
        %818 = vmatpush1.bf16.msra.mxu0 0
        %819 = vmatprep.subr.bf16.mxu0 0
        %820 = vmatpush1.bf16.msra.mxu0 0
        %821 = vmatprep.subr.bf16.mxu0 0
        %822 = vmatpush1.bf16.msra.mxu0 0
        %823 = vmatprep.mubr.bf16.mxu0 0
        %824 = vmatmul.mubr.bf16.gmra.mrb[0].mxu0 %v780
        %v825 = vpop.f32.mrb[0].mxu0
        %v826 = vadd.f32 %v765, %v825
        %v827 = vpop.f32.mrb[0].mxu0
        %v828 = vpop.f32.mrb[0].mxu0
        %v829 = vadd.f32 %v765, %v828
        %v830 = vpop.f32.mrb[0].mxu0
        %831 = vmatprep.mubr.bf16.mxu0 0
        %832 = vmatmul.mubr.bf16.gmra.mrb[0].mxu0 %v783
        %v833 = vpop.f32.mrb[0].mxu0
        %v834 = vadd.f32 %v765, %v833
        %v835 = vpop.f32.mrb[0].mxu0
        %v836 = vpop.f32.mrb[0].mxu0
        %v837 = vadd.f32 %v765, %v836
        %v838 = vpop.f32.mrb[0].mxu0
        %839 = vmatprep.mubr.bf16.mxu0 0
        %840 = vmatmul.mubr.bf16.gmra.mrb[0].mxu0 %v786
        %v841 = vpop.f32.mrb[0].mxu0
        %v842 = vadd.f32 %v765, %v841
        %v843 = vpop.f32.mrb[0].mxu0
        %v844 = vpop.f32.mrb[0].mxu0
        %v845 = vadd.f32 %v765, %v844
        %v846 = vpop.f32.mrb[0].mxu0
        %847 = vmatprep.mubr.bf16.mxu0 0
        %848 = vmatmul.mubr.bf16.gmra.mrb[0].mxu0 %v789
        %v849 = vpop.f32.mrb[0].mxu0
        %v850 = vadd.f32 %v765, %v849
        %v851 = vpop.f32.mrb[0].mxu0
        %v852 = vpop.f32.mrb[0].mxu0
        %v853 = vadd.f32 %v765, %v852
        %v854 = vpop.f32.mrb[0].mxu0
        %855 = vdwg.mxu0
        %v856 = vld [vmem:[%s8] sm:$0xf]
        %v857 = vld [vmem:[%s8 + $0x4] sm:$0xf]
        %v858 = vld [vmem:[%s8 + $0x8] sm:$0xf]
        %v859 = vld [vmem:[%s8 + $0xc] sm:$0xf]
        %v860 = vld [vmem:[%s9] sm:$0x1]
        %v862 = vlaneseq
        %v863 = vshrl.u32 %v862, 7
        %v864 = vsub.s32 0, %v863
        %v865 = vrot.slane %v860, %v864
        %v871 = vunpack.c.l.b16 %v856
        %v872 = vunpack.c.l.b16 %v857
        %v873 = vunpack.c.l.b16 %v858
        %v874 = vunpack.c.l.b16 %v859
        %v875 = vpack.c.b16 %v872, %v871
        %v876 = vpack.c.b16 %v874, %v873
        %879 = vmatprep.subr.bf16.mxu0 0
        %880 = vmatpush1.bf16.msra.mxu0 %v875
        %881 = vmatprep.subr.bf16.mxu0 0
        %882 = vmatpush1.bf16.msra.mxu0 %v876
        %883 = vmatprep.subr.bf16.mxu0 0
        %884 = vmatpush1.bf16.msra.mxu0 0
        %885 = vmatprep.subr.bf16.mxu0 0
        %886 = vmatpush1.bf16.msra.mxu0 0
        %887 = vmatprep.subr.bf16.mxu0 0
        %888 = vmatpush1.bf16.msra.mxu0 0
        %889 = vmatprep.subr.bf16.mxu0 0
        %890 = vmatpush1.bf16.msra.mxu0 0
        %891 = vmatprep.subr.bf16.mxu0 0
        %892 = vmatpush1.bf16.msra.mxu0 0
        %893 = vmatprep.subr.bf16.mxu0 0
        %894 = vmatpush1.bf16.msra.mxu0 0
        %895 = vmatprep.subr.bf16.mxu0 0
        %896 = vmatpush1.bf16.msra.mxu0 0
        %897 = vmatprep.subr.bf16.mxu0 0
        %898 = vmatpush1.bf16.msra.mxu0 0
        %899 = vmatprep.subr.bf16.mxu0 0
        %900 = vmatpush1.bf16.msra.mxu0 0
        %901 = vmatprep.subr.bf16.mxu0 0
        %902 = vmatpush1.bf16.msra.mxu0 0
        %903 = vmatprep.subr.bf16.mxu0 0
        %904 = vmatpush1.bf16.msra.mxu0 0
        %905 = vmatprep.subr.bf16.mxu0 0
        %906 = vmatpush1.bf16.msra.mxu0 0
        %907 = vmatprep.subr.bf16.mxu0 0
        %908 = vmatpush1.bf16.msra.mxu0 0
        %909 = vmatprep.subr.bf16.mxu0 0
        %910 = vmatpush1.bf16.msra.mxu0 0
        %911 = vmatprep.mubr.bf16.mxu0 0
        %912 = vmatmul.mubr.bf16.gmra.mrb[0].mxu0 %v780
        %v913 = vpop.f32.mrb[0].mxu0
        %v914 = vadd.f32 %v865, %v913
        %v915 = vpop.f32.mrb[0].mxu0
        %v916 = vpop.f32.mrb[0].mxu0
        %v917 = vadd.f32 %v865, %v916
        %v918 = vpop.f32.mrb[0].mxu0
        %919 = vmatprep.mubr.bf16.mxu0 0
        %920 = vmatmul.mubr.bf16.gmra.mrb[0].mxu0 %v783
        %v921 = vpop.f32.mrb[0].mxu0
        %v922 = vadd.f32 %v865, %v921
        %v923 = vpop.f32.mrb[0].mxu0
        %v924 = vpop.f32.mrb[0].mxu0
        %v925 = vadd.f32 %v865, %v924
        %v926 = vpop.f32.mrb[0].mxu0
        %927 = vmatprep.mubr.bf16.mxu0 0
        %928 = vmatmul.mubr.bf16.gmra.mrb[0].mxu0 %v786
        %v929 = vpop.f32.mrb[0].mxu0
        %v930 = vadd.f32 %v865, %v929
        %v931 = vpop.f32.mrb[0].mxu0
        %v932 = vpop.f32.mrb[0].mxu0
        %v933 = vadd.f32 %v865, %v932
        %v934 = vpop.f32.mrb[0].mxu0
        %935 = vmatprep.mubr.bf16.mxu0 0
        %936 = vmatmul.mubr.bf16.gmra.mrb[0].mxu0 %v789
        %v937 = vpop.f32.mrb[0].mxu0
        %v938 = vadd.f32 %v865, %v937
        %v939 = vpop.f32.mrb[0].mxu0
        %v940 = vpop.f32.mrb[0].mxu0
        %v941 = vadd.f32 %v865, %v940
        %v942 = vpop.f32.mrb[0].mxu0
        %943 = vdwg.mxu0
        %952 = vrot.lane.b32.xlu0 %v826, 112
        %v953 = vpop.permute.xlu0 %952
        %954 = vrot.lane.b32.xlu0 %v829, 112
        %v955 = vpop.permute.xlu0 %954
        %956 = vrot.lane.b32.xlu0 %v834, 112
        %v957 = vpop.permute.xlu0 %956
        %958 = vrot.lane.b32.xlu0 %v837, 112
        %v959 = vpop.permute.xlu0 %958
        %960 = vrot.lane.b32.xlu0 %v842, 112
        %v961 = vpop.permute.xlu0 %960
        %962 = vrot.lane.b32.xlu0 %v845, 112
        %v963 = vpop.permute.xlu0 %962
        %964 = vrot.lane.b32.xlu0 %v850, 112
        %v965 = vpop.permute.xlu0 %964
        %966 = vrot.lane.b32.xlu0 %v853, 112
        %v967 = vpop.permute.xlu0 %966
        %v976 = vcombine.high %v826, 0.0
        %v978 = vunpack.c.l.s4 1983009808
        %v979 = vunpack.c.0.s8 %v978
        %v980 = vlaneseq
        %v981 = vshrl.u32 %v980, 7
        %v982 = vsub.s32 %v979, %v981
        %v983 = vrot.slane %v826, %v982
        %v985 = vunpack.c.l.s4 1983009808
        %v986 = vunpack.c.0.s8 %v985
        %v987 = vlaneseq
        %v988 = vshrl.u32 %v987, 7
        %v989 = vsub.s32 %v986, %v988
        %v990 = vrot.slane %v976, %v989
        %v991 = vcombine.high %v953, 0.0
        %v993 = vunpack.c.l.s4 1983009808
        %v994 = vunpack.c.0.s8 %v993
        %v995 = vlaneseq
        %v996 = vshrl.u32 %v995, 7
        %v997 = vsub.s32 %v994, %v996
        %v998 = vrot.slane %v953, %v997
        %v1000 = vunpack.c.l.s4 1983009808
        %v1001 = vunpack.c.0.s8 %v1000
        %v1002 = vlaneseq
        %v1003 = vshrl.u32 %v1002, 7
        %v1004 = vsub.s32 %v1001, %v1003
        %v1005 = vrot.slane %v991, %v1004
        %v1006 = vcombine.low %v983, %v998
        %v1007 = vcombine.high %v983, %v998
        %v1009 = vunpack.c.l.s4 1934713408
        %v1010 = vunpack.c.0.s8 %v1009
        %v1011 = vlaneseq
        %v1012 = vshrl.u32 %v1011, 7
        %v1013 = vsub.s32 %v1010, %v1012
        %v1014 = vrot.slane %v1006, %v1013
        %v1016 = vunpack.c.l.s4 1934713408
        %v1017 = vunpack.c.0.s8 %v1016
        %v1018 = vlaneseq
        %v1019 = vshrl.u32 %v1018, 7
        %v1020 = vsub.s32 %v1017, %v1019
        %v1021 = vrot.slane %v1007, %v1020
        %v1022 = vcombine.low %v990, %v1005
        %v1023 = vcombine.high %v990, %v1005
        %v1025 = vunpack.c.l.s4 1934713408
        %v1026 = vunpack.c.0.s8 %v1025
        %v1027 = vlaneseq
        %v1028 = vshrl.u32 %v1027, 7
        %v1029 = vsub.s32 %v1026, %v1028
        %v1030 = vrot.slane %v1022, %v1029
        %v1032 = vunpack.c.l.s4 1934713408
        %v1033 = vunpack.c.0.s8 %v1032
        %v1034 = vlaneseq
        %v1035 = vshrl.u32 %v1034, 7
        %v1036 = vsub.s32 %v1033, %v1035
        %v1037 = vrot.slane %v1023, %v1036
        %v1038 = vcombine.high %v1014, 0.0
        %v1039 = vcombine.high %v1021, 0.0
        %v1040 = vcombine.high %v1030, 0.0
        %v1041 = vcombine.high %v1037, 0.0
        %v1042 = vcombine.high %v829, 0.0
        %v1044 = vunpack.c.l.s4 1983009808
        %v1045 = vunpack.c.0.s8 %v1044
        %v1046 = vlaneseq
        %v1047 = vshrl.u32 %v1046, 7
        %v1048 = vsub.s32 %v1045, %v1047
        %v1049 = vrot.slane %v829, %v1048
        %v1051 = vunpack.c.l.s4 1983009808
        %v1052 = vunpack.c.0.s8 %v1051
        %v1053 = vlaneseq
        %v1054 = vshrl.u32 %v1053, 7
        %v1055 = vsub.s32 %v1052, %v1054
        %v1056 = vrot.slane %v1042, %v1055
        %v1057 = vcombine.high %v955, 0.0
        %v1059 = vunpack.c.l.s4 1983009808
        %v1060 = vunpack.c.0.s8 %v1059
        %v1061 = vlaneseq
        %v1062 = vshrl.u32 %v1061, 7
        %v1063 = vsub.s32 %v1060, %v1062
        %v1064 = vrot.slane %v955, %v1063
        %v1066 = vunpack.c.l.s4 1983009808
        %v1067 = vunpack.c.0.s8 %v1066
        %v1068 = vlaneseq
        %v1069 = vshrl.u32 %v1068, 7
        %v1070 = vsub.s32 %v1067, %v1069
        %v1071 = vrot.slane %v1057, %v1070
        %v1072 = vcombine.low %v1049, %v1064
        %v1073 = vcombine.high %v1049, %v1064
        %v1075 = vunpack.c.l.s4 1934713408
        %v1076 = vunpack.c.0.s8 %v1075
        %v1077 = vlaneseq
        %v1078 = vshrl.u32 %v1077, 7
        %v1079 = vsub.s32 %v1076, %v1078
        %v1080 = vrot.slane %v1072, %v1079
        %v1082 = vunpack.c.l.s4 1934713408
        %v1083 = vunpack.c.0.s8 %v1082
        %v1084 = vlaneseq
        %v1085 = vshrl.u32 %v1084, 7
        %v1086 = vsub.s32 %v1083, %v1085
        %v1087 = vrot.slane %v1073, %v1086
        %v1088 = vcombine.low %v1056, %v1071
        %v1089 = vcombine.high %v1056, %v1071
        %v1091 = vunpack.c.l.s4 1934713408
        %v1092 = vunpack.c.0.s8 %v1091
        %v1093 = vlaneseq
        %v1094 = vshrl.u32 %v1093, 7
        %v1095 = vsub.s32 %v1092, %v1094
        %v1096 = vrot.slane %v1088, %v1095
        %v1098 = vunpack.c.l.s4 1934713408
        %v1099 = vunpack.c.0.s8 %v1098
        %v1100 = vlaneseq
        %v1101 = vshrl.u32 %v1100, 7
        %v1102 = vsub.s32 %v1099, %v1101
        %v1103 = vrot.slane %v1089, %v1102
        %v1104 = vcombine.high %v1080, 0.0
        %v1105 = vcombine.high %v1087, 0.0
        %v1106 = vcombine.high %v1096, 0.0
        %v1107 = vcombine.high %v1103, 0.0
        %v1108 = vcombine.high %v834, 0.0
        %v1110 = vunpack.c.l.s4 1983009808
        %v1111 = vunpack.c.0.s8 %v1110
        %v1112 = vlaneseq
        %v1113 = vshrl.u32 %v1112, 7
        %v1114 = vsub.s32 %v1111, %v1113
        %v1115 = vrot.slane %v834, %v1114
        %v1117 = vunpack.c.l.s4 1983009808
        %v1118 = vunpack.c.0.s8 %v1117
        %v1119 = vlaneseq
        %v1120 = vshrl.u32 %v1119, 7
        %v1121 = vsub.s32 %v1118, %v1120
        %v1122 = vrot.slane %v1108, %v1121
        %v1123 = vcombine.high %v957, 0.0
        %v1125 = vunpack.c.l.s4 1983009808
        %v1126 = vunpack.c.0.s8 %v1125
        %v1127 = vlaneseq
        %v1128 = vshrl.u32 %v1127, 7
        %v1129 = vsub.s32 %v1126, %v1128
        %v1130 = vrot.slane %v957, %v1129
        %v1132 = vunpack.c.l.s4 1983009808
        %v1133 = vunpack.c.0.s8 %v1132
        %v1134 = vlaneseq
        %v1135 = vshrl.u32 %v1134, 7
        %v1136 = vsub.s32 %v1133, %v1135
        %v1137 = vrot.slane %v1123, %v1136
        %v1138 = vcombine.low %v1115, %v1130
        %v1139 = vcombine.high %v1115, %v1130
        %v1141 = vunpack.c.l.s4 1934713408
        %v1142 = vunpack.c.0.s8 %v1141
        %v1143 = vlaneseq
        %v1144 = vshrl.u32 %v1143, 7
        %v1145 = vsub.s32 %v1142, %v1144
        %v1146 = vrot.slane %v1138, %v1145
        %v1148 = vunpack.c.l.s4 1934713408
        %v1149 = vunpack.c.0.s8 %v1148
        %v1150 = vlaneseq
        %v1151 = vshrl.u32 %v1150, 7
        %v1152 = vsub.s32 %v1149, %v1151
        %v1153 = vrot.slane %v1139, %v1152
        %v1154 = vcombine.low %v1122, %v1137
        %v1155 = vcombine.high %v1122, %v1137
        %v1157 = vunpack.c.l.s4 1934713408
        %v1158 = vunpack.c.0.s8 %v1157
        %v1159 = vlaneseq
        %v1160 = vshrl.u32 %v1159, 7
        %v1161 = vsub.s32 %v1158, %v1160
        %v1162 = vrot.slane %v1154, %v1161
        %v1164 = vunpack.c.l.s4 1934713408
        %v1165 = vunpack.c.0.s8 %v1164
        %v1166 = vlaneseq
        %v1167 = vshrl.u32 %v1166, 7
        %v1168 = vsub.s32 %v1165, %v1167
        %v1169 = vrot.slane %v1155, %v1168
        %v1170 = vcombine.high %v1146, 0.0
        %v1171 = vcombine.high %v1153, 0.0
        %v1172 = vcombine.high %v1162, 0.0
        %v1173 = vcombine.high %v1169, 0.0
        %v1174 = vcombine.high %v837, 0.0
        %v1176 = vunpack.c.l.s4 1983009808
        %v1177 = vunpack.c.0.s8 %v1176
        %v1178 = vlaneseq
        %v1179 = vshrl.u32 %v1178, 7
        %v1180 = vsub.s32 %v1177, %v1179
        %v1181 = vrot.slane %v837, %v1180
        %v1183 = vunpack.c.l.s4 1983009808
        %v1184 = vunpack.c.0.s8 %v1183
        %v1185 = vlaneseq
        %v1186 = vshrl.u32 %v1185, 7
        %v1187 = vsub.s32 %v1184, %v1186
        %v1188 = vrot.slane %v1174, %v1187
        %v1189 = vcombine.high %v959, 0.0
        %v1191 = vunpack.c.l.s4 1983009808
        %v1192 = vunpack.c.0.s8 %v1191
        %v1193 = vlaneseq
        %v1194 = vshrl.u32 %v1193, 7
        %v1195 = vsub.s32 %v1192, %v1194
        %v1196 = vrot.slane %v959, %v1195
        %v1198 = vunpack.c.l.s4 1983009808
        %v1199 = vunpack.c.0.s8 %v1198
        %v1200 = vlaneseq
        %v1201 = vshrl.u32 %v1200, 7
        %v1202 = vsub.s32 %v1199, %v1201
        %v1203 = vrot.slane %v1189, %v1202
        %v1204 = vcombine.low %v1181, %v1196
        %v1205 = vcombine.high %v1181, %v1196
        %v1207 = vunpack.c.l.s4 1934713408
        %v1208 = vunpack.c.0.s8 %v1207
        %v1209 = vlaneseq
        %v1210 = vshrl.u32 %v1209, 7
        %v1211 = vsub.s32 %v1208, %v1210
        %v1212 = vrot.slane %v1204, %v1211
        %v1214 = vunpack.c.l.s4 1934713408
        %v1215 = vunpack.c.0.s8 %v1214
        %v1216 = vlaneseq
        %v1217 = vshrl.u32 %v1216, 7
        %v1218 = vsub.s32 %v1215, %v1217
        %v1219 = vrot.slane %v1205, %v1218
        %v1220 = vcombine.low %v1188, %v1203
        %v1221 = vcombine.high %v1188, %v1203
        %v1223 = vunpack.c.l.s4 1934713408
        %v1224 = vunpack.c.0.s8 %v1223
        %v1225 = vlaneseq
        %v1226 = vshrl.u32 %v1225, 7
        %v1227 = vsub.s32 %v1224, %v1226
        %v1228 = vrot.slane %v1220, %v1227
        %v1230 = vunpack.c.l.s4 1934713408
        %v1231 = vunpack.c.0.s8 %v1230
        %v1232 = vlaneseq
        %v1233 = vshrl.u32 %v1232, 7
        %v1234 = vsub.s32 %v1231, %v1233
        %v1235 = vrot.slane %v1221, %v1234
        %v1236 = vcombine.high %v1212, 0.0
        %v1237 = vcombine.high %v1219, 0.0
        %v1238 = vcombine.high %v1228, 0.0
        %v1239 = vcombine.high %v1235, 0.0
        %v1240 = vcombine.high %v842, 0.0
        %v1242 = vunpack.c.l.s4 1983009808
        %v1243 = vunpack.c.0.s8 %v1242
        %v1244 = vlaneseq
        %v1245 = vshrl.u32 %v1244, 7
        %v1246 = vsub.s32 %v1243, %v1245
        %v1247 = vrot.slane %v842, %v1246
        %v1249 = vunpack.c.l.s4 1983009808
        %v1250 = vunpack.c.0.s8 %v1249
        %v1251 = vlaneseq
        %v1252 = vshrl.u32 %v1251, 7
        %v1253 = vsub.s32 %v1250, %v1252
        %v1254 = vrot.slane %v1240, %v1253
        %v1255 = vcombine.high %v961, 0.0
        %v1257 = vunpack.c.l.s4 1983009808
        %v1258 = vunpack.c.0.s8 %v1257
        %v1259 = vlaneseq
        %v1260 = vshrl.u32 %v1259, 7
        %v1261 = vsub.s32 %v1258, %v1260
        %v1262 = vrot.slane %v961, %v1261
        %v1264 = vunpack.c.l.s4 1983009808
        %v1265 = vunpack.c.0.s8 %v1264
        %v1266 = vlaneseq
        %v1267 = vshrl.u32 %v1266, 7
        %v1268 = vsub.s32 %v1265, %v1267
        %v1269 = vrot.slane %v1255, %v1268
        %v1270 = vcombine.low %v1247, %v1262
        %v1271 = vcombine.high %v1247, %v1262
        %v1273 = vunpack.c.l.s4 1934713408
        %v1274 = vunpack.c.0.s8 %v1273
        %v1275 = vlaneseq
        %v1276 = vshrl.u32 %v1275, 7
        %v1277 = vsub.s32 %v1274, %v1276
        %v1278 = vrot.slane %v1270, %v1277
        %v1280 = vunpack.c.l.s4 1934713408
        %v1281 = vunpack.c.0.s8 %v1280
        %v1282 = vlaneseq
        %v1283 = vshrl.u32 %v1282, 7
        %v1284 = vsub.s32 %v1281, %v1283
        %v1285 = vrot.slane %v1271, %v1284
        %v1286 = vcombine.low %v1254, %v1269
        %v1287 = vcombine.high %v1254, %v1269
        %v1289 = vunpack.c.l.s4 1934713408
        %v1290 = vunpack.c.0.s8 %v1289
        %v1291 = vlaneseq
        %v1292 = vshrl.u32 %v1291, 7
        %v1293 = vsub.s32 %v1290, %v1292
        %v1294 = vrot.slane %v1286, %v1293
        %v1296 = vunpack.c.l.s4 1934713408
        %v1297 = vunpack.c.0.s8 %v1296
        %v1298 = vlaneseq
        %v1299 = vshrl.u32 %v1298, 7
        %v1300 = vsub.s32 %v1297, %v1299
        %v1301 = vrot.slane %v1287, %v1300
        %v1302 = vcombine.high %v1278, 0.0
        %v1303 = vcombine.high %v1285, 0.0
        %v1304 = vcombine.high %v1294, 0.0
        %v1305 = vcombine.high %v1301, 0.0
        %v1306 = vcombine.high %v845, 0.0
        %v1308 = vunpack.c.l.s4 1983009808
        %v1309 = vunpack.c.0.s8 %v1308
        %v1310 = vlaneseq
        %v1311 = vshrl.u32 %v1310, 7
        %v1312 = vsub.s32 %v1309, %v1311
        %v1313 = vrot.slane %v845, %v1312
        %v1315 = vunpack.c.l.s4 1983009808
        %v1316 = vunpack.c.0.s8 %v1315
        %v1317 = vlaneseq
        %v1318 = vshrl.u32 %v1317, 7
        %v1319 = vsub.s32 %v1316, %v1318
        %v1320 = vrot.slane %v1306, %v1319
        %v1321 = vcombine.high %v963, 0.0
        %v1323 = vunpack.c.l.s4 1983009808
        %v1324 = vunpack.c.0.s8 %v1323
        %v1325 = vlaneseq
        %v1326 = vshrl.u32 %v1325, 7
        %v1327 = vsub.s32 %v1324, %v1326
        %v1328 = vrot.slane %v963, %v1327
        %v1330 = vunpack.c.l.s4 1983009808
        %v1331 = vunpack.c.0.s8 %v1330
        %v1332 = vlaneseq
        %v1333 = vshrl.u32 %v1332, 7
        %v1334 = vsub.s32 %v1331, %v1333
        %v1335 = vrot.slane %v1321, %v1334
        %v1336 = vcombine.low %v1313, %v1328
        %v1337 = vcombine.high %v1313, %v1328
        %v1339 = vunpack.c.l.s4 1934713408
        %v1340 = vunpack.c.0.s8 %v1339
        %v1341 = vlaneseq
        %v1342 = vshrl.u32 %v1341, 7
        %v1343 = vsub.s32 %v1340, %v1342
        %v1344 = vrot.slane %v1336, %v1343
        %v1346 = vunpack.c.l.s4 1934713408
        %v1347 = vunpack.c.0.s8 %v1346
        %v1348 = vlaneseq
        %v1349 = vshrl.u32 %v1348, 7
        %v1350 = vsub.s32 %v1347, %v1349
        %v1351 = vrot.slane %v1337, %v1350
        %v1352 = vcombine.low %v1320, %v1335
        %v1353 = vcombine.high %v1320, %v1335
        %v1355 = vunpack.c.l.s4 1934713408
        %v1356 = vunpack.c.0.s8 %v1355
        %v1357 = vlaneseq
        %v1358 = vshrl.u32 %v1357, 7
        %v1359 = vsub.s32 %v1356, %v1358
        %v1360 = vrot.slane %v1352, %v1359
        %v1362 = vunpack.c.l.s4 1934713408
        %v1363 = vunpack.c.0.s8 %v1362
        %v1364 = vlaneseq
        %v1365 = vshrl.u32 %v1364, 7
        %v1366 = vsub.s32 %v1363, %v1365
        %v1367 = vrot.slane %v1353, %v1366
        %v1368 = vcombine.high %v1344, 0.0
        %v1369 = vcombine.high %v1351, 0.0
        %v1370 = vcombine.high %v1360, 0.0
        %v1371 = vcombine.high %v1367, 0.0
        %v1372 = vcombine.high %v850, 0.0
        %v1374 = vunpack.c.l.s4 1983009808
        %v1375 = vunpack.c.0.s8 %v1374
        %v1376 = vlaneseq
        %v1377 = vshrl.u32 %v1376, 7
        %v1378 = vsub.s32 %v1375, %v1377
        %v1379 = vrot.slane %v850, %v1378
        %v1381 = vunpack.c.l.s4 1983009808
        %v1382 = vunpack.c.0.s8 %v1381
        %v1383 = vlaneseq
        %v1384 = vshrl.u32 %v1383, 7
        %v1385 = vsub.s32 %v1382, %v1384
        %v1386 = vrot.slane %v1372, %v1385
        %v1387 = vcombine.high %v965, 0.0
        %v1389 = vunpack.c.l.s4 1983009808
        %v1390 = vunpack.c.0.s8 %v1389
        %v1391 = vlaneseq
        %v1392 = vshrl.u32 %v1391, 7
        %v1393 = vsub.s32 %v1390, %v1392
        %v1394 = vrot.slane %v965, %v1393
        %v1396 = vunpack.c.l.s4 1983009808
        %v1397 = vunpack.c.0.s8 %v1396
        %v1398 = vlaneseq
        %v1399 = vshrl.u32 %v1398, 7
        %v1400 = vsub.s32 %v1397, %v1399
        %v1401 = vrot.slane %v1387, %v1400
        %v1402 = vcombine.low %v1379, %v1394
        %v1403 = vcombine.high %v1379, %v1394
        %v1405 = vunpack.c.l.s4 1934713408
        %v1406 = vunpack.c.0.s8 %v1405
        %v1407 = vlaneseq
        %v1408 = vshrl.u32 %v1407, 7
        %v1409 = vsub.s32 %v1406, %v1408
        %v1410 = vrot.slane %v1402, %v1409
        %v1412 = vunpack.c.l.s4 1934713408
        %v1413 = vunpack.c.0.s8 %v1412
        %v1414 = vlaneseq
        %v1415 = vshrl.u32 %v1414, 7
        %v1416 = vsub.s32 %v1413, %v1415
        %v1417 = vrot.slane %v1403, %v1416
        %v1418 = vcombine.low %v1386, %v1401
        %v1419 = vcombine.high %v1386, %v1401
        %v1421 = vunpack.c.l.s4 1934713408
        %v1422 = vunpack.c.0.s8 %v1421
        %v1423 = vlaneseq
        %v1424 = vshrl.u32 %v1423, 7
        %v1425 = vsub.s32 %v1422, %v1424
        %v1426 = vrot.slane %v1418, %v1425
        %v1428 = vunpack.c.l.s4 1934713408
        %v1429 = vunpack.c.0.s8 %v1428
        %v1430 = vlaneseq
        %v1431 = vshrl.u32 %v1430, 7
        %v1432 = vsub.s32 %v1429, %v1431
        %v1433 = vrot.slane %v1419, %v1432
        %v1434 = vcombine.high %v1410, 0.0
        %v1435 = vcombine.high %v1417, 0.0
        %v1436 = vcombine.high %v1426, 0.0
        %v1437 = vcombine.high %v1433, 0.0
        %v1438 = vcombine.high %v853, 0.0
        %v1440 = vunpack.c.l.s4 1983009808
        %v1441 = vunpack.c.0.s8 %v1440
        %v1442 = vlaneseq
        %v1443 = vshrl.u32 %v1442, 7
        %v1444 = vsub.s32 %v1441, %v1443
        %v1445 = vrot.slane %v853, %v1444
        %v1447 = vunpack.c.l.s4 1983009808
        %v1448 = vunpack.c.0.s8 %v1447
        %v1449 = vlaneseq
        %v1450 = vshrl.u32 %v1449, 7
        %v1451 = vsub.s32 %v1448, %v1450
        %v1452 = vrot.slane %v1438, %v1451
        %v1453 = vcombine.high %v967, 0.0
        %v1455 = vunpack.c.l.s4 1983009808
        %v1456 = vunpack.c.0.s8 %v1455
        %v1457 = vlaneseq
        %v1458 = vshrl.u32 %v1457, 7
        %v1459 = vsub.s32 %v1456, %v1458
        %v1460 = vrot.slane %v967, %v1459
        %v1462 = vunpack.c.l.s4 1983009808
        %v1463 = vunpack.c.0.s8 %v1462
        %v1464 = vlaneseq
        %v1465 = vshrl.u32 %v1464, 7
        %v1466 = vsub.s32 %v1463, %v1465
        %v1467 = vrot.slane %v1453, %v1466
        %v1468 = vcombine.low %v1445, %v1460
        %v1469 = vcombine.high %v1445, %v1460
        %v1471 = vunpack.c.l.s4 1934713408
        %v1472 = vunpack.c.0.s8 %v1471
        %v1473 = vlaneseq
        %v1474 = vshrl.u32 %v1473, 7
        %v1475 = vsub.s32 %v1472, %v1474
        %v1476 = vrot.slane %v1468, %v1475
        %v1478 = vunpack.c.l.s4 1934713408
        %v1479 = vunpack.c.0.s8 %v1478
        %v1480 = vlaneseq
        %v1481 = vshrl.u32 %v1480, 7
        %v1482 = vsub.s32 %v1479, %v1481
        %v1483 = vrot.slane %v1469, %v1482
        %v1484 = vcombine.low %v1452, %v1467
        %v1485 = vcombine.high %v1452, %v1467
        %v1487 = vunpack.c.l.s4 1934713408
        %v1488 = vunpack.c.0.s8 %v1487
        %v1489 = vlaneseq
        %v1490 = vshrl.u32 %v1489, 7
        %v1491 = vsub.s32 %v1488, %v1490
        %v1492 = vrot.slane %v1484, %v1491
        %v1494 = vunpack.c.l.s4 1934713408
        %v1495 = vunpack.c.0.s8 %v1494
        %v1496 = vlaneseq
        %v1497 = vshrl.u32 %v1496, 7
        %v1498 = vsub.s32 %v1495, %v1497
        %v1499 = vrot.slane %v1485, %v1498
        %v1500 = vcombine.high %v1476, 0.0
        %v1501 = vcombine.high %v1483, 0.0
        %v1502 = vcombine.high %v1492, 0.0
        %v1503 = vcombine.high %v1499, 0.0
        %v1504 = vcombine.low %v1014, %v1021
        %v1506 = vunpack.c.l.s4 1983009808
        %v1507 = vunpack.c.0.s8 %v1506
        %v1508 = vlaneseq
        %v1509 = vshrl.u32 %v1508, 7
        %v1510 = vsub.s32 %v1507, %v1509
        %v1511 = vrot.slane %v1504, %v1510
        %v1512 = vcombine.low %v1038, %v1039
        %v1514 = vunpack.c.l.s4 1983009808
        %v1515 = vunpack.c.0.s8 %v1514
        %v1516 = vlaneseq
        %v1517 = vshrl.u32 %v1516, 7
        %v1518 = vsub.s32 %v1515, %v1517
        %v1519 = vrot.slane %v1512, %v1518
        %v1520 = vcombine.low %v1030, %v1037
        %v1522 = vunpack.c.l.s4 1983009808
        %v1523 = vunpack.c.0.s8 %v1522
        %v1524 = vlaneseq
        %v1525 = vshrl.u32 %v1524, 7
        %v1526 = vsub.s32 %v1523, %v1525
        %v1527 = vrot.slane %v1520, %v1526
        %v1528 = vcombine.low %v1040, %v1041
        %v1530 = vunpack.c.l.s4 1983009808
        %v1531 = vunpack.c.0.s8 %v1530
        %v1532 = vlaneseq
        %v1533 = vshrl.u32 %v1532, 7
        %v1534 = vsub.s32 %v1531, %v1533
        %v1535 = vrot.slane %v1528, %v1534
        %v1536 = vcombine.low %v1511, %v1519
        %v1538 = vunpack.c.l.s4 1934713408
        %v1539 = vunpack.c.0.s8 %v1538
        %v1540 = vlaneseq
        %v1541 = vshrl.u32 %v1540, 7
        %v1542 = vsub.s32 %v1539, %v1541
        %v1543 = vrot.slane %v1536, %v1542
        %v1544 = vcombine.low %v1527, %v1535
        %v1546 = vunpack.c.l.s4 1934713408
        %v1547 = vunpack.c.0.s8 %v1546
        %v1548 = vlaneseq
        %v1549 = vshrl.u32 %v1548, 7
        %v1550 = vsub.s32 %v1547, %v1549
        %v1551 = vrot.slane %v1544, %v1550
        %v1552 = vcombine.low %v1543, %v1551
        %v1553 = vcombine.high %v1543, %v1551
        %v1554 = vcombine.low %v1080, %v1087
        %v1556 = vunpack.c.l.s4 1983009808
        %v1557 = vunpack.c.0.s8 %v1556
        %v1558 = vlaneseq
        %v1559 = vshrl.u32 %v1558, 7
        %v1560 = vsub.s32 %v1557, %v1559
        %v1561 = vrot.slane %v1554, %v1560
        %v1562 = vcombine.low %v1104, %v1105
        %v1564 = vunpack.c.l.s4 1983009808
        %v1565 = vunpack.c.0.s8 %v1564
        %v1566 = vlaneseq
        %v1567 = vshrl.u32 %v1566, 7
        %v1568 = vsub.s32 %v1565, %v1567
        %v1569 = vrot.slane %v1562, %v1568
        %v1570 = vcombine.low %v1096, %v1103
        %v1572 = vunpack.c.l.s4 1983009808
        %v1573 = vunpack.c.0.s8 %v1572
        %v1574 = vlaneseq
        %v1575 = vshrl.u32 %v1574, 7
        %v1576 = vsub.s32 %v1573, %v1575
        %v1577 = vrot.slane %v1570, %v1576
        %v1578 = vcombine.low %v1106, %v1107
        %v1580 = vunpack.c.l.s4 1983009808
        %v1581 = vunpack.c.0.s8 %v1580
        %v1582 = vlaneseq
        %v1583 = vshrl.u32 %v1582, 7
        %v1584 = vsub.s32 %v1581, %v1583
        %v1585 = vrot.slane %v1578, %v1584
        %v1586 = vcombine.low %v1561, %v1569
        %v1588 = vunpack.c.l.s4 1934713408
        %v1589 = vunpack.c.0.s8 %v1588
        %v1590 = vlaneseq
        %v1591 = vshrl.u32 %v1590, 7
        %v1592 = vsub.s32 %v1589, %v1591
        %v1593 = vrot.slane %v1586, %v1592
        %v1594 = vcombine.low %v1577, %v1585
        %v1596 = vunpack.c.l.s4 1934713408
        %v1597 = vunpack.c.0.s8 %v1596
        %v1598 = vlaneseq
        %v1599 = vshrl.u32 %v1598, 7
        %v1600 = vsub.s32 %v1597, %v1599
        %v1601 = vrot.slane %v1594, %v1600
        %v1602 = vcombine.low %v1593, %v1601
        %v1603 = vcombine.high %v1593, %v1601
        %v1604 = vcombine.low %v1146, %v1153
        %v1606 = vunpack.c.l.s4 1983009808
        %v1607 = vunpack.c.0.s8 %v1606
        %v1608 = vlaneseq
        %v1609 = vshrl.u32 %v1608, 7
        %v1610 = vsub.s32 %v1607, %v1609
        %v1611 = vrot.slane %v1604, %v1610
        %v1612 = vcombine.low %v1170, %v1171
        %v1614 = vunpack.c.l.s4 1983009808
        %v1615 = vunpack.c.0.s8 %v1614
        %v1616 = vlaneseq
        %v1617 = vshrl.u32 %v1616, 7
        %v1618 = vsub.s32 %v1615, %v1617
        %v1619 = vrot.slane %v1612, %v1618
        %v1620 = vcombine.low %v1162, %v1169
        %v1622 = vunpack.c.l.s4 1983009808
        %v1623 = vunpack.c.0.s8 %v1622
        %v1624 = vlaneseq
        %v1625 = vshrl.u32 %v1624, 7
        %v1626 = vsub.s32 %v1623, %v1625
        %v1627 = vrot.slane %v1620, %v1626
        %v1628 = vcombine.low %v1172, %v1173
        %v1630 = vunpack.c.l.s4 1983009808
        %v1631 = vunpack.c.0.s8 %v1630
        %v1632 = vlaneseq
        %v1633 = vshrl.u32 %v1632, 7
        %v1634 = vsub.s32 %v1631, %v1633
        %v1635 = vrot.slane %v1628, %v1634
        %v1636 = vcombine.low %v1611, %v1619
        %v1638 = vunpack.c.l.s4 1934713408
        %v1639 = vunpack.c.0.s8 %v1638
        %v1640 = vlaneseq
        %v1641 = vshrl.u32 %v1640, 7
        %v1642 = vsub.s32 %v1639, %v1641
        %v1643 = vrot.slane %v1636, %v1642
        %v1644 = vcombine.low %v1627, %v1635
        %v1646 = vunpack.c.l.s4 1934713408
        %v1647 = vunpack.c.0.s8 %v1646
        %v1648 = vlaneseq
        %v1649 = vshrl.u32 %v1648, 7
        %v1650 = vsub.s32 %v1647, %v1649
        %v1651 = vrot.slane %v1644, %v1650
        %v1652 = vcombine.low %v1643, %v1651
        %v1653 = vcombine.high %v1643, %v1651
        %v1654 = vcombine.low %v1212, %v1219
        %v1656 = vunpack.c.l.s4 1983009808
        %v1657 = vunpack.c.0.s8 %v1656
        %v1658 = vlaneseq
        %v1659 = vshrl.u32 %v1658, 7
        %v1660 = vsub.s32 %v1657, %v1659
        %v1661 = vrot.slane %v1654, %v1660
        %v1662 = vcombine.low %v1236, %v1237
        %v1664 = vunpack.c.l.s4 1983009808
        %v1665 = vunpack.c.0.s8 %v1664
        %v1666 = vlaneseq
        %v1667 = vshrl.u32 %v1666, 7
        %v1668 = vsub.s32 %v1665, %v1667
        %v1669 = vrot.slane %v1662, %v1668
        %v1670 = vcombine.low %v1228, %v1235
        %v1672 = vunpack.c.l.s4 1983009808
        %v1673 = vunpack.c.0.s8 %v1672
        %v1674 = vlaneseq
        %v1675 = vshrl.u32 %v1674, 7
        %v1676 = vsub.s32 %v1673, %v1675
        %v1677 = vrot.slane %v1670, %v1676
        %v1678 = vcombine.low %v1238, %v1239
        %v1680 = vunpack.c.l.s4 1983009808
        %v1681 = vunpack.c.0.s8 %v1680
        %v1682 = vlaneseq
        %v1683 = vshrl.u32 %v1682, 7
        %v1684 = vsub.s32 %v1681, %v1683
        %v1685 = vrot.slane %v1678, %v1684
        %v1686 = vcombine.low %v1661, %v1669
        %v1688 = vunpack.c.l.s4 1934713408
        %v1689 = vunpack.c.0.s8 %v1688
        %v1690 = vlaneseq
        %v1691 = vshrl.u32 %v1690, 7
        %v1692 = vsub.s32 %v1689, %v1691
        %v1693 = vrot.slane %v1686, %v1692
        %v1694 = vcombine.low %v1677, %v1685
        %v1696 = vunpack.c.l.s4 1934713408
        %v1697 = vunpack.c.0.s8 %v1696
        %v1698 = vlaneseq
        %v1699 = vshrl.u32 %v1698, 7
        %v1700 = vsub.s32 %v1697, %v1699
        %v1701 = vrot.slane %v1694, %v1700
        %v1702 = vcombine.low %v1693, %v1701
        %v1703 = vcombine.high %v1693, %v1701
        %v1704 = vcombine.low %v1278, %v1285
        %v1706 = vunpack.c.l.s4 1983009808
        %v1707 = vunpack.c.0.s8 %v1706
        %v1708 = vlaneseq
        %v1709 = vshrl.u32 %v1708, 7
        %v1710 = vsub.s32 %v1707, %v1709
        %v1711 = vrot.slane %v1704, %v1710
        %v1712 = vcombine.low %v1302, %v1303
        %v1714 = vunpack.c.l.s4 1983009808
        %v1715 = vunpack.c.0.s8 %v1714
        %v1716 = vlaneseq
        %v1717 = vshrl.u32 %v1716, 7
        %v1718 = vsub.s32 %v1715, %v1717
        %v1719 = vrot.slane %v1712, %v1718
        %v1720 = vcombine.low %v1294, %v1301
        %v1722 = vunpack.c.l.s4 1983009808
        %v1723 = vunpack.c.0.s8 %v1722
        %v1724 = vlaneseq
        %v1725 = vshrl.u32 %v1724, 7
        %v1726 = vsub.s32 %v1723, %v1725
        %v1727 = vrot.slane %v1720, %v1726
        %v1728 = vcombine.low %v1304, %v1305
        %v1730 = vunpack.c.l.s4 1983009808
        %v1731 = vunpack.c.0.s8 %v1730
        %v1732 = vlaneseq
        %v1733 = vshrl.u32 %v1732, 7
        %v1734 = vsub.s32 %v1731, %v1733
        %v1735 = vrot.slane %v1728, %v1734
        %v1736 = vcombine.low %v1711, %v1719
        %v1738 = vunpack.c.l.s4 1934713408
        %v1739 = vunpack.c.0.s8 %v1738
        %v1740 = vlaneseq
        %v1741 = vshrl.u32 %v1740, 7
        %v1742 = vsub.s32 %v1739, %v1741
        %v1743 = vrot.slane %v1736, %v1742
        %v1744 = vcombine.low %v1727, %v1735
        %v1746 = vunpack.c.l.s4 1934713408
        %v1747 = vunpack.c.0.s8 %v1746
        %v1748 = vlaneseq
        %v1749 = vshrl.u32 %v1748, 7
        %v1750 = vsub.s32 %v1747, %v1749
        %v1751 = vrot.slane %v1744, %v1750
        %v1752 = vcombine.low %v1743, %v1751
        %v1753 = vcombine.high %v1743, %v1751
        %v1754 = vcombine.low %v1344, %v1351
        %v1756 = vunpack.c.l.s4 1983009808
        %v1757 = vunpack.c.0.s8 %v1756
        %v1758 = vlaneseq
        %v1759 = vshrl.u32 %v1758, 7
        %v1760 = vsub.s32 %v1757, %v1759
        %v1761 = vrot.slane %v1754, %v1760
        %v1762 = vcombine.low %v1368, %v1369
        %v1764 = vunpack.c.l.s4 1983009808
        %v1765 = vunpack.c.0.s8 %v1764
        %v1766 = vlaneseq
        %v1767 = vshrl.u32 %v1766, 7
        %v1768 = vsub.s32 %v1765, %v1767
        %v1769 = vrot.slane %v1762, %v1768
        %v1770 = vcombine.low %v1360, %v1367
        %v1772 = vunpack.c.l.s4 1983009808
        %v1773 = vunpack.c.0.s8 %v1772
        %v1774 = vlaneseq
        %v1775 = vshrl.u32 %v1774, 7
        %v1776 = vsub.s32 %v1773, %v1775
        %v1777 = vrot.slane %v1770, %v1776
        %v1778 = vcombine.low %v1370, %v1371
        %v1780 = vunpack.c.l.s4 1983009808
        %v1781 = vunpack.c.0.s8 %v1780
        %v1782 = vlaneseq
        %v1783 = vshrl.u32 %v1782, 7
        %v1784 = vsub.s32 %v1781, %v1783
        %v1785 = vrot.slane %v1778, %v1784
        %v1786 = vcombine.low %v1761, %v1769
        %v1788 = vunpack.c.l.s4 1934713408
        %v1789 = vunpack.c.0.s8 %v1788
        %v1790 = vlaneseq
        %v1791 = vshrl.u32 %v1790, 7
        %v1792 = vsub.s32 %v1789, %v1791
        %v1793 = vrot.slane %v1786, %v1792
        %v1794 = vcombine.low %v1777, %v1785
        %v1796 = vunpack.c.l.s4 1934713408
        %v1797 = vunpack.c.0.s8 %v1796
        %v1798 = vlaneseq
        %v1799 = vshrl.u32 %v1798, 7
        %v1800 = vsub.s32 %v1797, %v1799
        %v1801 = vrot.slane %v1794, %v1800
        %v1802 = vcombine.low %v1793, %v1801
        %v1803 = vcombine.high %v1793, %v1801
        %v1804 = vcombine.low %v1410, %v1417
        %v1806 = vunpack.c.l.s4 1983009808
        %v1807 = vunpack.c.0.s8 %v1806
        %v1808 = vlaneseq
        %v1809 = vshrl.u32 %v1808, 7
        %v1810 = vsub.s32 %v1807, %v1809
        %v1811 = vrot.slane %v1804, %v1810
        %v1812 = vcombine.low %v1434, %v1435
        %v1814 = vunpack.c.l.s4 1983009808
        %v1815 = vunpack.c.0.s8 %v1814
        %v1816 = vlaneseq
        %v1817 = vshrl.u32 %v1816, 7
        %v1818 = vsub.s32 %v1815, %v1817
        %v1819 = vrot.slane %v1812, %v1818
        %v1820 = vcombine.low %v1426, %v1433
        %v1822 = vunpack.c.l.s4 1983009808
        %v1823 = vunpack.c.0.s8 %v1822
        %v1824 = vlaneseq
        %v1825 = vshrl.u32 %v1824, 7
        %v1826 = vsub.s32 %v1823, %v1825
        %v1827 = vrot.slane %v1820, %v1826
        %v1828 = vcombine.low %v1436, %v1437
        %v1830 = vunpack.c.l.s4 1983009808
        %v1831 = vunpack.c.0.s8 %v1830
        %v1832 = vlaneseq
        %v1833 = vshrl.u32 %v1832, 7
        %v1834 = vsub.s32 %v1831, %v1833
        %v1835 = vrot.slane %v1828, %v1834
        %v1836 = vcombine.low %v1811, %v1819
        %v1838 = vunpack.c.l.s4 1934713408
        %v1839 = vunpack.c.0.s8 %v1838
        %v1840 = vlaneseq
        %v1841 = vshrl.u32 %v1840, 7
        %v1842 = vsub.s32 %v1839, %v1841
        %v1843 = vrot.slane %v1836, %v1842
        %v1844 = vcombine.low %v1827, %v1835
        %v1846 = vunpack.c.l.s4 1934713408
        %v1847 = vunpack.c.0.s8 %v1846
        %v1848 = vlaneseq
        %v1849 = vshrl.u32 %v1848, 7
        %v1850 = vsub.s32 %v1847, %v1849
        %v1851 = vrot.slane %v1844, %v1850
        %v1852 = vcombine.low %v1843, %v1851
        %v1853 = vcombine.high %v1843, %v1851
        %v1854 = vcombine.low %v1476, %v1483
        %v1856 = vunpack.c.l.s4 1983009808
        %v1857 = vunpack.c.0.s8 %v1856
        %v1858 = vlaneseq
        %v1859 = vshrl.u32 %v1858, 7
        %v1860 = vsub.s32 %v1857, %v1859
        %v1861 = vrot.slane %v1854, %v1860
        %v1862 = vcombine.low %v1500, %v1501
        %v1864 = vunpack.c.l.s4 1983009808
        %v1865 = vunpack.c.0.s8 %v1864
        %v1866 = vlaneseq
        %v1867 = vshrl.u32 %v1866, 7
        %v1868 = vsub.s32 %v1865, %v1867
        %v1869 = vrot.slane %v1862, %v1868
        %v1870 = vcombine.low %v1492, %v1499
        %v1872 = vunpack.c.l.s4 1983009808
        %v1873 = vunpack.c.0.s8 %v1872
        %v1874 = vlaneseq
        %v1875 = vshrl.u32 %v1874, 7
        %v1876 = vsub.s32 %v1873, %v1875
        %v1877 = vrot.slane %v1870, %v1876
        %v1878 = vcombine.low %v1502, %v1503
        %v1880 = vunpack.c.l.s4 1983009808
        %v1881 = vunpack.c.0.s8 %v1880
        %v1882 = vlaneseq
        %v1883 = vshrl.u32 %v1882, 7
        %v1884 = vsub.s32 %v1881, %v1883
        %v1885 = vrot.slane %v1878, %v1884
        %v1886 = vcombine.low %v1861, %v1869
        %v1888 = vunpack.c.l.s4 1934713408
        %v1889 = vunpack.c.0.s8 %v1888
        %v1890 = vlaneseq
        %v1891 = vshrl.u32 %v1890, 7
        %v1892 = vsub.s32 %v1889, %v1891
        %v1893 = vrot.slane %v1886, %v1892
        %v1894 = vcombine.low %v1877, %v1885
        %v1896 = vunpack.c.l.s4 1934713408
        %v1897 = vunpack.c.0.s8 %v1896
        %v1898 = vlaneseq
        %v1899 = vshrl.u32 %v1898, 7
        %v1900 = vsub.s32 %v1897, %v1899
        %v1901 = vrot.slane %v1894, %v1900
        %v1902 = vcombine.low %v1893, %v1901
        %v1903 = vcombine.high %v1893, %v1901
        %v1904 = vpack.c.bf16 %v1602, %v1552
        %v1905 = vpack.c.bf16 %v1702, %v1652
        %v1906 = vpack.c.bf16 %v1802, %v1752
        %v1907 = vpack.c.bf16 %v1902, %v1852
        %v1908 = vpack.c.bf16 %v1603, %v1553
        %v1909 = vpack.c.bf16 %v1703, %v1653
        %v1910 = vpack.c.bf16 %v1803, %v1753
        %v1911 = vpack.c.bf16 %v1903, %v1853
        %vm1912 = vcmask 130048
        %1913 = vst.msk [vmem:[#allocation2] sm:$0xff] %vm1912, %v1904
        %1914 = vst.msk [vmem:[#allocation2 + $0x8] sm:$0xff] %vm1912, %v1905
        %1915 = vst.msk [vmem:[#allocation2 + $0x10] sm:$0xff] %vm1912, %v1906
        %1916 = vst.msk [vmem:[#allocation2 + $0x18] sm:$0xff] %vm1912, %v1907
        %1917 = vst.msk [vmem:[#allocation2 + $0x20] sm:$0xff] %vm1912, %v1908
        %1918 = vst.msk [vmem:[#allocation2 + $0x28] sm:$0xff] %vm1912, %v1909
        %1919 = vst.msk [vmem:[#allocation2 + $0x30] sm:$0xff] %vm1912, %v1910
        %1920 = vst.msk [vmem:[#allocation2 + $0x38] sm:$0xff] %vm1912, %v1911
        %1929 = vrot.lane.b32.xlu0 %v914, 112
        %v1930 = vpop.permute.xlu0 %1929
        %1931 = vrot.lane.b32.xlu0 %v917, 112
        %v1932 = vpop.permute.xlu0 %1931
        %1933 = vrot.lane.b32.xlu0 %v922, 112
        %v1934 = vpop.permute.xlu0 %1933
        %1935 = vrot.lane.b32.xlu0 %v925, 112
        %v1936 = vpop.permute.xlu0 %1935
        %1937 = vrot.lane.b32.xlu0 %v930, 112
        %v1938 = vpop.permute.xlu0 %1937
        %1939 = vrot.lane.b32.xlu0 %v933, 112
        %v1940 = vpop.permute.xlu0 %1939
        %1941 = vrot.lane.b32.xlu0 %v938, 112
        %v1942 = vpop.permute.xlu0 %1941
        %1943 = vrot.lane.b32.xlu0 %v941, 112
        %v1944 = vpop.permute.xlu0 %1943
        %v1953 = vcombine.high %v914, 0.0
        %v1955 = vunpack.c.l.s4 1983009808
        %v1956 = vunpack.c.0.s8 %v1955
        %v1957 = vlaneseq
        %v1958 = vshrl.u32 %v1957, 7
        %v1959 = vsub.s32 %v1956, %v1958
        %v1960 = vrot.slane %v914, %v1959
        %v1962 = vunpack.c.l.s4 1983009808
        %v1963 = vunpack.c.0.s8 %v1962
        %v1964 = vlaneseq
        %v1965 = vshrl.u32 %v1964, 7
        %v1966 = vsub.s32 %v1963, %v1965
        %v1967 = vrot.slane %v1953, %v1966
        %v1968 = vcombine.high %v1930, 0.0
        %v1970 = vunpack.c.l.s4 1983009808
        %v1971 = vunpack.c.0.s8 %v1970
        %v1972 = vlaneseq
        %v1973 = vshrl.u32 %v1972, 7
        %v1974 = vsub.s32 %v1971, %v1973
        %v1975 = vrot.slane %v1930, %v1974
        %v1977 = vunpack.c.l.s4 1983009808
        %v1978 = vunpack.c.0.s8 %v1977
        %v1979 = vlaneseq
        %v1980 = vshrl.u32 %v1979, 7
        %v1981 = vsub.s32 %v1978, %v1980
        %v1982 = vrot.slane %v1968, %v1981
        %v1983 = vcombine.low %v1960, %v1975
        %v1984 = vcombine.high %v1960, %v1975
        %v1986 = vunpack.c.l.s4 1934713408
        %v1987 = vunpack.c.0.s8 %v1986
        %v1988 = vlaneseq
        %v1989 = vshrl.u32 %v1988, 7
        %v1990 = vsub.s32 %v1987, %v1989
        %v1991 = vrot.slane %v1983, %v1990
        %v1993 = vunpack.c.l.s4 1934713408
        %v1994 = vunpack.c.0.s8 %v1993
        %v1995 = vlaneseq
        %v1996 = vshrl.u32 %v1995, 7
        %v1997 = vsub.s32 %v1994, %v1996
        %v1998 = vrot.slane %v1984, %v1997
        %v1999 = vcombine.low %v1967, %v1982
        %v2000 = vcombine.high %v1967, %v1982
        %v2002 = vunpack.c.l.s4 1934713408
        %v2003 = vunpack.c.0.s8 %v2002
        %v2004 = vlaneseq
        %v2005 = vshrl.u32 %v2004, 7
        %v2006 = vsub.s32 %v2003, %v2005
        %v2007 = vrot.slane %v1999, %v2006
        %v2009 = vunpack.c.l.s4 1934713408
        %v2010 = vunpack.c.0.s8 %v2009
        %v2011 = vlaneseq
        %v2012 = vshrl.u32 %v2011, 7
        %v2013 = vsub.s32 %v2010, %v2012
        %v2014 = vrot.slane %v2000, %v2013
        %v2015 = vcombine.high %v1991, 0.0
        %v2016 = vcombine.high %v1998, 0.0
        %v2017 = vcombine.high %v2007, 0.0
        %v2018 = vcombine.high %v2014, 0.0
        %v2019 = vcombine.high %v917, 0.0
        %v2021 = vunpack.c.l.s4 1983009808
        %v2022 = vunpack.c.0.s8 %v2021
        %v2023 = vlaneseq
        %v2024 = vshrl.u32 %v2023, 7
        %v2025 = vsub.s32 %v2022, %v2024
        %v2026 = vrot.slane %v917, %v2025
        %v2028 = vunpack.c.l.s4 1983009808
        %v2029 = vunpack.c.0.s8 %v2028
        %v2030 = vlaneseq
        %v2031 = vshrl.u32 %v2030, 7
        %v2032 = vsub.s32 %v2029, %v2031
        %v2033 = vrot.slane %v2019, %v2032
        %v2034 = vcombine.high %v1932, 0.0
        %v2036 = vunpack.c.l.s4 1983009808
        %v2037 = vunpack.c.0.s8 %v2036
        %v2038 = vlaneseq
        %v2039 = vshrl.u32 %v2038, 7
        %v2040 = vsub.s32 %v2037, %v2039
        %v2041 = vrot.slane %v1932, %v2040
        %v2043 = vunpack.c.l.s4 1983009808
        %v2044 = vunpack.c.0.s8 %v2043
        %v2045 = vlaneseq
        %v2046 = vshrl.u32 %v2045, 7
        %v2047 = vsub.s32 %v2044, %v2046
        %v2048 = vrot.slane %v2034, %v2047
        %v2049 = vcombine.low %v2026, %v2041
        %v2050 = vcombine.high %v2026, %v2041
        %v2052 = vunpack.c.l.s4 1934713408
        %v2053 = vunpack.c.0.s8 %v2052
        %v2054 = vlaneseq
        %v2055 = vshrl.u32 %v2054, 7
        %v2056 = vsub.s32 %v2053, %v2055
        %v2057 = vrot.slane %v2049, %v2056
        %v2059 = vunpack.c.l.s4 1934713408
        %v2060 = vunpack.c.0.s8 %v2059
        %v2061 = vlaneseq
        %v2062 = vshrl.u32 %v2061, 7
        %v2063 = vsub.s32 %v2060, %v2062
        %v2064 = vrot.slane %v2050, %v2063
        %v2065 = vcombine.low %v2033, %v2048
        %v2066 = vcombine.high %v2033, %v2048
        %v2068 = vunpack.c.l.s4 1934713408
        %v2069 = vunpack.c.0.s8 %v2068
        %v2070 = vlaneseq
        %v2071 = vshrl.u32 %v2070, 7
        %v2072 = vsub.s32 %v2069, %v2071
        %v2073 = vrot.slane %v2065, %v2072
        %v2075 = vunpack.c.l.s4 1934713408
        %v2076 = vunpack.c.0.s8 %v2075
        %v2077 = vlaneseq
        %v2078 = vshrl.u32 %v2077, 7
        %v2079 = vsub.s32 %v2076, %v2078
        %v2080 = vrot.slane %v2066, %v2079
        %v2081 = vcombine.high %v2057, 0.0
        %v2082 = vcombine.high %v2064, 0.0
        %v2083 = vcombine.high %v2073, 0.0
        %v2084 = vcombine.high %v2080, 0.0
        %v2085 = vcombine.high %v922, 0.0
        %v2087 = vunpack.c.l.s4 1983009808
        %v2088 = vunpack.c.0.s8 %v2087
        %v2089 = vlaneseq
        %v2090 = vshrl.u32 %v2089, 7
        %v2091 = vsub.s32 %v2088, %v2090
        %v2092 = vrot.slane %v922, %v2091
        %v2094 = vunpack.c.l.s4 1983009808
        %v2095 = vunpack.c.0.s8 %v2094
        %v2096 = vlaneseq
        %v2097 = vshrl.u32 %v2096, 7
        %v2098 = vsub.s32 %v2095, %v2097
        %v2099 = vrot.slane %v2085, %v2098
        %v2100 = vcombine.high %v1934, 0.0
        %v2102 = vunpack.c.l.s4 1983009808
        %v2103 = vunpack.c.0.s8 %v2102
        %v2104 = vlaneseq
        %v2105 = vshrl.u32 %v2104, 7
        %v2106 = vsub.s32 %v2103, %v2105
        %v2107 = vrot.slane %v1934, %v2106
        %v2109 = vunpack.c.l.s4 1983009808
        %v2110 = vunpack.c.0.s8 %v2109
        %v2111 = vlaneseq
        %v2112 = vshrl.u32 %v2111, 7
        %v2113 = vsub.s32 %v2110, %v2112
        %v2114 = vrot.slane %v2100, %v2113
        %v2115 = vcombine.low %v2092, %v2107
        %v2116 = vcombine.high %v2092, %v2107
        %v2118 = vunpack.c.l.s4 1934713408
        %v2119 = vunpack.c.0.s8 %v2118
        %v2120 = vlaneseq
        %v2121 = vshrl.u32 %v2120, 7
        %v2122 = vsub.s32 %v2119, %v2121
        %v2123 = vrot.slane %v2115, %v2122
        %v2125 = vunpack.c.l.s4 1934713408
        %v2126 = vunpack.c.0.s8 %v2125
        %v2127 = vlaneseq
        %v2128 = vshrl.u32 %v2127, 7
        %v2129 = vsub.s32 %v2126, %v2128
        %v2130 = vrot.slane %v2116, %v2129
        %v2131 = vcombine.low %v2099, %v2114
        %v2132 = vcombine.high %v2099, %v2114
        %v2134 = vunpack.c.l.s4 1934713408
        %v2135 = vunpack.c.0.s8 %v2134
        %v2136 = vlaneseq
        %v2137 = vshrl.u32 %v2136, 7
        %v2138 = vsub.s32 %v2135, %v2137
        %v2139 = vrot.slane %v2131, %v2138
        %v2141 = vunpack.c.l.s4 1934713408
        %v2142 = vunpack.c.0.s8 %v2141
        %v2143 = vlaneseq
        %v2144 = vshrl.u32 %v2143, 7
        %v2145 = vsub.s32 %v2142, %v2144
        %v2146 = vrot.slane %v2132, %v2145
        %v2147 = vcombine.high %v2123, 0.0
        %v2148 = vcombine.high %v2130, 0.0
        %v2149 = vcombine.high %v2139, 0.0
        %v2150 = vcombine.high %v2146, 0.0
        %v2151 = vcombine.high %v925, 0.0
        %v2153 = vunpack.c.l.s4 1983009808
        %v2154 = vunpack.c.0.s8 %v2153
        %v2155 = vlaneseq
        %v2156 = vshrl.u32 %v2155, 7
        %v2157 = vsub.s32 %v2154, %v2156
        %v2158 = vrot.slane %v925, %v2157
        %v2160 = vunpack.c.l.s4 1983009808
        %v2161 = vunpack.c.0.s8 %v2160
        %v2162 = vlaneseq
        %v2163 = vshrl.u32 %v2162, 7
        %v2164 = vsub.s32 %v2161, %v2163
        %v2165 = vrot.slane %v2151, %v2164
        %v2166 = vcombine.high %v1936, 0.0
        %v2168 = vunpack.c.l.s4 1983009808
        %v2169 = vunpack.c.0.s8 %v2168
        %v2170 = vlaneseq
        %v2171 = vshrl.u32 %v2170, 7
        %v2172 = vsub.s32 %v2169, %v2171
        %v2173 = vrot.slane %v1936, %v2172
        %v2175 = vunpack.c.l.s4 1983009808
        %v2176 = vunpack.c.0.s8 %v2175
        %v2177 = vlaneseq
        %v2178 = vshrl.u32 %v2177, 7
        %v2179 = vsub.s32 %v2176, %v2178
        %v2180 = vrot.slane %v2166, %v2179
        %v2181 = vcombine.low %v2158, %v2173
        %v2182 = vcombine.high %v2158, %v2173
        %v2184 = vunpack.c.l.s4 1934713408
        %v2185 = vunpack.c.0.s8 %v2184
        %v2186 = vlaneseq
        %v2187 = vshrl.u32 %v2186, 7
        %v2188 = vsub.s32 %v2185, %v2187
        %v2189 = vrot.slane %v2181, %v2188
        %v2191 = vunpack.c.l.s4 1934713408
        %v2192 = vunpack.c.0.s8 %v2191
        %v2193 = vlaneseq
        %v2194 = vshrl.u32 %v2193, 7
        %v2195 = vsub.s32 %v2192, %v2194
        %v2196 = vrot.slane %v2182, %v2195
        %v2197 = vcombine.low %v2165, %v2180
        %v2198 = vcombine.high %v2165, %v2180
        %v2200 = vunpack.c.l.s4 1934713408
        %v2201 = vunpack.c.0.s8 %v2200
        %v2202 = vlaneseq
        %v2203 = vshrl.u32 %v2202, 7
        %v2204 = vsub.s32 %v2201, %v2203
        %v2205 = vrot.slane %v2197, %v2204
        %v2207 = vunpack.c.l.s4 1934713408
        %v2208 = vunpack.c.0.s8 %v2207
        %v2209 = vlaneseq
        %v2210 = vshrl.u32 %v2209, 7
        %v2211 = vsub.s32 %v2208, %v2210
        %v2212 = vrot.slane %v2198, %v2211
        %v2213 = vcombine.high %v2189, 0.0
        %v2214 = vcombine.high %v2196, 0.0
        %v2215 = vcombine.high %v2205, 0.0
        %v2216 = vcombine.high %v2212, 0.0
        %v2217 = vcombine.high %v930, 0.0
        %v2219 = vunpack.c.l.s4 1983009808
        %v2220 = vunpack.c.0.s8 %v2219
        %v2221 = vlaneseq
        %v2222 = vshrl.u32 %v2221, 7
        %v2223 = vsub.s32 %v2220, %v2222
        %v2224 = vrot.slane %v930, %v2223
        %v2226 = vunpack.c.l.s4 1983009808
        %v2227 = vunpack.c.0.s8 %v2226
        %v2228 = vlaneseq
        %v2229 = vshrl.u32 %v2228, 7
        %v2230 = vsub.s32 %v2227, %v2229
        %v2231 = vrot.slane %v2217, %v2230
        %v2232 = vcombine.high %v1938, 0.0
        %v2234 = vunpack.c.l.s4 1983009808
        %v2235 = vunpack.c.0.s8 %v2234
        %v2236 = vlaneseq
        %v2237 = vshrl.u32 %v2236, 7
        %v2238 = vsub.s32 %v2235, %v2237
        %v2239 = vrot.slane %v1938, %v2238
        %v2241 = vunpack.c.l.s4 1983009808
        %v2242 = vunpack.c.0.s8 %v2241
        %v2243 = vlaneseq
        %v2244 = vshrl.u32 %v2243, 7
        %v2245 = vsub.s32 %v2242, %v2244
        %v2246 = vrot.slane %v2232, %v2245
        %v2247 = vcombine.low %v2224, %v2239
        %v2248 = vcombine.high %v2224, %v2239
        %v2250 = vunpack.c.l.s4 1934713408
        %v2251 = vunpack.c.0.s8 %v2250
        %v2252 = vlaneseq
        %v2253 = vshrl.u32 %v2252, 7
        %v2254 = vsub.s32 %v2251, %v2253
        %v2255 = vrot.slane %v2247, %v2254
        %v2257 = vunpack.c.l.s4 1934713408
        %v2258 = vunpack.c.0.s8 %v2257
        %v2259 = vlaneseq
        %v2260 = vshrl.u32 %v2259, 7
        %v2261 = vsub.s32 %v2258, %v2260
        %v2262 = vrot.slane %v2248, %v2261
        %v2263 = vcombine.low %v2231, %v2246
        %v2264 = vcombine.high %v2231, %v2246
        %v2266 = vunpack.c.l.s4 1934713408
        %v2267 = vunpack.c.0.s8 %v2266
        %v2268 = vlaneseq
        %v2269 = vshrl.u32 %v2268, 7
        %v2270 = vsub.s32 %v2267, %v2269
        %v2271 = vrot.slane %v2263, %v2270
        %v2273 = vunpack.c.l.s4 1934713408
        %v2274 = vunpack.c.0.s8 %v2273
        %v2275 = vlaneseq
        %v2276 = vshrl.u32 %v2275, 7
        %v2277 = vsub.s32 %v2274, %v2276
        %v2278 = vrot.slane %v2264, %v2277
        %v2279 = vcombine.high %v2255, 0.0
        %v2280 = vcombine.high %v2262, 0.0
        %v2281 = vcombine.high %v2271, 0.0
        %v2282 = vcombine.high %v2278, 0.0
        %v2283 = vcombine.high %v933, 0.0
        %v2285 = vunpack.c.l.s4 1983009808
        %v2286 = vunpack.c.0.s8 %v2285
        %v2287 = vlaneseq
        %v2288 = vshrl.u32 %v2287, 7
        %v2289 = vsub.s32 %v2286, %v2288
        %v2290 = vrot.slane %v933, %v2289
        %v2292 = vunpack.c.l.s4 1983009808
        %v2293 = vunpack.c.0.s8 %v2292
        %v2294 = vlaneseq
        %v2295 = vshrl.u32 %v2294, 7
        %v2296 = vsub.s32 %v2293, %v2295
        %v2297 = vrot.slane %v2283, %v2296
        %v2298 = vcombine.high %v1940, 0.0
        %v2300 = vunpack.c.l.s4 1983009808
        %v2301 = vunpack.c.0.s8 %v2300
        %v2302 = vlaneseq
        %v2303 = vshrl.u32 %v2302, 7
        %v2304 = vsub.s32 %v2301, %v2303
        %v2305 = vrot.slane %v1940, %v2304
        %v2307 = vunpack.c.l.s4 1983009808
        %v2308 = vunpack.c.0.s8 %v2307
        %v2309 = vlaneseq
        %v2310 = vshrl.u32 %v2309, 7
        %v2311 = vsub.s32 %v2308, %v2310
        %v2312 = vrot.slane %v2298, %v2311
        %v2313 = vcombine.low %v2290, %v2305
        %v2314 = vcombine.high %v2290, %v2305
        %v2316 = vunpack.c.l.s4 1934713408
        %v2317 = vunpack.c.0.s8 %v2316
        %v2318 = vlaneseq
        %v2319 = vshrl.u32 %v2318, 7
        %v2320 = vsub.s32 %v2317, %v2319
        %v2321 = vrot.slane %v2313, %v2320
        %v2323 = vunpack.c.l.s4 1934713408
        %v2324 = vunpack.c.0.s8 %v2323
        %v2325 = vlaneseq
        %v2326 = vshrl.u32 %v2325, 7
        %v2327 = vsub.s32 %v2324, %v2326
        %v2328 = vrot.slane %v2314, %v2327
        %v2329 = vcombine.low %v2297, %v2312
        %v2330 = vcombine.high %v2297, %v2312
        %v2332 = vunpack.c.l.s4 1934713408
        %v2333 = vunpack.c.0.s8 %v2332
        %v2334 = vlaneseq
        %v2335 = vshrl.u32 %v2334, 7
        %v2336 = vsub.s32 %v2333, %v2335
        %v2337 = vrot.slane %v2329, %v2336
        %v2339 = vunpack.c.l.s4 1934713408
        %v2340 = vunpack.c.0.s8 %v2339
        %v2341 = vlaneseq
        %v2342 = vshrl.u32 %v2341, 7
        %v2343 = vsub.s32 %v2340, %v2342
        %v2344 = vrot.slane %v2330, %v2343
        %v2345 = vcombine.high %v2321, 0.0
        %v2346 = vcombine.high %v2328, 0.0
        %v2347 = vcombine.high %v2337, 0.0
        %v2348 = vcombine.high %v2344, 0.0
        %v2349 = vcombine.high %v938, 0.0
        %v2351 = vunpack.c.l.s4 1983009808
        %v2352 = vunpack.c.0.s8 %v2351
        %v2353 = vlaneseq
        %v2354 = vshrl.u32 %v2353, 7
        %v2355 = vsub.s32 %v2352, %v2354
        %v2356 = vrot.slane %v938, %v2355
        %v2358 = vunpack.c.l.s4 1983009808
        %v2359 = vunpack.c.0.s8 %v2358
        %v2360 = vlaneseq
        %v2361 = vshrl.u32 %v2360, 7
        %v2362 = vsub.s32 %v2359, %v2361
        %v2363 = vrot.slane %v2349, %v2362
        %v2364 = vcombine.high %v1942, 0.0
        %v2366 = vunpack.c.l.s4 1983009808
        %v2367 = vunpack.c.0.s8 %v2366
        %v2368 = vlaneseq
        %v2369 = vshrl.u32 %v2368, 7
        %v2370 = vsub.s32 %v2367, %v2369
        %v2371 = vrot.slane %v1942, %v2370
        %v2373 = vunpack.c.l.s4 1983009808
        %v2374 = vunpack.c.0.s8 %v2373
        %v2375 = vlaneseq
        %v2376 = vshrl.u32 %v2375, 7
        %v2377 = vsub.s32 %v2374, %v2376
        %v2378 = vrot.slane %v2364, %v2377
        %v2379 = vcombine.low %v2356, %v2371
        %v2380 = vcombine.high %v2356, %v2371
        %v2382 = vunpack.c.l.s4 1934713408
        %v2383 = vunpack.c.0.s8 %v2382
        %v2384 = vlaneseq
        %v2385 = vshrl.u32 %v2384, 7
        %v2386 = vsub.s32 %v2383, %v2385
        %v2387 = vrot.slane %v2379, %v2386
        %v2389 = vunpack.c.l.s4 1934713408
        %v2390 = vunpack.c.0.s8 %v2389
        %v2391 = vlaneseq
        %v2392 = vshrl.u32 %v2391, 7
        %v2393 = vsub.s32 %v2390, %v2392
        %v2394 = vrot.slane %v2380, %v2393
        %v2395 = vcombine.low %v2363, %v2378
        %v2396 = vcombine.high %v2363, %v2378
        %v2398 = vunpack.c.l.s4 1934713408
        %v2399 = vunpack.c.0.s8 %v2398
        %v2400 = vlaneseq
        %v2401 = vshrl.u32 %v2400, 7
        %v2402 = vsub.s32 %v2399, %v2401
        %v2403 = vrot.slane %v2395, %v2402
        %v2405 = vunpack.c.l.s4 1934713408
        %v2406 = vunpack.c.0.s8 %v2405
        %v2407 = vlaneseq
        %v2408 = vshrl.u32 %v2407, 7
        %v2409 = vsub.s32 %v2406, %v2408
        %v2410 = vrot.slane %v2396, %v2409
        %v2411 = vcombine.high %v2387, 0.0
        %v2412 = vcombine.high %v2394, 0.0
        %v2413 = vcombine.high %v2403, 0.0
        %v2414 = vcombine.high %v2410, 0.0
        %v2415 = vcombine.high %v941, 0.0
        %v2417 = vunpack.c.l.s4 1983009808
        %v2418 = vunpack.c.0.s8 %v2417
        %v2419 = vlaneseq
        %v2420 = vshrl.u32 %v2419, 7
        %v2421 = vsub.s32 %v2418, %v2420
        %v2422 = vrot.slane %v941, %v2421
        %v2424 = vunpack.c.l.s4 1983009808
        %v2425 = vunpack.c.0.s8 %v2424
        %v2426 = vlaneseq
        %v2427 = vshrl.u32 %v2426, 7
        %v2428 = vsub.s32 %v2425, %v2427
        %v2429 = vrot.slane %v2415, %v2428
        %v2430 = vcombine.high %v1944, 0.0
        %v2432 = vunpack.c.l.s4 1983009808
        %v2433 = vunpack.c.0.s8 %v2432
        %v2434 = vlaneseq
        %v2435 = vshrl.u32 %v2434, 7
        %v2436 = vsub.s32 %v2433, %v2435
        %v2437 = vrot.slane %v1944, %v2436
        %v2439 = vunpack.c.l.s4 1983009808
        %v2440 = vunpack.c.0.s8 %v2439
        %v2441 = vlaneseq
        %v2442 = vshrl.u32 %v2441, 7
        %v2443 = vsub.s32 %v2440, %v2442
        %v2444 = vrot.slane %v2430, %v2443
        %v2445 = vcombine.low %v2422, %v2437
        %v2446 = vcombine.high %v2422, %v2437
        %v2448 = vunpack.c.l.s4 1934713408
        %v2449 = vunpack.c.0.s8 %v2448
        %v2450 = vlaneseq
        %v2451 = vshrl.u32 %v2450, 7
        %v2452 = vsub.s32 %v2449, %v2451
        %v2453 = vrot.slane %v2445, %v2452
        %v2455 = vunpack.c.l.s4 1934713408
        %v2456 = vunpack.c.0.s8 %v2455
        %v2457 = vlaneseq
        %v2458 = vshrl.u32 %v2457, 7
        %v2459 = vsub.s32 %v2456, %v2458
        %v2460 = vrot.slane %v2446, %v2459
        %v2461 = vcombine.low %v2429, %v2444
        %v2462 = vcombine.high %v2429, %v2444
        %v2464 = vunpack.c.l.s4 1934713408
        %v2465 = vunpack.c.0.s8 %v2464
        %v2466 = vlaneseq
        %v2467 = vshrl.u32 %v2466, 7
        %v2468 = vsub.s32 %v2465, %v2467
        %v2469 = vrot.slane %v2461, %v2468
        %v2471 = vunpack.c.l.s4 1934713408
        %v2472 = vunpack.c.0.s8 %v2471
        %v2473 = vlaneseq
        %v2474 = vshrl.u32 %v2473, 7
        %v2475 = vsub.s32 %v2472, %v2474
        %v2476 = vrot.slane %v2462, %v2475
        %v2477 = vcombine.high %v2453, 0.0
        %v2478 = vcombine.high %v2460, 0.0
        %v2479 = vcombine.high %v2469, 0.0
        %v2480 = vcombine.high %v2476, 0.0
        %v2481 = vcombine.low %v1991, %v1998
        %v2483 = vunpack.c.l.s4 1983009808
        %v2484 = vunpack.c.0.s8 %v2483
        %v2485 = vlaneseq
        %v2486 = vshrl.u32 %v2485, 7
        %v2487 = vsub.s32 %v2484, %v2486
        %v2488 = vrot.slane %v2481, %v2487
        %v2489 = vcombine.low %v2015, %v2016
        %v2491 = vunpack.c.l.s4 1983009808
        %v2492 = vunpack.c.0.s8 %v2491
        %v2493 = vlaneseq
        %v2494 = vshrl.u32 %v2493, 7
        %v2495 = vsub.s32 %v2492, %v2494
        %v2496 = vrot.slane %v2489, %v2495
        %v2497 = vcombine.low %v2007, %v2014
        %v2499 = vunpack.c.l.s4 1983009808
        %v2500 = vunpack.c.0.s8 %v2499
        %v2501 = vlaneseq
        %v2502 = vshrl.u32 %v2501, 7
        %v2503 = vsub.s32 %v2500, %v2502
        %v2504 = vrot.slane %v2497, %v2503
        %v2505 = vcombine.low %v2017, %v2018
        %v2507 = vunpack.c.l.s4 1983009808
        %v2508 = vunpack.c.0.s8 %v2507
        %v2509 = vlaneseq
        %v2510 = vshrl.u32 %v2509, 7
        %v2511 = vsub.s32 %v2508, %v2510
        %v2512 = vrot.slane %v2505, %v2511
        %v2513 = vcombine.low %v2488, %v2496
        %v2515 = vunpack.c.l.s4 1934713408
        %v2516 = vunpack.c.0.s8 %v2515
        %v2517 = vlaneseq
        %v2518 = vshrl.u32 %v2517, 7
        %v2519 = vsub.s32 %v2516, %v2518
        %v2520 = vrot.slane %v2513, %v2519
        %v2521 = vcombine.low %v2504, %v2512
        %v2523 = vunpack.c.l.s4 1934713408
        %v2524 = vunpack.c.0.s8 %v2523
        %v2525 = vlaneseq
        %v2526 = vshrl.u32 %v2525, 7
        %v2527 = vsub.s32 %v2524, %v2526
        %v2528 = vrot.slane %v2521, %v2527
        %v2529 = vcombine.low %v2520, %v2528
        %v2530 = vcombine.high %v2520, %v2528
        %v2531 = vcombine.low %v2057, %v2064
        %v2533 = vunpack.c.l.s4 1983009808
        %v2534 = vunpack.c.0.s8 %v2533
        %v2535 = vlaneseq
        %v2536 = vshrl.u32 %v2535, 7
        %v2537 = vsub.s32 %v2534, %v2536
        %v2538 = vrot.slane %v2531, %v2537
        %v2539 = vcombine.low %v2081, %v2082
        %v2541 = vunpack.c.l.s4 1983009808
        %v2542 = vunpack.c.0.s8 %v2541
        %v2543 = vlaneseq
        %v2544 = vshrl.u32 %v2543, 7
        %v2545 = vsub.s32 %v2542, %v2544
        %v2546 = vrot.slane %v2539, %v2545
        %v2547 = vcombine.low %v2073, %v2080
        %v2549 = vunpack.c.l.s4 1983009808
        %v2550 = vunpack.c.0.s8 %v2549
        %v2551 = vlaneseq
        %v2552 = vshrl.u32 %v2551, 7
        %v2553 = vsub.s32 %v2550, %v2552
        %v2554 = vrot.slane %v2547, %v2553
        %v2555 = vcombine.low %v2083, %v2084
        %v2557 = vunpack.c.l.s4 1983009808
        %v2558 = vunpack.c.0.s8 %v2557
        %v2559 = vlaneseq
        %v2560 = vshrl.u32 %v2559, 7
        %v2561 = vsub.s32 %v2558, %v2560
        %v2562 = vrot.slane %v2555, %v2561
        %v2563 = vcombine.low %v2538, %v2546
        %v2565 = vunpack.c.l.s4 1934713408
        %v2566 = vunpack.c.0.s8 %v2565
        %v2567 = vlaneseq
        %v2568 = vshrl.u32 %v2567, 7
        %v2569 = vsub.s32 %v2566, %v2568
        %v2570 = vrot.slane %v2563, %v2569
        %v2571 = vcombine.low %v2554, %v2562
        %v2573 = vunpack.c.l.s4 1934713408
        %v2574 = vunpack.c.0.s8 %v2573
        %v2575 = vlaneseq
        %v2576 = vshrl.u32 %v2575, 7
        %v2577 = vsub.s32 %v2574, %v2576
        %v2578 = vrot.slane %v2571, %v2577
        %v2579 = vcombine.low %v2570, %v2578
        %v2580 = vcombine.high %v2570, %v2578
        %v2581 = vcombine.low %v2123, %v2130
        %v2583 = vunpack.c.l.s4 1983009808
        %v2584 = vunpack.c.0.s8 %v2583
        %v2585 = vlaneseq
        %v2586 = vshrl.u32 %v2585, 7
        %v2587 = vsub.s32 %v2584, %v2586
        %v2588 = vrot.slane %v2581, %v2587
        %v2589 = vcombine.low %v2147, %v2148
        %v2591 = vunpack.c.l.s4 1983009808
        %v2592 = vunpack.c.0.s8 %v2591
        %v2593 = vlaneseq
        %v2594 = vshrl.u32 %v2593, 7
        %v2595 = vsub.s32 %v2592, %v2594
        %v2596 = vrot.slane %v2589, %v2595
        %v2597 = vcombine.low %v2139, %v2146
        %v2599 = vunpack.c.l.s4 1983009808
        %v2600 = vunpack.c.0.s8 %v2599
        %v2601 = vlaneseq
        %v2602 = vshrl.u32 %v2601, 7
        %v2603 = vsub.s32 %v2600, %v2602
        %v2604 = vrot.slane %v2597, %v2603
        %v2605 = vcombine.low %v2149, %v2150
        %v2607 = vunpack.c.l.s4 1983009808
        %v2608 = vunpack.c.0.s8 %v2607
        %v2609 = vlaneseq
        %v2610 = vshrl.u32 %v2609, 7
        %v2611 = vsub.s32 %v2608, %v2610
        %v2612 = vrot.slane %v2605, %v2611
        %v2613 = vcombine.low %v2588, %v2596
        %v2615 = vunpack.c.l.s4 1934713408
        %v2616 = vunpack.c.0.s8 %v2615
        %v2617 = vlaneseq
        %v2618 = vshrl.u32 %v2617, 7
        %v2619 = vsub.s32 %v2616, %v2618
        %v2620 = vrot.slane %v2613, %v2619
        %v2621 = vcombine.low %v2604, %v2612
        %v2623 = vunpack.c.l.s4 1934713408
        %v2624 = vunpack.c.0.s8 %v2623
        %v2625 = vlaneseq
        %v2626 = vshrl.u32 %v2625, 7
        %v2627 = vsub.s32 %v2624, %v2626
        %v2628 = vrot.slane %v2621, %v2627
        %v2629 = vcombine.low %v2620, %v2628
        %v2630 = vcombine.high %v2620, %v2628
        %v2631 = vcombine.low %v2189, %v2196
        %v2633 = vunpack.c.l.s4 1983009808
        %v2634 = vunpack.c.0.s8 %v2633
        %v2635 = vlaneseq
        %v2636 = vshrl.u32 %v2635, 7
        %v2637 = vsub.s32 %v2634, %v2636
        %v2638 = vrot.slane %v2631, %v2637
        %v2639 = vcombine.low %v2213, %v2214
        %v2641 = vunpack.c.l.s4 1983009808
        %v2642 = vunpack.c.0.s8 %v2641
        %v2643 = vlaneseq
        %v2644 = vshrl.u32 %v2643, 7
        %v2645 = vsub.s32 %v2642, %v2644
        %v2646 = vrot.slane %v2639, %v2645
        %v2647 = vcombine.low %v2205, %v2212
        %v2649 = vunpack.c.l.s4 1983009808
        %v2650 = vunpack.c.0.s8 %v2649
        %v2651 = vlaneseq
        %v2652 = vshrl.u32 %v2651, 7
        %v2653 = vsub.s32 %v2650, %v2652
        %v2654 = vrot.slane %v2647, %v2653
        %v2655 = vcombine.low %v2215, %v2216
        %v2657 = vunpack.c.l.s4 1983009808
        %v2658 = vunpack.c.0.s8 %v2657
        %v2659 = vlaneseq
        %v2660 = vshrl.u32 %v2659, 7
        %v2661 = vsub.s32 %v2658, %v2660
        %v2662 = vrot.slane %v2655, %v2661
        %v2663 = vcombine.low %v2638, %v2646
        %v2665 = vunpack.c.l.s4 1934713408
        %v2666 = vunpack.c.0.s8 %v2665
        %v2667 = vlaneseq
        %v2668 = vshrl.u32 %v2667, 7
        %v2669 = vsub.s32 %v2666, %v2668
        %v2670 = vrot.slane %v2663, %v2669
        %v2671 = vcombine.low %v2654, %v2662
        %v2673 = vunpack.c.l.s4 1934713408
        %v2674 = vunpack.c.0.s8 %v2673
        %v2675 = vlaneseq
        %v2676 = vshrl.u32 %v2675, 7
        %v2677 = vsub.s32 %v2674, %v2676
        %v2678 = vrot.slane %v2671, %v2677
        %v2679 = vcombine.low %v2670, %v2678
        %v2680 = vcombine.high %v2670, %v2678
        %v2681 = vcombine.low %v2255, %v2262
        %v2683 = vunpack.c.l.s4 1983009808
        %v2684 = vunpack.c.0.s8 %v2683
        %v2685 = vlaneseq
        %v2686 = vshrl.u32 %v2685, 7
        %v2687 = vsub.s32 %v2684, %v2686
        %v2688 = vrot.slane %v2681, %v2687
        %v2689 = vcombine.low %v2279, %v2280
        %v2691 = vunpack.c.l.s4 1983009808
        %v2692 = vunpack.c.0.s8 %v2691
        %v2693 = vlaneseq
        %v2694 = vshrl.u32 %v2693, 7
        %v2695 = vsub.s32 %v2692, %v2694
        %v2696 = vrot.slane %v2689, %v2695
        %v2697 = vcombine.low %v2271, %v2278
        %v2699 = vunpack.c.l.s4 1983009808
        %v2700 = vunpack.c.0.s8 %v2699
        %v2701 = vlaneseq
        %v2702 = vshrl.u32 %v2701, 7
        %v2703 = vsub.s32 %v2700, %v2702
        %v2704 = vrot.slane %v2697, %v2703
        %v2705 = vcombine.low %v2281, %v2282
        %v2707 = vunpack.c.l.s4 1983009808
        %v2708 = vunpack.c.0.s8 %v2707
        %v2709 = vlaneseq
        %v2710 = vshrl.u32 %v2709, 7
        %v2711 = vsub.s32 %v2708, %v2710
        %v2712 = vrot.slane %v2705, %v2711
        %v2713 = vcombine.low %v2688, %v2696
        %v2715 = vunpack.c.l.s4 1934713408
        %v2716 = vunpack.c.0.s8 %v2715
        %v2717 = vlaneseq
        %v2718 = vshrl.u32 %v2717, 7
        %v2719 = vsub.s32 %v2716, %v2718
        %v2720 = vrot.slane %v2713, %v2719
        %v2721 = vcombine.low %v2704, %v2712
        %v2723 = vunpack.c.l.s4 1934713408
        %v2724 = vunpack.c.0.s8 %v2723
        %v2725 = vlaneseq
        %v2726 = vshrl.u32 %v2725, 7
        %v2727 = vsub.s32 %v2724, %v2726
        %v2728 = vrot.slane %v2721, %v2727
        %v2729 = vcombine.low %v2720, %v2728
        %v2730 = vcombine.high %v2720, %v2728
        %v2731 = vcombine.low %v2321, %v2328
        %v2733 = vunpack.c.l.s4 1983009808
        %v2734 = vunpack.c.0.s8 %v2733
        %v2735 = vlaneseq
        %v2736 = vshrl.u32 %v2735, 7
        %v2737 = vsub.s32 %v2734, %v2736
        %v2738 = vrot.slane %v2731, %v2737
        %v2739 = vcombine.low %v2345, %v2346
        %v2741 = vunpack.c.l.s4 1983009808
        %v2742 = vunpack.c.0.s8 %v2741
        %v2743 = vlaneseq
        %v2744 = vshrl.u32 %v2743, 7
        %v2745 = vsub.s32 %v2742, %v2744
        %v2746 = vrot.slane %v2739, %v2745
        %v2747 = vcombine.low %v2337, %v2344
        %v2749 = vunpack.c.l.s4 1983009808
        %v2750 = vunpack.c.0.s8 %v2749
        %v2751 = vlaneseq
        %v2752 = vshrl.u32 %v2751, 7
        %v2753 = vsub.s32 %v2750, %v2752
        %v2754 = vrot.slane %v2747, %v2753
        %v2755 = vcombine.low %v2347, %v2348
        %v2757 = vunpack.c.l.s4 1983009808
        %v2758 = vunpack.c.0.s8 %v2757
        %v2759 = vlaneseq
        %v2760 = vshrl.u32 %v2759, 7
        %v2761 = vsub.s32 %v2758, %v2760
        %v2762 = vrot.slane %v2755, %v2761
        %v2763 = vcombine.low %v2738, %v2746
        %v2765 = vunpack.c.l.s4 1934713408
        %v2766 = vunpack.c.0.s8 %v2765
        %v2767 = vlaneseq
        %v2768 = vshrl.u32 %v2767, 7
        %v2769 = vsub.s32 %v2766, %v2768
        %v2770 = vrot.slane %v2763, %v2769
        %v2771 = vcombine.low %v2754, %v2762
        %v2773 = vunpack.c.l.s4 1934713408
        %v2774 = vunpack.c.0.s8 %v2773
        %v2775 = vlaneseq
        %v2776 = vshrl.u32 %v2775, 7
        %v2777 = vsub.s32 %v2774, %v2776
        %v2778 = vrot.slane %v2771, %v2777
        %v2779 = vcombine.low %v2770, %v2778
        %v2780 = vcombine.high %v2770, %v2778
        %v2781 = vcombine.low %v2387, %v2394
        %v2783 = vunpack.c.l.s4 1983009808
        %v2784 = vunpack.c.0.s8 %v2783
        %v2785 = vlaneseq
        %v2786 = vshrl.u32 %v2785, 7
        %v2787 = vsub.s32 %v2784, %v2786
        %v2788 = vrot.slane %v2781, %v2787
        %v2789 = vcombine.low %v2411, %v2412
        %v2791 = vunpack.c.l.s4 1983009808
        %v2792 = vunpack.c.0.s8 %v2791
        %v2793 = vlaneseq
        %v2794 = vshrl.u32 %v2793, 7
        %v2795 = vsub.s32 %v2792, %v2794
        %v2796 = vrot.slane %v2789, %v2795
        %v2797 = vcombine.low %v2403, %v2410
        %v2799 = vunpack.c.l.s4 1983009808
        %v2800 = vunpack.c.0.s8 %v2799
        %v2801 = vlaneseq
        %v2802 = vshrl.u32 %v2801, 7
        %v2803 = vsub.s32 %v2800, %v2802
        %v2804 = vrot.slane %v2797, %v2803
        %v2805 = vcombine.low %v2413, %v2414
        %v2807 = vunpack.c.l.s4 1983009808
        %v2808 = vunpack.c.0.s8 %v2807
        %v2809 = vlaneseq
        %v2810 = vshrl.u32 %v2809, 7
        %v2811 = vsub.s32 %v2808, %v2810
        %v2812 = vrot.slane %v2805, %v2811
        %v2813 = vcombine.low %v2788, %v2796
        %v2815 = vunpack.c.l.s4 1934713408
        %v2816 = vunpack.c.0.s8 %v2815
        %v2817 = vlaneseq
        %v2818 = vshrl.u32 %v2817, 7
        %v2819 = vsub.s32 %v2816, %v2818
        %v2820 = vrot.slane %v2813, %v2819
        %v2821 = vcombine.low %v2804, %v2812
        %v2823 = vunpack.c.l.s4 1934713408
        %v2824 = vunpack.c.0.s8 %v2823
        %v2825 = vlaneseq
        %v2826 = vshrl.u32 %v2825, 7
        %v2827 = vsub.s32 %v2824, %v2826
        %v2828 = vrot.slane %v2821, %v2827
        %v2829 = vcombine.low %v2820, %v2828
        %v2830 = vcombine.high %v2820, %v2828
        %v2831 = vcombine.low %v2453, %v2460
        %v2833 = vunpack.c.l.s4 1983009808
        %v2834 = vunpack.c.0.s8 %v2833
        %v2835 = vlaneseq
        %v2836 = vshrl.u32 %v2835, 7
        %v2837 = vsub.s32 %v2834, %v2836
        %v2838 = vrot.slane %v2831, %v2837
        %v2839 = vcombine.low %v2477, %v2478
        %v2841 = vunpack.c.l.s4 1983009808
        %v2842 = vunpack.c.0.s8 %v2841
        %v2843 = vlaneseq
        %v2844 = vshrl.u32 %v2843, 7
        %v2845 = vsub.s32 %v2842, %v2844
        %v2846 = vrot.slane %v2839, %v2845
        %v2847 = vcombine.low %v2469, %v2476
        %v2849 = vunpack.c.l.s4 1983009808
        %v2850 = vunpack.c.0.s8 %v2849
        %v2851 = vlaneseq
        %v2852 = vshrl.u32 %v2851, 7
        %v2853 = vsub.s32 %v2850, %v2852
        %v2854 = vrot.slane %v2847, %v2853
        %v2855 = vcombine.low %v2479, %v2480
        %v2857 = vunpack.c.l.s4 1983009808
        %v2858 = vunpack.c.0.s8 %v2857
        %v2859 = vlaneseq
        %v2860 = vshrl.u32 %v2859, 7
        %v2861 = vsub.s32 %v2858, %v2860
        %v2862 = vrot.slane %v2855, %v2861
        %v2863 = vcombine.low %v2838, %v2846
        %v2865 = vunpack.c.l.s4 1934713408
        %v2866 = vunpack.c.0.s8 %v2865
        %v2867 = vlaneseq
        %v2868 = vshrl.u32 %v2867, 7
        %v2869 = vsub.s32 %v2866, %v2868
        %v2870 = vrot.slane %v2863, %v2869
        %v2871 = vcombine.low %v2854, %v2862
        %v2873 = vunpack.c.l.s4 1934713408
        %v2874 = vunpack.c.0.s8 %v2873
        %v2875 = vlaneseq
        %v2876 = vshrl.u32 %v2875, 7
        %v2877 = vsub.s32 %v2874, %v2876
        %v2878 = vrot.slane %v2871, %v2877
        %v2879 = vcombine.low %v2870, %v2878
        %v2880 = vcombine.high %v2870, %v2878
        %v2881 = vpack.c.bf16 %v2579, %v2529
        %v2882 = vpack.c.bf16 %v2679, %v2629
        %v2883 = vpack.c.bf16 %v2779, %v2729
        %v2884 = vpack.c.bf16 %v2879, %v2829
        %v2885 = vpack.c.bf16 %v2580, %v2530
        %v2886 = vpack.c.bf16 %v2680, %v2630
        %v2887 = vpack.c.bf16 %v2780, %v2730
        %v2888 = vpack.c.bf16 %v2880, %v2830
        %2889 = vst.msk [vmem:[#allocation3] sm:$0xff] %vm1912, %v2881
        %2890 = vst.msk [vmem:[#allocation3 + $0x8] sm:$0xff] %vm1912, %v2882
        %2891 = vst.msk [vmem:[#allocation3 + $0x10] sm:$0xff] %vm1912, %v2883
        %2892 = vst.msk [vmem:[#allocation3 + $0x18] sm:$0xff] %vm1912, %v2884
        %2893 = vst.msk [vmem:[#allocation3 + $0x20] sm:$0xff] %vm1912, %v2885
        %2894 = vst.msk [vmem:[#allocation3 + $0x28] sm:$0xff] %vm1912, %v2886
        %2895 = vst.msk [vmem:[#allocation3 + $0x30] sm:$0xff] %vm1912, %v2887
        %2896 = vst.msk [vmem:[#allocation3 + $0x38] sm:$0xff] %vm1912, %v2888
      $region72: #{tpu_custom_call.1} parent=67 // pred_fallthru
        _
      %v2897 = vld [vmem:[%s456] sm:$0xff]
      %v2898 = vld [vmem:[%s456 + $0x8] sm:$0xff]
      %v2899 = vld [vmem:[%s456 + $0x10] sm:$0xff]
      %v2900 = vld [vmem:[%s456 + $0x18] sm:$0xff]
      %v2901 = vld [vmem:[%s456 + $0x20] sm:$0xff]
      %v2902 = vld [vmem:[%s456 + $0x28] sm:$0xff]
      %v2903 = vld [vmem:[%s456 + $0x30] sm:$0xff]
      %v2904 = vld [vmem:[%s456 + $0x38] sm:$0xff]
      %v2905 = vpack.c.bf16 %v2898, %v2897
      %v2906 = vpack.c.bf16 %v2900, %v2899
      %v2907 = vpack.c.bf16 %v2902, %v2901
      %v2908 = vpack.c.bf16 %v2904, %v2903
      %v2909 = vld [vmem:[%s4] sm:$0xf]
      %v2910 = vld [vmem:[%s4 + $0x4] sm:$0xf]
      %v2911 = vld [vmem:[%s4 + $0x8] sm:$0xf]
      %v2912 = vld [vmem:[%s4 + $0xc] sm:$0xf]
      %v2913 = vld [vmem:[%s5] sm:$0x1]
      %v2915 = vlaneseq
      %v2916 = vshrl.u32 %v2915, 7
      %v2917 = vsub.s32 0, %v2916
      %v2918 = vrot.slane %v2913, %v2917
      %v2924 = vunpack.c.l.b16 %v2909
      %v2925 = vunpack.c.l.b16 %v2910
      %v2926 = vunpack.c.l.b16 %v2911
      %v2927 = vunpack.c.l.b16 %v2912
      %v2928 = vpack.c.b16 %v2925, %v2924
      %v2929 = vpack.c.b16 %v2927, %v2926
      %vm2932 = vcmask 261120
      %v2934 = vsel %vm2932, %v2905, 0
      %v2937 = vsel %vm2932, %v2906, 0
      %v2940 = vsel %vm2932, %v2907, 0
      %v2943 = vsel %vm2932, %v2908, 0
      %2945 = vmatprep.subr.bf16.mxu0 0
      %2946 = vmatpush1.bf16.msra.mxu0 %v2928
      %2947 = vmatprep.subr.bf16.mxu0 0
      %2948 = vmatpush1.bf16.msra.mxu0 %v2929
      %2949 = vmatprep.subr.bf16.mxu0 0
      %2950 = vmatpush1.bf16.msra.mxu0 0
      %2951 = vmatprep.subr.bf16.mxu0 0
      %2952 = vmatpush1.bf16.msra.mxu0 0
      %2953 = vmatprep.subr.bf16.mxu0 0
      %2954 = vmatpush1.bf16.msra.mxu0 0
      %2955 = vmatprep.subr.bf16.mxu0 0
      %2956 = vmatpush1.bf16.msra.mxu0 0
      %2957 = vmatprep.subr.bf16.mxu0 0
      %2958 = vmatpush1.bf16.msra.mxu0 0
      %2959 = vmatprep.subr.bf16.mxu0 0
      %2960 = vmatpush1.bf16.msra.mxu0 0
      %2961 = vmatprep.subr.bf16.mxu0 0
      %2962 = vmatpush1.bf16.msra.mxu0 0
      %2963 = vmatprep.subr.bf16.mxu0 0
      %2964 = vmatpush1.bf16.msra.mxu0 0
      %2965 = vmatprep.subr.bf16.mxu0 0
      %2966 = vmatpush1.bf16.msra.mxu0 0
      %2967 = vmatprep.subr.bf16.mxu0 0
      %2968 = vmatpush1.bf16.msra.mxu0 0
      %2969 = vmatprep.subr.bf16.mxu0 0
      %2970 = vmatpush1.bf16.msra.mxu0 0
      %2971 = vmatprep.subr.bf16.mxu0 0
      %2972 = vmatpush1.bf16.msra.mxu0 0
      %2973 = vmatprep.subr.bf16.mxu0 0
      %2974 = vmatpush1.bf16.msra.mxu0 0
      %2975 = vmatprep.subr.bf16.mxu0 0
      %2976 = vmatpush1.bf16.msra.mxu0 0
      %2977 = vmatprep.mubr.bf16.mxu0 0
      %2978 = vmatmul.mubr.bf16.gmra.mrb[0].mxu0 %v2934
      %v2979 = vpop.f32.mrb[0].mxu0
      %v2980 = vadd.f32 %v2918, %v2979
      %v2981 = vpop.f32.mrb[0].mxu0
      %v2982 = vpop.f32.mrb[0].mxu0
      %v2983 = vadd.f32 %v2918, %v2982
      %v2984 = vpop.f32.mrb[0].mxu0
      %2985 = vmatprep.mubr.bf16.mxu0 0
      %2986 = vmatmul.mubr.bf16.gmra.mrb[0].mxu0 %v2937
      %v2987 = vpop.f32.mrb[0].mxu0
      %v2988 = vadd.f32 %v2918, %v2987
      %v2989 = vpop.f32.mrb[0].mxu0
      %v2990 = vpop.f32.mrb[0].mxu0
      %v2991 = vadd.f32 %v2918, %v2990
      %v2992 = vpop.f32.mrb[0].mxu0
      %2993 = vmatprep.mubr.bf16.mxu0 0
      %2994 = vmatmul.mubr.bf16.gmra.mrb[0].mxu0 %v2940
      %v2995 = vpop.f32.mrb[0].mxu0
      %v2996 = vadd.f32 %v2918, %v2995
      %v2997 = vpop.f32.mrb[0].mxu0
      %v2998 = vpop.f32.mrb[0].mxu0
      %v2999 = vadd.f32 %v2918, %v2998
      %v3000 = vpop.f32.mrb[0].mxu0
      %3001 = vmatprep.mubr.bf16.mxu0 0
      %3002 = vmatmul.mubr.bf16.gmra.mrb[0].mxu0 %v2943
      %v3003 = vpop.f32.mrb[0].mxu0
      %v3004 = vadd.f32 %v2918, %v3003
      %v3005 = vpop.f32.mrb[0].mxu0
      %v3006 = vpop.f32.mrb[0].mxu0
      %v3007 = vadd.f32 %v2918, %v3006
      %v3008 = vpop.f32.mrb[0].mxu0
      %3009 = vdwg.mxu0
      %3018 = vrot.lane.b32.xlu0 %v2980, 112
      %v3019 = vpop.permute.xlu0 %3018
      %3020 = vrot.lane.b32.xlu0 %v2983, 112
      %v3021 = vpop.permute.xlu0 %3020
      %3022 = vrot.lane.b32.xlu0 %v2988, 112
      %v3023 = vpop.permute.xlu0 %3022
      %3024 = vrot.lane.b32.xlu0 %v2991, 112
      %v3025 = vpop.permute.xlu0 %3024
      %3026 = vrot.lane.b32.xlu0 %v2996, 112
      %v3027 = vpop.permute.xlu0 %3026
      %3028 = vrot.lane.b32.xlu0 %v2999, 112
      %v3029 = vpop.permute.xlu0 %3028
      %3030 = vrot.lane.b32.xlu0 %v3004, 112
      %v3031 = vpop.permute.xlu0 %3030
      %3032 = vrot.lane.b32.xlu0 %v3007, 112
      %v3033 = vpop.permute.xlu0 %3032
      %v3042 = vcombine.high %v2980, 0.0
      %v3044 = vunpack.c.l.s4 1983009808
      %v3045 = vunpack.c.0.s8 %v3044
      %v3046 = vlaneseq
      %v3047 = vshrl.u32 %v3046, 7
      %v3048 = vsub.s32 %v3045, %v3047
      %v3049 = vrot.slane %v2980, %v3048
      %v3051 = vunpack.c.l.s4 1983009808
      %v3052 = vunpack.c.0.s8 %v3051
      %v3053 = vlaneseq
      %v3054 = vshrl.u32 %v3053, 7
      %v3055 = vsub.s32 %v3052, %v3054
      %v3056 = vrot.slane %v3042, %v3055
      %v3057 = vcombine.high %v3019, 0.0
      %v3059 = vunpack.c.l.s4 1983009808
      %v3060 = vunpack.c.0.s8 %v3059
      %v3061 = vlaneseq
      %v3062 = vshrl.u32 %v3061, 7
      %v3063 = vsub.s32 %v3060, %v3062
      %v3064 = vrot.slane %v3019, %v3063
      %v3066 = vunpack.c.l.s4 1983009808
      %v3067 = vunpack.c.0.s8 %v3066
      %v3068 = vlaneseq
      %v3069 = vshrl.u32 %v3068, 7
      %v3070 = vsub.s32 %v3067, %v3069
      %v3071 = vrot.slane %v3057, %v3070
      %v3072 = vcombine.low %v3049, %v3064
      %v3073 = vcombine.high %v3049, %v3064
      %v3075 = vunpack.c.l.s4 1934713408
      %v3076 = vunpack.c.0.s8 %v3075
      %v3077 = vlaneseq
      %v3078 = vshrl.u32 %v3077, 7
      %v3079 = vsub.s32 %v3076, %v3078
      %v3080 = vrot.slane %v3072, %v3079
      %v3082 = vunpack.c.l.s4 1934713408
      %v3083 = vunpack.c.0.s8 %v3082
      %v3084 = vlaneseq
      %v3085 = vshrl.u32 %v3084, 7
      %v3086 = vsub.s32 %v3083, %v3085
      %v3087 = vrot.slane %v3073, %v3086
      %v3088 = vcombine.low %v3056, %v3071
      %v3089 = vcombine.high %v3056, %v3071
      %v3091 = vunpack.c.l.s4 1934713408
      %v3092 = vunpack.c.0.s8 %v3091
      %v3093 = vlaneseq
      %v3094 = vshrl.u32 %v3093, 7
      %v3095 = vsub.s32 %v3092, %v3094
      %v3096 = vrot.slane %v3088, %v3095
      %v3098 = vunpack.c.l.s4 1934713408
      %v3099 = vunpack.c.0.s8 %v3098
      %v3100 = vlaneseq
      %v3101 = vshrl.u32 %v3100, 7
      %v3102 = vsub.s32 %v3099, %v3101
      %v3103 = vrot.slane %v3089, %v3102
      %v3104 = vcombine.high %v3080, 0.0
      %v3105 = vcombine.high %v3087, 0.0
      %v3106 = vcombine.high %v3096, 0.0
      %v3107 = vcombine.high %v3103, 0.0
      %v3108 = vcombine.high %v2983, 0.0
      %v3110 = vunpack.c.l.s4 1983009808
      %v3111 = vunpack.c.0.s8 %v3110
      %v3112 = vlaneseq
      %v3113 = vshrl.u32 %v3112, 7
      %v3114 = vsub.s32 %v3111, %v3113
      %v3115 = vrot.slane %v2983, %v3114
      %v3117 = vunpack.c.l.s4 1983009808
      %v3118 = vunpack.c.0.s8 %v3117
      %v3119 = vlaneseq
      %v3120 = vshrl.u32 %v3119, 7
      %v3121 = vsub.s32 %v3118, %v3120
      %v3122 = vrot.slane %v3108, %v3121
      %v3123 = vcombine.high %v3021, 0.0
      %v3125 = vunpack.c.l.s4 1983009808
      %v3126 = vunpack.c.0.s8 %v3125
      %v3127 = vlaneseq
      %v3128 = vshrl.u32 %v3127, 7
      %v3129 = vsub.s32 %v3126, %v3128
      %v3130 = vrot.slane %v3021, %v3129
      %v3132 = vunpack.c.l.s4 1983009808
      %v3133 = vunpack.c.0.s8 %v3132
      %v3134 = vlaneseq
      %v3135 = vshrl.u32 %v3134, 7
      %v3136 = vsub.s32 %v3133, %v3135
      %v3137 = vrot.slane %v3123, %v3136
      %v3138 = vcombine.low %v3115, %v3130
      %v3139 = vcombine.high %v3115, %v3130
      %v3141 = vunpack.c.l.s4 1934713408
      %v3142 = vunpack.c.0.s8 %v3141
      %v3143 = vlaneseq
      %v3144 = vshrl.u32 %v3143, 7
      %v3145 = vsub.s32 %v3142, %v3144
      %v3146 = vrot.slane %v3138, %v3145
      %v3148 = vunpack.c.l.s4 1934713408
      %v3149 = vunpack.c.0.s8 %v3148
      %v3150 = vlaneseq
      %v3151 = vshrl.u32 %v3150, 7
      %v3152 = vsub.s32 %v3149, %v3151
      %v3153 = vrot.slane %v3139, %v3152
      %v3154 = vcombine.low %v3122, %v3137
      %v3155 = vcombine.high %v3122, %v3137
      %v3157 = vunpack.c.l.s4 1934713408
      %v3158 = vunpack.c.0.s8 %v3157
      %v3159 = vlaneseq
      %v3160 = vshrl.u32 %v3159, 7
      %v3161 = vsub.s32 %v3158, %v3160
      %v3162 = vrot.slane %v3154, %v3161
      %v3164 = vunpack.c.l.s4 1934713408
      %v3165 = vunpack.c.0.s8 %v3164
      %v3166 = vlaneseq
      %v3167 = vshrl.u32 %v3166, 7
      %v3168 = vsub.s32 %v3165, %v3167
      %v3169 = vrot.slane %v3155, %v3168
      %v3170 = vcombine.high %v3146, 0.0
      %v3171 = vcombine.high %v3153, 0.0
      %v3172 = vcombine.high %v3162, 0.0
      %v3173 = vcombine.high %v3169, 0.0
      %v3174 = vcombine.high %v2988, 0.0
      %v3176 = vunpack.c.l.s4 1983009808
      %v3177 = vunpack.c.0.s8 %v3176
      %v3178 = vlaneseq
      %v3179 = vshrl.u32 %v3178, 7
      %v3180 = vsub.s32 %v3177, %v3179
      %v3181 = vrot.slane %v2988, %v3180
      %v3183 = vunpack.c.l.s4 1983009808
      %v3184 = vunpack.c.0.s8 %v3183
      %v3185 = vlaneseq
      %v3186 = vshrl.u32 %v3185, 7
      %v3187 = vsub.s32 %v3184, %v3186
      %v3188 = vrot.slane %v3174, %v3187
      %v3189 = vcombine.high %v3023, 0.0
      %v3191 = vunpack.c.l.s4 1983009808
      %v3192 = vunpack.c.0.s8 %v3191
      %v3193 = vlaneseq
      %v3194 = vshrl.u32 %v3193, 7
      %v3195 = vsub.s32 %v3192, %v3194
      %v3196 = vrot.slane %v3023, %v3195
      %v3198 = vunpack.c.l.s4 1983009808
      %v3199 = vunpack.c.0.s8 %v3198
      %v3200 = vlaneseq
      %v3201 = vshrl.u32 %v3200, 7
      %v3202 = vsub.s32 %v3199, %v3201
      %v3203 = vrot.slane %v3189, %v3202
      %v3204 = vcombine.low %v3181, %v3196
      %v3205 = vcombine.high %v3181, %v3196
      %v3207 = vunpack.c.l.s4 1934713408
      %v3208 = vunpack.c.0.s8 %v3207
      %v3209 = vlaneseq
      %v3210 = vshrl.u32 %v3209, 7
      %v3211 = vsub.s32 %v3208, %v3210
      %v3212 = vrot.slane %v3204, %v3211
      %v3214 = vunpack.c.l.s4 1934713408
      %v3215 = vunpack.c.0.s8 %v3214
      %v3216 = vlaneseq
      %v3217 = vshrl.u32 %v3216, 7
      %v3218 = vsub.s32 %v3215, %v3217
      %v3219 = vrot.slane %v3205, %v3218
      %v3220 = vcombine.low %v3188, %v3203
      %v3221 = vcombine.high %v3188, %v3203
      %v3223 = vunpack.c.l.s4 1934713408
      %v3224 = vunpack.c.0.s8 %v3223
      %v3225 = vlaneseq
      %v3226 = vshrl.u32 %v3225, 7
      %v3227 = vsub.s32 %v3224, %v3226
      %v3228 = vrot.slane %v3220, %v3227
      %v3230 = vunpack.c.l.s4 1934713408
      %v3231 = vunpack.c.0.s8 %v3230
      %v3232 = vlaneseq
      %v3233 = vshrl.u32 %v3232, 7
      %v3234 = vsub.s32 %v3231, %v3233
      %v3235 = vrot.slane %v3221, %v3234
      %v3236 = vcombine.high %v3212, 0.0
      %v3237 = vcombine.high %v3219, 0.0
      %v3238 = vcombine.high %v3228, 0.0
      %v3239 = vcombine.high %v3235, 0.0
      %v3240 = vcombine.high %v2991, 0.0
      %v3242 = vunpack.c.l.s4 1983009808
      %v3243 = vunpack.c.0.s8 %v3242
      %v3244 = vlaneseq
      %v3245 = vshrl.u32 %v3244, 7
      %v3246 = vsub.s32 %v3243, %v3245
      %v3247 = vrot.slane %v2991, %v3246
      %v3249 = vunpack.c.l.s4 1983009808
      %v3250 = vunpack.c.0.s8 %v3249
      %v3251 = vlaneseq
      %v3252 = vshrl.u32 %v3251, 7
      %v3253 = vsub.s32 %v3250, %v3252
      %v3254 = vrot.slane %v3240, %v3253
      %v3255 = vcombine.high %v3025, 0.0
      %v3257 = vunpack.c.l.s4 1983009808
      %v3258 = vunpack.c.0.s8 %v3257
      %v3259 = vlaneseq
      %v3260 = vshrl.u32 %v3259, 7
      %v3261 = vsub.s32 %v3258, %v3260
      %v3262 = vrot.slane %v3025, %v3261
      %v3264 = vunpack.c.l.s4 1983009808
      %v3265 = vunpack.c.0.s8 %v3264
      %v3266 = vlaneseq
      %v3267 = vshrl.u32 %v3266, 7
      %v3268 = vsub.s32 %v3265, %v3267
      %v3269 = vrot.slane %v3255, %v3268
      %v3270 = vcombine.low %v3247, %v3262
      %v3271 = vcombine.high %v3247, %v3262
      %v3273 = vunpack.c.l.s4 1934713408
      %v3274 = vunpack.c.0.s8 %v3273
      %v3275 = vlaneseq
      %v3276 = vshrl.u32 %v3275, 7
      %v3277 = vsub.s32 %v3274, %v3276
      %v3278 = vrot.slane %v3270, %v3277
      %v3280 = vunpack.c.l.s4 1934713408
      %v3281 = vunpack.c.0.s8 %v3280
      %v3282 = vlaneseq
      %v3283 = vshrl.u32 %v3282, 7
      %v3284 = vsub.s32 %v3281, %v3283
      %v3285 = vrot.slane %v3271, %v3284
      %v3286 = vcombine.low %v3254, %v3269
      %v3287 = vcombine.high %v3254, %v3269
      %v3289 = vunpack.c.l.s4 1934713408
      %v3290 = vunpack.c.0.s8 %v3289
      %v3291 = vlaneseq
      %v3292 = vshrl.u32 %v3291, 7
      %v3293 = vsub.s32 %v3290, %v3292
      %v3294 = vrot.slane %v3286, %v3293
      %v3296 = vunpack.c.l.s4 1934713408
      %v3297 = vunpack.c.0.s8 %v3296
      %v3298 = vlaneseq
      %v3299 = vshrl.u32 %v3298, 7
      %v3300 = vsub.s32 %v3297, %v3299
      %v3301 = vrot.slane %v3287, %v3300
      %v3302 = vcombine.high %v3278, 0.0
      %v3303 = vcombine.high %v3285, 0.0
      %v3304 = vcombine.high %v3294, 0.0
      %v3305 = vcombine.high %v3301, 0.0
      %v3306 = vcombine.high %v2996, 0.0
      %v3308 = vunpack.c.l.s4 1983009808
      %v3309 = vunpack.c.0.s8 %v3308
      %v3310 = vlaneseq
      %v3311 = vshrl.u32 %v3310, 7
      %v3312 = vsub.s32 %v3309, %v3311
      %v3313 = vrot.slane %v2996, %v3312
      %v3315 = vunpack.c.l.s4 1983009808
      %v3316 = vunpack.c.0.s8 %v3315
      %v3317 = vlaneseq
      %v3318 = vshrl.u32 %v3317, 7
      %v3319 = vsub.s32 %v3316, %v3318
      %v3320 = vrot.slane %v3306, %v3319
      %v3321 = vcombine.high %v3027, 0.0
      %v3323 = vunpack.c.l.s4 1983009808
      %v3324 = vunpack.c.0.s8 %v3323
      %v3325 = vlaneseq
      %v3326 = vshrl.u32 %v3325, 7
      %v3327 = vsub.s32 %v3324, %v3326
      %v3328 = vrot.slane %v3027, %v3327
      %v3330 = vunpack.c.l.s4 1983009808
      %v3331 = vunpack.c.0.s8 %v3330
      %v3332 = vlaneseq
      %v3333 = vshrl.u32 %v3332, 7
      %v3334 = vsub.s32 %v3331, %v3333
      %v3335 = vrot.slane %v3321, %v3334
      %v3336 = vcombine.low %v3313, %v3328
      %v3337 = vcombine.high %v3313, %v3328
      %v3339 = vunpack.c.l.s4 1934713408
      %v3340 = vunpack.c.0.s8 %v3339
      %v3341 = vlaneseq
      %v3342 = vshrl.u32 %v3341, 7
      %v3343 = vsub.s32 %v3340, %v3342
      %v3344 = vrot.slane %v3336, %v3343
      %v3346 = vunpack.c.l.s4 1934713408
      %v3347 = vunpack.c.0.s8 %v3346
      %v3348 = vlaneseq
      %v3349 = vshrl.u32 %v3348, 7
      %v3350 = vsub.s32 %v3347, %v3349
      %v3351 = vrot.slane %v3337, %v3350
      %v3352 = vcombine.low %v3320, %v3335
      %v3353 = vcombine.high %v3320, %v3335
      %v3355 = vunpack.c.l.s4 1934713408
      %v3356 = vunpack.c.0.s8 %v3355
      %v3357 = vlaneseq
      %v3358 = vshrl.u32 %v3357, 7
      %v3359 = vsub.s32 %v3356, %v3358
      %v3360 = vrot.slane %v3352, %v3359
      %v3362 = vunpack.c.l.s4 1934713408
      %v3363 = vunpack.c.0.s8 %v3362
      %v3364 = vlaneseq
      %v3365 = vshrl.u32 %v3364, 7
      %v3366 = vsub.s32 %v3363, %v3365
      %v3367 = vrot.slane %v3353, %v3366
      %v3368 = vcombine.high %v3344, 0.0
      %v3369 = vcombine.high %v3351, 0.0
      %v3370 = vcombine.high %v3360, 0.0
      %v3371 = vcombine.high %v3367, 0.0
      %v3372 = vcombine.high %v2999, 0.0
      %v3374 = vunpack.c.l.s4 1983009808
      %v3375 = vunpack.c.0.s8 %v3374
      %v3376 = vlaneseq
      %v3377 = vshrl.u32 %v3376, 7
      %v3378 = vsub.s32 %v3375, %v3377
      %v3379 = vrot.slane %v2999, %v3378
      %v3381 = vunpack.c.l.s4 1983009808
      %v3382 = vunpack.c.0.s8 %v3381
      %v3383 = vlaneseq
      %v3384 = vshrl.u32 %v3383, 7
      %v3385 = vsub.s32 %v3382, %v3384
      %v3386 = vrot.slane %v3372, %v3385
      %v3387 = vcombine.high %v3029, 0.0
      %v3389 = vunpack.c.l.s4 1983009808
      %v3390 = vunpack.c.0.s8 %v3389
      %v3391 = vlaneseq
      %v3392 = vshrl.u32 %v3391, 7
      %v3393 = vsub.s32 %v3390, %v3392
      %v3394 = vrot.slane %v3029, %v3393
      %v3396 = vunpack.c.l.s4 1983009808
      %v3397 = vunpack.c.0.s8 %v3396
      %v3398 = vlaneseq
      %v3399 = vshrl.u32 %v3398, 7
      %v3400 = vsub.s32 %v3397, %v3399
      %v3401 = vrot.slane %v3387, %v3400
      %v3402 = vcombine.low %v3379, %v3394
      %v3403 = vcombine.high %v3379, %v3394
      %v3405 = vunpack.c.l.s4 1934713408
      %v3406 = vunpack.c.0.s8 %v3405
      %v3407 = vlaneseq
      %v3408 = vshrl.u32 %v3407, 7
      %v3409 = vsub.s32 %v3406, %v3408
      %v3410 = vrot.slane %v3402, %v3409
      %v3412 = vunpack.c.l.s4 1934713408
      %v3413 = vunpack.c.0.s8 %v3412
      %v3414 = vlaneseq
      %v3415 = vshrl.u32 %v3414, 7
      %v3416 = vsub.s32 %v3413, %v3415
      %v3417 = vrot.slane %v3403, %v3416
      %v3418 = vcombine.low %v3386, %v3401
      %v3419 = vcombine.high %v3386, %v3401
      %v3421 = vunpack.c.l.s4 1934713408
      %v3422 = vunpack.c.0.s8 %v3421
      %v3423 = vlaneseq
      %v3424 = vshrl.u32 %v3423, 7
      %v3425 = vsub.s32 %v3422, %v3424
      %v3426 = vrot.slane %v3418, %v3425
      %v3428 = vunpack.c.l.s4 1934713408
      %v3429 = vunpack.c.0.s8 %v3428
      %v3430 = vlaneseq
      %v3431 = vshrl.u32 %v3430, 7
      %v3432 = vsub.s32 %v3429, %v3431
      %v3433 = vrot.slane %v3419, %v3432
      %v3434 = vcombine.high %v3410, 0.0
      %v3435 = vcombine.high %v3417, 0.0
      %v3436 = vcombine.high %v3426, 0.0
      %v3437 = vcombine.high %v3433, 0.0
      %v3438 = vcombine.high %v3004, 0.0
      %v3440 = vunpack.c.l.s4 1983009808
      %v3441 = vunpack.c.0.s8 %v3440
      %v3442 = vlaneseq
      %v3443 = vshrl.u32 %v3442, 7
      %v3444 = vsub.s32 %v3441, %v3443
      %v3445 = vrot.slane %v3004, %v3444
      %v3447 = vunpack.c.l.s4 1983009808
      %v3448 = vunpack.c.0.s8 %v3447
      %v3449 = vlaneseq
      %v3450 = vshrl.u32 %v3449, 7
      %v3451 = vsub.s32 %v3448, %v3450
      %v3452 = vrot.slane %v3438, %v3451
      %v3453 = vcombine.high %v3031, 0.0
      %v3455 = vunpack.c.l.s4 1983009808
      %v3456 = vunpack.c.0.s8 %v3455
      %v3457 = vlaneseq
      %v3458 = vshrl.u32 %v3457, 7
      %v3459 = vsub.s32 %v3456, %v3458
      %v3460 = vrot.slane %v3031, %v3459
      %v3462 = vunpack.c.l.s4 1983009808
      %v3463 = vunpack.c.0.s8 %v3462
      %v3464 = vlaneseq
      %v3465 = vshrl.u32 %v3464, 7
      %v3466 = vsub.s32 %v3463, %v3465
      %v3467 = vrot.slane %v3453, %v3466
      %v3468 = vcombine.low %v3445, %v3460
      %v3469 = vcombine.high %v3445, %v3460
      %v3471 = vunpack.c.l.s4 1934713408
      %v3472 = vunpack.c.0.s8 %v3471
      %v3473 = vlaneseq
      %v3474 = vshrl.u32 %v3473, 7
      %v3475 = vsub.s32 %v3472, %v3474
      %v3476 = vrot.slane %v3468, %v3475
      %v3478 = vunpack.c.l.s4 1934713408
      %v3479 = vunpack.c.0.s8 %v3478
      %v3480 = vlaneseq
      %v3481 = vshrl.u32 %v3480, 7
      %v3482 = vsub.s32 %v3479, %v3481
      %v3483 = vrot.slane %v3469, %v3482
      %v3484 = vcombine.low %v3452, %v3467
      %v3485 = vcombine.high %v3452, %v3467
      %v3487 = vunpack.c.l.s4 1934713408
      %v3488 = vunpack.c.0.s8 %v3487
      %v3489 = vlaneseq
      %v3490 = vshrl.u32 %v3489, 7
      %v3491 = vsub.s32 %v3488, %v3490
      %v3492 = vrot.slane %v3484, %v3491
      %v3494 = vunpack.c.l.s4 1934713408
      %v3495 = vunpack.c.0.s8 %v3494
      %v3496 = vlaneseq
      %v3497 = vshrl.u32 %v3496, 7
      %v3498 = vsub.s32 %v3495, %v3497
      %v3499 = vrot.slane %v3485, %v3498
      %v3500 = vcombine.high %v3476, 0.0
      %v3501 = vcombine.high %v3483, 0.0
      %v3502 = vcombine.high %v3492, 0.0
      %v3503 = vcombine.high %v3499, 0.0
      %v3504 = vcombine.high %v3007, 0.0
      %v3506 = vunpack.c.l.s4 1983009808
      %v3507 = vunpack.c.0.s8 %v3506
      %v3508 = vlaneseq
      %v3509 = vshrl.u32 %v3508, 7
      %v3510 = vsub.s32 %v3507, %v3509
      %v3511 = vrot.slane %v3007, %v3510
      %v3513 = vunpack.c.l.s4 1983009808
      %v3514 = vunpack.c.0.s8 %v3513
      %v3515 = vlaneseq
      %v3516 = vshrl.u32 %v3515, 7
      %v3517 = vsub.s32 %v3514, %v3516
      %v3518 = vrot.slane %v3504, %v3517
      %v3519 = vcombine.high %v3033, 0.0
      %v3521 = vunpack.c.l.s4 1983009808
      %v3522 = vunpack.c.0.s8 %v3521
      %v3523 = vlaneseq
      %v3524 = vshrl.u32 %v3523, 7
      %v3525 = vsub.s32 %v3522, %v3524
      %v3526 = vrot.slane %v3033, %v3525
      %v3528 = vunpack.c.l.s4 1983009808
      %v3529 = vunpack.c.0.s8 %v3528
      %v3530 = vlaneseq
      %v3531 = vshrl.u32 %v3530, 7
      %v3532 = vsub.s32 %v3529, %v3531
      %v3533 = vrot.slane %v3519, %v3532
      %v3534 = vcombine.low %v3511, %v3526
      %v3535 = vcombine.high %v3511, %v3526
      %v3537 = vunpack.c.l.s4 1934713408
      %v3538 = vunpack.c.0.s8 %v3537
      %v3539 = vlaneseq
      %v3540 = vshrl.u32 %v3539, 7
      %v3541 = vsub.s32 %v3538, %v3540
      %v3542 = vrot.slane %v3534, %v3541
      %v3544 = vunpack.c.l.s4 1934713408
      %v3545 = vunpack.c.0.s8 %v3544
      %v3546 = vlaneseq
      %v3547 = vshrl.u32 %v3546, 7
      %v3548 = vsub.s32 %v3545, %v3547
      %v3549 = vrot.slane %v3535, %v3548
      %v3550 = vcombine.low %v3518, %v3533
      %v3551 = vcombine.high %v3518, %v3533
      %v3553 = vunpack.c.l.s4 1934713408
      %v3554 = vunpack.c.0.s8 %v3553
      %v3555 = vlaneseq
      %v3556 = vshrl.u32 %v3555, 7
      %v3557 = vsub.s32 %v3554, %v3556
      %v3558 = vrot.slane %v3550, %v3557
      %v3560 = vunpack.c.l.s4 1934713408
      %v3561 = vunpack.c.0.s8 %v3560
      %v3562 = vlaneseq
      %v3563 = vshrl.u32 %v3562, 7
      %v3564 = vsub.s32 %v3561, %v3563
      %v3565 = vrot.slane %v3551, %v3564
      %v3566 = vcombine.high %v3542, 0.0
      %v3567 = vcombine.high %v3549, 0.0
      %v3568 = vcombine.high %v3558, 0.0
      %v3569 = vcombine.high %v3565, 0.0
      %v3570 = vcombine.low %v3080, %v3087
      %v3572 = vunpack.c.l.s4 1983009808
      %v3573 = vunpack.c.0.s8 %v3572
      %v3574 = vlaneseq
      %v3575 = vshrl.u32 %v3574, 7
      %v3576 = vsub.s32 %v3573, %v3575
      %v3577 = vrot.slane %v3570, %v3576
      %v3578 = vcombine.low %v3104, %v3105
      %v3580 = vunpack.c.l.s4 1983009808
      %v3581 = vunpack.c.0.s8 %v3580
      %v3582 = vlaneseq
      %v3583 = vshrl.u32 %v3582, 7
      %v3584 = vsub.s32 %v3581, %v3583
      %v3585 = vrot.slane %v3578, %v3584
      %v3586 = vcombine.low %v3096, %v3103
      %v3588 = vunpack.c.l.s4 1983009808
      %v3589 = vunpack.c.0.s8 %v3588
      %v3590 = vlaneseq
      %v3591 = vshrl.u32 %v3590, 7
      %v3592 = vsub.s32 %v3589, %v3591
      %v3593 = vrot.slane %v3586, %v3592
      %v3594 = vcombine.low %v3106, %v3107
      %v3596 = vunpack.c.l.s4 1983009808
      %v3597 = vunpack.c.0.s8 %v3596
      %v3598 = vlaneseq
      %v3599 = vshrl.u32 %v3598, 7
      %v3600 = vsub.s32 %v3597, %v3599
      %v3601 = vrot.slane %v3594, %v3600
      %v3602 = vcombine.low %v3577, %v3585
      %v3604 = vunpack.c.l.s4 1934713408
      %v3605 = vunpack.c.0.s8 %v3604
      %v3606 = vlaneseq
      %v3607 = vshrl.u32 %v3606, 7
      %v3608 = vsub.s32 %v3605, %v3607
      %v3609 = vrot.slane %v3602, %v3608
      %v3610 = vcombine.low %v3593, %v3601
      %v3612 = vunpack.c.l.s4 1934713408
      %v3613 = vunpack.c.0.s8 %v3612
      %v3614 = vlaneseq
      %v3615 = vshrl.u32 %v3614, 7
      %v3616 = vsub.s32 %v3613, %v3615
      %v3617 = vrot.slane %v3610, %v3616
      %v3618 = vcombine.low %v3609, %v3617
      %v3619 = vcombine.high %v3609, %v3617
      %v3620 = vcombine.low %v3146, %v3153
      %v3622 = vunpack.c.l.s4 1983009808
      %v3623 = vunpack.c.0.s8 %v3622
      %v3624 = vlaneseq
      %v3625 = vshrl.u32 %v3624, 7
      %v3626 = vsub.s32 %v3623, %v3625
      %v3627 = vrot.slane %v3620, %v3626
      %v3628 = vcombine.low %v3170, %v3171
      %v3630 = vunpack.c.l.s4 1983009808
      %v3631 = vunpack.c.0.s8 %v3630
      %v3632 = vlaneseq
      %v3633 = vshrl.u32 %v3632, 7
      %v3634 = vsub.s32 %v3631, %v3633
      %v3635 = vrot.slane %v3628, %v3634
      %v3636 = vcombine.low %v3162, %v3169
      %v3638 = vunpack.c.l.s4 1983009808
      %v3639 = vunpack.c.0.s8 %v3638
      %v3640 = vlaneseq
      %v3641 = vshrl.u32 %v3640, 7
      %v3642 = vsub.s32 %v3639, %v3641
      %v3643 = vrot.slane %v3636, %v3642
      %v3644 = vcombine.low %v3172, %v3173
      %v3646 = vunpack.c.l.s4 1983009808
      %v3647 = vunpack.c.0.s8 %v3646
      %v3648 = vlaneseq
      %v3649 = vshrl.u32 %v3648, 7
      %v3650 = vsub.s32 %v3647, %v3649
      %v3651 = vrot.slane %v3644, %v3650
      %v3652 = vcombine.low %v3627, %v3635
      %v3654 = vunpack.c.l.s4 1934713408
      %v3655 = vunpack.c.0.s8 %v3654
      %v3656 = vlaneseq
      %v3657 = vshrl.u32 %v3656, 7
      %v3658 = vsub.s32 %v3655, %v3657
      %v3659 = vrot.slane %v3652, %v3658
      %v3660 = vcombine.low %v3643, %v3651
      %v3662 = vunpack.c.l.s4 1934713408
      %v3663 = vunpack.c.0.s8 %v3662
      %v3664 = vlaneseq
      %v3665 = vshrl.u32 %v3664, 7
      %v3666 = vsub.s32 %v3663, %v3665
      %v3667 = vrot.slane %v3660, %v3666
      %v3668 = vcombine.low %v3659, %v3667
      %v3669 = vcombine.high %v3659, %v3667
      %v3670 = vcombine.low %v3212, %v3219
      %v3672 = vunpack.c.l.s4 1983009808
      %v3673 = vunpack.c.0.s8 %v3672
      %v3674 = vlaneseq
      %v3675 = vshrl.u32 %v3674, 7
      %v3676 = vsub.s32 %v3673, %v3675
      %v3677 = vrot.slane %v3670, %v3676
      %v3678 = vcombine.low %v3236, %v3237
      %v3680 = vunpack.c.l.s4 1983009808
      %v3681 = vunpack.c.0.s8 %v3680
      %v3682 = vlaneseq
      %v3683 = vshrl.u32 %v3682, 7
      %v3684 = vsub.s32 %v3681, %v3683
      %v3685 = vrot.slane %v3678, %v3684
      %v3686 = vcombine.low %v3228, %v3235
      %v3688 = vunpack.c.l.s4 1983009808
      %v3689 = vunpack.c.0.s8 %v3688
      %v3690 = vlaneseq
      %v3691 = vshrl.u32 %v3690, 7
      %v3692 = vsub.s32 %v3689, %v3691
      %v3693 = vrot.slane %v3686, %v3692
      %v3694 = vcombine.low %v3238, %v3239
      %v3696 = vunpack.c.l.s4 1983009808
      %v3697 = vunpack.c.0.s8 %v3696
      %v3698 = vlaneseq
      %v3699 = vshrl.u32 %v3698, 7
      %v3700 = vsub.s32 %v3697, %v3699
      %v3701 = vrot.slane %v3694, %v3700
      %v3702 = vcombine.low %v3677, %v3685
      %v3704 = vunpack.c.l.s4 1934713408
      %v3705 = vunpack.c.0.s8 %v3704
      %v3706 = vlaneseq
      %v3707 = vshrl.u32 %v3706, 7
      %v3708 = vsub.s32 %v3705, %v3707
      %v3709 = vrot.slane %v3702, %v3708
      %v3710 = vcombine.low %v3693, %v3701
      %v3712 = vunpack.c.l.s4 1934713408
      %v3713 = vunpack.c.0.s8 %v3712
      %v3714 = vlaneseq
      %v3715 = vshrl.u32 %v3714, 7
      %v3716 = vsub.s32 %v3713, %v3715
      %v3717 = vrot.slane %v3710, %v3716
      %v3718 = vcombine.low %v3709, %v3717
      %v3719 = vcombine.high %v3709, %v3717
      %v3720 = vcombine.low %v3278, %v3285
      %v3722 = vunpack.c.l.s4 1983009808
      %v3723 = vunpack.c.0.s8 %v3722
      %v3724 = vlaneseq
      %v3725 = vshrl.u32 %v3724, 7
      %v3726 = vsub.s32 %v3723, %v3725
      %v3727 = vrot.slane %v3720, %v3726
      %v3728 = vcombine.low %v3302, %v3303
      %v3730 = vunpack.c.l.s4 1983009808
      %v3731 = vunpack.c.0.s8 %v3730
      %v3732 = vlaneseq
      %v3733 = vshrl.u32 %v3732, 7
      %v3734 = vsub.s32 %v3731, %v3733
      %v3735 = vrot.slane %v3728, %v3734
      %v3736 = vcombine.low %v3294, %v3301
      %v3738 = vunpack.c.l.s4 1983009808
      %v3739 = vunpack.c.0.s8 %v3738
      %v3740 = vlaneseq
      %v3741 = vshrl.u32 %v3740, 7
      %v3742 = vsub.s32 %v3739, %v3741
      %v3743 = vrot.slane %v3736, %v3742
      %v3744 = vcombine.low %v3304, %v3305
      %v3746 = vunpack.c.l.s4 1983009808
      %v3747 = vunpack.c.0.s8 %v3746
      %v3748 = vlaneseq
      %v3749 = vshrl.u32 %v3748, 7
      %v3750 = vsub.s32 %v3747, %v3749
      %v3751 = vrot.slane %v3744, %v3750
      %v3752 = vcombine.low %v3727, %v3735
      %v3754 = vunpack.c.l.s4 1934713408
      %v3755 = vunpack.c.0.s8 %v3754
      %v3756 = vlaneseq
      %v3757 = vshrl.u32 %v3756, 7
      %v3758 = vsub.s32 %v3755, %v3757
      %v3759 = vrot.slane %v3752, %v3758
      %v3760 = vcombine.low %v3743, %v3751
      %v3762 = vunpack.c.l.s4 1934713408
      %v3763 = vunpack.c.0.s8 %v3762
      %v3764 = vlaneseq
      %v3765 = vshrl.u32 %v3764, 7
      %v3766 = vsub.s32 %v3763, %v3765
      %v3767 = vrot.slane %v3760, %v3766
      %v3768 = vcombine.low %v3759, %v3767
      %v3769 = vcombine.high %v3759, %v3767
      %v3770 = vcombine.low %v3344, %v3351
      %v3772 = vunpack.c.l.s4 1983009808
      %v3773 = vunpack.c.0.s8 %v3772
      %v3774 = vlaneseq
      %v3775 = vshrl.u32 %v3774, 7
      %v3776 = vsub.s32 %v3773, %v3775
      %v3777 = vrot.slane %v3770, %v3776
      %v3778 = vcombine.low %v3368, %v3369
      %v3780 = vunpack.c.l.s4 1983009808
      %v3781 = vunpack.c.0.s8 %v3780
      %v3782 = vlaneseq
      %v3783 = vshrl.u32 %v3782, 7
      %v3784 = vsub.s32 %v3781, %v3783
      %v3785 = vrot.slane %v3778, %v3784
      %v3786 = vcombine.low %v3360, %v3367
      %v3788 = vunpack.c.l.s4 1983009808
      %v3789 = vunpack.c.0.s8 %v3788
      %v3790 = vlaneseq
      %v3791 = vshrl.u32 %v3790, 7
      %v3792 = vsub.s32 %v3789, %v3791
      %v3793 = vrot.slane %v3786, %v3792
      %v3794 = vcombine.low %v3370, %v3371
      %v3796 = vunpack.c.l.s4 1983009808
      %v3797 = vunpack.c.0.s8 %v3796
      %v3798 = vlaneseq
      %v3799 = vshrl.u32 %v3798, 7
      %v3800 = vsub.s32 %v3797, %v3799
      %v3801 = vrot.slane %v3794, %v3800
      %v3802 = vcombine.low %v3777, %v3785
      %v3804 = vunpack.c.l.s4 1934713408
      %v3805 = vunpack.c.0.s8 %v3804
      %v3806 = vlaneseq
      %v3807 = vshrl.u32 %v3806, 7
      %v3808 = vsub.s32 %v3805, %v3807
      %v3809 = vrot.slane %v3802, %v3808
      %v3810 = vcombine.low %v3793, %v3801
      %v3812 = vunpack.c.l.s4 1934713408
      %v3813 = vunpack.c.0.s8 %v3812
      %v3814 = vlaneseq
      %v3815 = vshrl.u32 %v3814, 7
      %v3816 = vsub.s32 %v3813, %v3815
      %v3817 = vrot.slane %v3810, %v3816
      %v3818 = vcombine.low %v3809, %v3817
      %v3819 = vcombine.high %v3809, %v3817
      %v3820 = vcombine.low %v3410, %v3417
      %v3822 = vunpack.c.l.s4 1983009808
      %v3823 = vunpack.c.0.s8 %v3822
      %v3824 = vlaneseq
      %v3825 = vshrl.u32 %v3824, 7
      %v3826 = vsub.s32 %v3823, %v3825
      %v3827 = vrot.slane %v3820, %v3826
      %v3828 = vcombine.low %v3434, %v3435
      %v3830 = vunpack.c.l.s4 1983009808
      %v3831 = vunpack.c.0.s8 %v3830
      %v3832 = vlaneseq
      %v3833 = vshrl.u32 %v3832, 7
      %v3834 = vsub.s32 %v3831, %v3833
      %v3835 = vrot.slane %v3828, %v3834
      %v3836 = vcombine.low %v3426, %v3433
      %v3838 = vunpack.c.l.s4 1983009808
      %v3839 = vunpack.c.0.s8 %v3838
      %v3840 = vlaneseq
      %v3841 = vshrl.u32 %v3840, 7
      %v3842 = vsub.s32 %v3839, %v3841
      %v3843 = vrot.slane %v3836, %v3842
      %v3844 = vcombine.low %v3436, %v3437
      %v3846 = vunpack.c.l.s4 1983009808
      %v3847 = vunpack.c.0.s8 %v3846
      %v3848 = vlaneseq
      %v3849 = vshrl.u32 %v3848, 7
      %v3850 = vsub.s32 %v3847, %v3849
      %v3851 = vrot.slane %v3844, %v3850
      %v3852 = vcombine.low %v3827, %v3835
      %v3854 = vunpack.c.l.s4 1934713408
      %v3855 = vunpack.c.0.s8 %v3854
      %v3856 = vlaneseq
      %v3857 = vshrl.u32 %v3856, 7
      %v3858 = vsub.s32 %v3855, %v3857
      %v3859 = vrot.slane %v3852, %v3858
      %v3860 = vcombine.low %v3843, %v3851
      %v3862 = vunpack.c.l.s4 1934713408
      %v3863 = vunpack.c.0.s8 %v3862
      %v3864 = vlaneseq
      %v3865 = vshrl.u32 %v3864, 7
      %v3866 = vsub.s32 %v3863, %v3865
      %v3867 = vrot.slane %v3860, %v3866
      %v3868 = vcombine.low %v3859, %v3867
      %v3869 = vcombine.high %v3859, %v3867
      %v3870 = vcombine.low %v3476, %v3483
      %v3872 = vunpack.c.l.s4 1983009808
      %v3873 = vunpack.c.0.s8 %v3872
      %v3874 = vlaneseq
      %v3875 = vshrl.u32 %v3874, 7
      %v3876 = vsub.s32 %v3873, %v3875
      %v3877 = vrot.slane %v3870, %v3876
      %v3878 = vcombine.low %v3500, %v3501
      %v3880 = vunpack.c.l.s4 1983009808
      %v3881 = vunpack.c.0.s8 %v3880
      %v3882 = vlaneseq
      %v3883 = vshrl.u32 %v3882, 7
      %v3884 = vsub.s32 %v3881, %v3883
      %v3885 = vrot.slane %v3878, %v3884
      %v3886 = vcombine.low %v3492, %v3499
      %v3888 = vunpack.c.l.s4 1983009808
      %v3889 = vunpack.c.0.s8 %v3888
      %v3890 = vlaneseq
      %v3891 = vshrl.u32 %v3890, 7
      %v3892 = vsub.s32 %v3889, %v3891
      %v3893 = vrot.slane %v3886, %v3892
      %v3894 = vcombine.low %v3502, %v3503
      %v3896 = vunpack.c.l.s4 1983009808
      %v3897 = vunpack.c.0.s8 %v3896
      %v3898 = vlaneseq
      %v3899 = vshrl.u32 %v3898, 7
      %v3900 = vsub.s32 %v3897, %v3899
      %v3901 = vrot.slane %v3894, %v3900
      %v3902 = vcombine.low %v3877, %v3885
      %v3904 = vunpack.c.l.s4 1934713408
      %v3905 = vunpack.c.0.s8 %v3904
      %v3906 = vlaneseq
      %v3907 = vshrl.u32 %v3906, 7
      %v3908 = vsub.s32 %v3905, %v3907
      %v3909 = vrot.slane %v3902, %v3908
      %v3910 = vcombine.low %v3893, %v3901
      %v3912 = vunpack.c.l.s4 1934713408
      %v3913 = vunpack.c.0.s8 %v3912
      %v3914 = vlaneseq
      %v3915 = vshrl.u32 %v3914, 7
      %v3916 = vsub.s32 %v3913, %v3915
      %v3917 = vrot.slane %v3910, %v3916
      %v3918 = vcombine.low %v3909, %v3917
      %v3919 = vcombine.high %v3909, %v3917
      %v3920 = vcombine.low %v3542, %v3549
      %v3922 = vunpack.c.l.s4 1983009808
      %v3923 = vunpack.c.0.s8 %v3922
      %v3924 = vlaneseq
      %v3925 = vshrl.u32 %v3924, 7
      %v3926 = vsub.s32 %v3923, %v3925
      %v3927 = vrot.slane %v3920, %v3926
      %v3928 = vcombine.low %v3566, %v3567
      %v3930 = vunpack.c.l.s4 1983009808
      %v3931 = vunpack.c.0.s8 %v3930
      %v3932 = vlaneseq
      %v3933 = vshrl.u32 %v3932, 7
      %v3934 = vsub.s32 %v3931, %v3933
      %v3935 = vrot.slane %v3928, %v3934
      %v3936 = vcombine.low %v3558, %v3565
      %v3938 = vunpack.c.l.s4 1983009808
      %v3939 = vunpack.c.0.s8 %v3938
      %v3940 = vlaneseq
      %v3941 = vshrl.u32 %v3940, 7
      %v3942 = vsub.s32 %v3939, %v3941
      %v3943 = vrot.slane %v3936, %v3942
      %v3944 = vcombine.low %v3568, %v3569
      %v3946 = vunpack.c.l.s4 1983009808
      %v3947 = vunpack.c.0.s8 %v3946
      %v3948 = vlaneseq
      %v3949 = vshrl.u32 %v3948, 7
      %v3950 = vsub.s32 %v3947, %v3949
      %v3951 = vrot.slane %v3944, %v3950
      %v3952 = vcombine.low %v3927, %v3935
      %v3954 = vunpack.c.l.s4 1934713408
      %v3955 = vunpack.c.0.s8 %v3954
      %v3956 = vlaneseq
      %v3957 = vshrl.u32 %v3956, 7
      %v3958 = vsub.s32 %v3955, %v3957
      %v3959 = vrot.slane %v3952, %v3958
      %v3960 = vcombine.low %v3943, %v3951
      %v3962 = vunpack.c.l.s4 1934713408
      %v3963 = vunpack.c.0.s8 %v3962
      %v3964 = vlaneseq
      %v3965 = vshrl.u32 %v3964, 7
      %v3966 = vsub.s32 %v3963, %v3965
      %v3967 = vrot.slane %v3960, %v3966
      %v3968 = vcombine.low %v3959, %v3967
      %v3969 = vcombine.high %v3959, %v3967
      %v3970 = vpack.c.bf16 %v3668, %v3618
      %v3971 = vpack.c.bf16 %v3768, %v3718
      %v3972 = vpack.c.bf16 %v3868, %v3818
      %v3973 = vpack.c.bf16 %v3968, %v3918
      %v3974 = vpack.c.bf16 %v3669, %v3619
      %v3975 = vpack.c.bf16 %v3769, %v3719
      %v3976 = vpack.c.bf16 %v3869, %v3819
      %v3977 = vpack.c.bf16 %v3969, %v3919
      %v3978 = vld [vmem:[#allocation2] sm:$0xff]
      %v3979 = vld [vmem:[#allocation2 + $0x8] sm:$0xff]
      %v3980 = vld [vmem:[#allocation2 + $0x10] sm:$0xff]
      %v3981 = vld [vmem:[#allocation2 + $0x18] sm:$0xff]
      %v3982 = vld [vmem:[#allocation2 + $0x20] sm:$0xff]
      %v3983 = vld [vmem:[#allocation2 + $0x28] sm:$0xff]
      %v3984 = vld [vmem:[#allocation2 + $0x30] sm:$0xff]
      %v3985 = vld [vmem:[#allocation2 + $0x38] sm:$0xff]
      %v3986 = vld [vmem:[#allocation3] sm:$0xff]
      %v3987 = vld [vmem:[#allocation3 + $0x8] sm:$0xff]
      %v3988 = vld [vmem:[#allocation3 + $0x10] sm:$0xff]
      %v3989 = vld [vmem:[#allocation3 + $0x18] sm:$0xff]
      %v3990 = vld [vmem:[#allocation3 + $0x20] sm:$0xff]
      %v3991 = vld [vmem:[#allocation3 + $0x28] sm:$0xff]
      %v3992 = vld [vmem:[#allocation3 + $0x30] sm:$0xff]
      %v3993 = vld [vmem:[#allocation3 + $0x38] sm:$0xff]
      %vm3994 = vcmask 130048
      %v3996 = vsel %vm3994, %v3970, 0
      %v3999 = vsel %vm3994, %v3971, 0
      %v4002 = vsel %vm3994, %v3972, 0
      %v4005 = vsel %vm3994, %v3973, 0
      %v4008 = vsel %vm3994, %v3978, 0
      %v4011 = vsel %vm3994, %v3979, 0
      %v4014 = vsel %vm3994, %v3980, 0
      %v4017 = vsel %vm3994, %v3981, 0
      %4019 = vmatprep.subr.bf16.mxu0 0
      %4020 = vmatpush1.bf16.xpose.msra.mxu0 %v4008
      %4021 = vmatprep.subr.bf16.mxu0 0
      %4022 = vmatpush1.bf16.xpose.msra.mxu0 %v4011
      %4023 = vmatprep.subr.bf16.mxu0 0
      %4024 = vmatpush1.bf16.xpose.msra.mxu0 %v4014
      %4025 = vmatprep.subr.bf16.mxu0 0
      %4026 = vmatpush1.bf16.xpose.msra.mxu0 %v4017
      %4027 = vmatprep.subr.bf16.mxu0 0
      %4028 = vmatpush1.bf16.xpose.msra.mxu0 0
      %4029 = vmatprep.subr.bf16.mxu0 0
      %4030 = vmatpush1.bf16.xpose.msra.mxu0 0
      %4031 = vmatprep.subr.bf16.mxu0 0
      %4032 = vmatpush1.bf16.xpose.msra.mxu0 0
      %4033 = vmatprep.subr.bf16.mxu0 0
      %4034 = vmatpush1.bf16.xpose.msra.mxu0 0
      %4035 = vmatprep.subr.bf16.mxu0 0
      %4036 = vmatpush1.bf16.xpose.msra.mxu0 0
      %4037 = vmatprep.subr.bf16.mxu0 0
      %4038 = vmatpush1.bf16.xpose.msra.mxu0 0
      %4039 = vmatprep.subr.bf16.mxu0 0
      %4040 = vmatpush1.bf16.xpose.msra.mxu0 0
      %4041 = vmatprep.subr.bf16.mxu0 0
      %4042 = vmatpush1.bf16.xpose.msra.mxu0 0
      %4043 = vmatprep.subr.bf16.mxu0 0
      %4044 = vmatpush1.bf16.xpose.msra.mxu0 0
      %4045 = vmatprep.subr.bf16.mxu0 0
      %4046 = vmatpush1.bf16.xpose.msra.mxu0 0
      %4047 = vmatprep.subr.bf16.mxu0 0
      %4048 = vmatpush1.bf16.xpose.msra.mxu0 0
      %4049 = vmatprep.subr.bf16.mxu0 0
      %4050 = vmatpush1.bf16.xpose.msra.mxu0 0
      %4051 = vmatprep.mubr.bf16.mxu0 0
      %4052 = vmatmul.mubr.bf16.gmra.mrb[0].mxu0 %v3996
      %v4053 = vpop.f32.mrb[0].mxu0
      %v4054 = vadd.f32 0.0, %v4053
      %v4055 = vpop.f32.mrb[0].mxu0
      %v4056 = vpop.f32.mrb[0].mxu0
      %v4057 = vadd.f32 0.0, %v4056
      %v4058 = vpop.f32.mrb[0].mxu0
      %4059 = vmatprep.mubr.bf16.mxu0 0
      %4060 = vmatmul.mubr.bf16.gmra.mrb[0].mxu0 %v3999
      %v4061 = vpop.f32.mrb[0].mxu0
      %v4062 = vadd.f32 0.0, %v4061
      %v4063 = vpop.f32.mrb[0].mxu0
      %v4064 = vpop.f32.mrb[0].mxu0
      %v4065 = vadd.f32 0.0, %v4064
      %v4066 = vpop.f32.mrb[0].mxu0
      %4067 = vmatprep.mubr.bf16.mxu0 0
      %4068 = vmatmul.mubr.bf16.gmra.mrb[0].mxu0 %v4002
      %v4069 = vpop.f32.mrb[0].mxu0
      %v4070 = vadd.f32 0.0, %v4069
      %v4071 = vpop.f32.mrb[0].mxu0
      %v4072 = vpop.f32.mrb[0].mxu0
      %v4073 = vadd.f32 0.0, %v4072
      %v4074 = vpop.f32.mrb[0].mxu0
      %4075 = vmatprep.mubr.bf16.mxu0 0
      %4076 = vmatmul.mubr.bf16.gmra.mrb[0].mxu0 %v4005
      %v4077 = vpop.f32.mrb[0].mxu0
      %v4078 = vadd.f32 0.0, %v4077
      %v4079 = vpop.f32.mrb[0].mxu0
      %v4080 = vpop.f32.mrb[0].mxu0
      %v4081 = vadd.f32 0.0, %v4080
      %v4082 = vpop.f32.mrb[0].mxu0
      %4083 = vdwg.mxu0
      %v4085 = vsel %vm3994, %v3974, 0
      %v4088 = vsel %vm3994, %v3975, 0
      %v4091 = vsel %vm3994, %v3976, 0
      %v4094 = vsel %vm3994, %v3977, 0
      %v4097 = vsel %vm3994, %v3982, 0
      %v4100 = vsel %vm3994, %v3983, 0
      %v4103 = vsel %vm3994, %v3984, 0
      %v4106 = vsel %vm3994, %v3985, 0
      %4108 = vmatprep.subr.bf16.mxu0 0
      %4109 = vmatpush1.bf16.xpose.msra.mxu0 %v4097
      %4110 = vmatprep.subr.bf16.mxu0 0
      %4111 = vmatpush1.bf16.xpose.msra.mxu0 %v4100
      %4112 = vmatprep.subr.bf16.mxu0 0
      %4113 = vmatpush1.bf16.xpose.msra.mxu0 %v4103
      %4114 = vmatprep.subr.bf16.mxu0 0
      %4115 = vmatpush1.bf16.xpose.msra.mxu0 %v4106
      %4116 = vmatprep.subr.bf16.mxu0 0
      %4117 = vmatpush1.bf16.xpose.msra.mxu0 0
      %4118 = vmatprep.subr.bf16.mxu0 0
      %4119 = vmatpush1.bf16.xpose.msra.mxu0 0
      %4120 = vmatprep.subr.bf16.mxu0 0
      %4121 = vmatpush1.bf16.xpose.msra.mxu0 0
      %4122 = vmatprep.subr.bf16.mxu0 0
      %4123 = vmatpush1.bf16.xpose.msra.mxu0 0
      %4124 = vmatprep.subr.bf16.mxu0 0
      %4125 = vmatpush1.bf16.xpose.msra.mxu0 0
      %4126 = vmatprep.subr.bf16.mxu0 0
      %4127 = vmatpush1.bf16.xpose.msra.mxu0 0
      %4128 = vmatprep.subr.bf16.mxu0 0
      %4129 = vmatpush1.bf16.xpose.msra.mxu0 0
      %4130 = vmatprep.subr.bf16.mxu0 0
      %4131 = vmatpush1.bf16.xpose.msra.mxu0 0
      %4132 = vmatprep.subr.bf16.mxu0 0
      %4133 = vmatpush1.bf16.xpose.msra.mxu0 0
      %4134 = vmatprep.subr.bf16.mxu0 0
      %4135 = vmatpush1.bf16.xpose.msra.mxu0 0
      %4136 = vmatprep.subr.bf16.mxu0 0
      %4137 = vmatpush1.bf16.xpose.msra.mxu0 0
      %4138 = vmatprep.subr.bf16.mxu0 0
      %4139 = vmatpush1.bf16.xpose.msra.mxu0 0
      %4140 = vmatprep.mubr.bf16.mxu0 0
      %4141 = vmatmul.mubr.bf16.gmra.mrb[0].mxu0 %v4085
      %v4142 = vpop.f32.mrb[0].mxu0
      %v4143 = vadd.f32 0.0, %v4142
      %v4144 = vpop.f32.mrb[0].mxu0
      %v4145 = vpop.f32.mrb[0].mxu0
      %v4146 = vadd.f32 0.0, %v4145
      %v4147 = vpop.f32.mrb[0].mxu0
      %4148 = vmatprep.mubr.bf16.mxu0 0
      %4149 = vmatmul.mubr.bf16.gmra.mrb[0].mxu0 %v4088
      %v4150 = vpop.f32.mrb[0].mxu0
      %v4151 = vadd.f32 0.0, %v4150
      %v4152 = vpop.f32.mrb[0].mxu0
      %v4153 = vpop.f32.mrb[0].mxu0
      %v4154 = vadd.f32 0.0, %v4153
      %v4155 = vpop.f32.mrb[0].mxu0
      %4156 = vmatprep.mubr.bf16.mxu0 0
      %4157 = vmatmul.mubr.bf16.gmra.mrb[0].mxu0 %v4091
      %v4158 = vpop.f32.mrb[0].mxu0
      %v4159 = vadd.f32 0.0, %v4158
      %v4160 = vpop.f32.mrb[0].mxu0
      %v4161 = vpop.f32.mrb[0].mxu0
      %v4162 = vadd.f32 0.0, %v4161
      %v4163 = vpop.f32.mrb[0].mxu0
      %4164 = vmatprep.mubr.bf16.mxu0 0
      %4165 = vmatmul.mubr.bf16.gmra.mrb[0].mxu0 %v4094
      %v4166 = vpop.f32.mrb[0].mxu0
      %v4167 = vadd.f32 0.0, %v4166
      %v4168 = vpop.f32.mrb[0].mxu0
      %v4169 = vpop.f32.mrb[0].mxu0
      %v4170 = vadd.f32 0.0, %v4169
      %v4171 = vpop.f32.mrb[0].mxu0
      %4172 = vdwg.mxu0
      %vm4173 = vcmask 523264
      %v4174 = vsel %vm4173, %v4054, -inf
      %4175 = vmax.xlane.f32.xlu0 %v4174
      %v4176 = vpop.xlane.xlu0 %4175
      %v4177 = vsel %vm4173, %v4057, -inf
      %4178 = vmax.xlane.f32.xlu0 %v4177
      %v4179 = vpop.xlane.xlu0 %4178
      %v4180 = vsel %vm4173, %v4062, -inf
      %4181 = vmax.xlane.f32.xlu0 %v4180
      %v4182 = vpop.xlane.xlu0 %4181
      %v4183 = vsel %vm4173, %v4065, -inf
      %4184 = vmax.xlane.f32.xlu0 %v4183
      %v4185 = vpop.xlane.xlu0 %4184
      %v4186 = vsel %vm4173, %v4070, -inf
      %4187 = vmax.xlane.f32.xlu0 %v4186
      %v4188 = vpop.xlane.xlu0 %4187
      %v4189 = vsel %vm4173, %v4073, -inf
      %4190 = vmax.xlane.f32.xlu0 %v4189
      %v4191 = vpop.xlane.xlu0 %4190
      %v4192 = vsel %vm4173, %v4078, -inf
      %4193 = vmax.xlane.f32.xlu0 %v4192
      %v4194 = vpop.xlane.xlu0 %4193
      %v4195 = vsel %vm4173, %v4081, -inf
      %4196 = vmax.xlane.f32.xlu0 %v4195
      %v4197 = vpop.xlane.xlu0 %4196
      %v4198 = vsel %vm4173, %v4143, -inf
      %4199 = vmax.xlane.f32.xlu0 %v4198
      %v4200 = vpop.xlane.xlu0 %4199
      %v4201 = vsel %vm4173, %v4146, -inf
      %4202 = vmax.xlane.f32.xlu0 %v4201
      %v4203 = vpop.xlane.xlu0 %4202
      %v4204 = vsel %vm4173, %v4151, -inf
      %4205 = vmax.xlane.f32.xlu0 %v4204
      %v4206 = vpop.xlane.xlu0 %4205
      %v4207 = vsel %vm4173, %v4154, -inf
      %4208 = vmax.xlane.f32.xlu0 %v4207
      %v4209 = vpop.xlane.xlu0 %4208
      %v4210 = vsel %vm4173, %v4159, -inf
      %4211 = vmax.xlane.f32.xlu0 %v4210
      %v4212 = vpop.xlane.xlu0 %4211
      %v4213 = vsel %vm4173, %v4162, -inf
      %4214 = vmax.xlane.f32.xlu0 %v4213
      %v4215 = vpop.xlane.xlu0 %4214
      %v4216 = vsel %vm4173, %v4167, -inf
      %4217 = vmax.xlane.f32.xlu0 %v4216
      %v4218 = vpop.xlane.xlu0 %4217
      %v4219 = vsel %vm4173, %v4170, -inf
      %4220 = vmax.xlane.f32.xlu0 %v4219
      %v4221 = vpop.xlane.xlu0 %4220
      %v4222 = vsub.f32 %v4054, %v4176
      %v4223 = vsub.f32 %v4057, %v4179
      %v4224 = vsub.f32 %v4062, %v4182
      %v4225 = vsub.f32 %v4065, %v4185
      %v4226 = vsub.f32 %v4070, %v4188
      %v4227 = vsub.f32 %v4073, %v4191
      %v4228 = vsub.f32 %v4078, %v4194
      %v4229 = vsub.f32 %v4081, %v4197
      %v4230 = vsub.f32 %v4143, %v4200
      %v4231 = vsub.f32 %v4146, %v4203
      %v4232 = vsub.f32 %v4151, %v4206
      %v4233 = vsub.f32 %v4154, %v4209
      %v4234 = vsub.f32 %v4159, %v4212
      %v4235 = vsub.f32 %v4162, %v4215
      %v4236 = vsub.f32 %v4167, %v4218
      %v4237 = vsub.f32 %v4170, %v4221
      %v4238 = vmul.f32 %v4222, 1.442695
      %v4239 = vpow.pop %v4238
      %v4240 = vmul.f32 %v4223, 1.442695
      %v4241 = vpow.pop %v4240
      %v4242 = vmul.f32 %v4224, 1.442695
      %v4243 = vpow.pop %v4242
      %v4244 = vmul.f32 %v4225, 1.442695
      %v4245 = vpow.pop %v4244
      %v4246 = vmul.f32 %v4226, 1.442695
      %v4247 = vpow.pop %v4246
      %v4248 = vmul.f32 %v4227, 1.442695
      %v4249 = vpow.pop %v4248
      %v4250 = vmul.f32 %v4228, 1.442695
      %v4251 = vpow.pop %v4250
      %v4252 = vmul.f32 %v4229, 1.442695
      %v4253 = vpow.pop %v4252
      %v4254 = vmul.f32 %v4230, 1.442695
      %v4255 = vpow.pop %v4254
      %v4256 = vmul.f32 %v4231, 1.442695
      %v4257 = vpow.pop %v4256
      %v4258 = vmul.f32 %v4232, 1.442695
      %v4259 = vpow.pop %v4258
      %v4260 = vmul.f32 %v4233, 1.442695
      %v4261 = vpow.pop %v4260
      %v4262 = vmul.f32 %v4234, 1.442695
      %v4263 = vpow.pop %v4262
      %v4264 = vmul.f32 %v4235, 1.442695
      %v4265 = vpow.pop %v4264
      %v4266 = vmul.f32 %v4236, 1.442695
      %v4267 = vpow.pop %v4266
      %v4268 = vmul.f32 %v4237, 1.442695
      %v4269 = vpow.pop %v4268
      %v4270 = vsel %vm4173, %v4239, 0.0
      %4271 = vadd.xlane.f32.xlu0 %v4270
      %v4272 = vpop.xlane.xlu0 %4271
      %v4273 = vsel %vm4173, %v4241, 0.0
      %4274 = vadd.xlane.f32.xlu0 %v4273
      %v4275 = vpop.xlane.xlu0 %4274
      %v4276 = vsel %vm4173, %v4243, 0.0
      %4277 = vadd.xlane.f32.xlu0 %v4276
      %v4278 = vpop.xlane.xlu0 %4277
      %v4279 = vsel %vm4173, %v4245, 0.0
      %4280 = vadd.xlane.f32.xlu0 %v4279
      %v4281 = vpop.xlane.xlu0 %4280
      %v4282 = vsel %vm4173, %v4247, 0.0
      %4283 = vadd.xlane.f32.xlu0 %v4282
      %v4284 = vpop.xlane.xlu0 %4283
      %v4285 = vsel %vm4173, %v4249, 0.0
      %4286 = vadd.xlane.f32.xlu0 %v4285
      %v4287 = vpop.xlane.xlu0 %4286
      %v4288 = vsel %vm4173, %v4251, 0.0
      %4289 = vadd.xlane.f32.xlu0 %v4288
      %v4290 = vpop.xlane.xlu0 %4289
      %v4291 = vsel %vm4173, %v4253, 0.0
      %4292 = vadd.xlane.f32.xlu0 %v4291
      %v4293 = vpop.xlane.xlu0 %4292
      %v4294 = vsel %vm4173, %v4255, 0.0
      %4295 = vadd.xlane.f32.xlu0 %v4294
      %v4296 = vpop.xlane.xlu0 %4295
      %v4297 = vsel %vm4173, %v4257, 0.0
      %4298 = vadd.xlane.f32.xlu0 %v4297
      %v4299 = vpop.xlane.xlu0 %4298
      %v4300 = vsel %vm4173, %v4259, 0.0
      %4301 = vadd.xlane.f32.xlu0 %v4300
      %v4302 = vpop.xlane.xlu0 %4301
      %v4303 = vsel %vm4173, %v4261, 0.0
      %4304 = vadd.xlane.f32.xlu0 %v4303
      %v4305 = vpop.xlane.xlu0 %4304
      %v4306 = vsel %vm4173, %v4263, 0.0
      %4307 = vadd.xlane.f32.xlu0 %v4306
      %v4308 = vpop.xlane.xlu0 %4307
      %v4309 = vsel %vm4173, %v4265, 0.0
      %4310 = vadd.xlane.f32.xlu0 %v4309
      %v4311 = vpop.xlane.xlu0 %4310
      %v4312 = vsel %vm4173, %v4267, 0.0
      %4313 = vadd.xlane.f32.xlu0 %v4312
      %v4314 = vpop.xlane.xlu0 %4313
      %v4315 = vsel %vm4173, %v4269, 0.0
      %4316 = vadd.xlane.f32.xlu0 %v4315
      %v4317 = vpop.xlane.xlu0 %4316
      %v4318 = vpack.c.bf16 %v4241, %v4239
      %v4319 = vpack.c.bf16 %v4245, %v4243
      %v4320 = vpack.c.bf16 %v4249, %v4247
      %v4321 = vpack.c.bf16 %v4253, %v4251
      %v4322 = vpack.c.bf16 %v4257, %v4255
      %v4323 = vpack.c.bf16 %v4261, %v4259
      %v4324 = vpack.c.bf16 %v4265, %v4263
      %v4325 = vpack.c.bf16 %v4269, %v4267
      %v4327 = vsel %vm4173, %v4318, 0
      %v4330 = vsel %vm4173, %v4319, 0
      %v4333 = vsel %vm4173, %v4320, 0
      %v4336 = vsel %vm4173, %v4321, 0
      %4338 = vmatprep.subr.bf16.mxu0 0
      %4339 = vmatpush1.bf16.msra.mxu0 %v3986
      %4340 = vmatprep.subr.bf16.mxu0 0
      %4341 = vmatpush1.bf16.msra.mxu0 %v3987
      %4342 = vmatprep.subr.bf16.mxu0 0
      %4343 = vmatpush1.bf16.msra.mxu0 %v3988
      %4344 = vmatprep.subr.bf16.mxu0 0
      %4345 = vmatpush1.bf16.msra.mxu0 %v3989
      %4346 = vmatprep.subr.bf16.mxu0 0
      %4347 = vmatpush1.bf16.msra.mxu0 0
      %4348 = vmatprep.subr.bf16.mxu0 0
      %4349 = vmatpush1.bf16.msra.mxu0 0
      %4350 = vmatprep.subr.bf16.mxu0 0
      %4351 = vmatpush1.bf16.msra.mxu0 0
      %4352 = vmatprep.subr.bf16.mxu0 0
      %4353 = vmatpush1.bf16.msra.mxu0 0
      %4354 = vmatprep.subr.bf16.mxu0 0
      %4355 = vmatpush1.bf16.msra.mxu0 0
      %4356 = vmatprep.subr.bf16.mxu0 0
      %4357 = vmatpush1.bf16.msra.mxu0 0
      %4358 = vmatprep.subr.bf16.mxu0 0
      %4359 = vmatpush1.bf16.msra.mxu0 0
      %4360 = vmatprep.subr.bf16.mxu0 0
      %4361 = vmatpush1.bf16.msra.mxu0 0
      %4362 = vmatprep.subr.bf16.mxu0 0
      %4363 = vmatpush1.bf16.msra.mxu0 0
      %4364 = vmatprep.subr.bf16.mxu0 0
      %4365 = vmatpush1.bf16.msra.mxu0 0
      %4366 = vmatprep.subr.bf16.mxu0 0
      %4367 = vmatpush1.bf16.msra.mxu0 0
      %4368 = vmatprep.subr.bf16.mxu0 0
      %4369 = vmatpush1.bf16.msra.mxu0 0
      %4370 = vmatprep.mubr.bf16.mxu0 0
      %4371 = vmatmul.mubr.bf16.gmra.mrb[0].mxu0 %v4327
      %v4372 = vpop.f32.mrb[0].mxu0
      %v4373 = vadd.f32 0.0, %v4372
      %v4374 = vpop.f32.mrb[0].mxu0
      %v4375 = vpop.f32.mrb[0].mxu0
      %v4376 = vadd.f32 0.0, %v4375
      %v4377 = vpop.f32.mrb[0].mxu0
      %4378 = vmatprep.mubr.bf16.mxu0 0
      %4379 = vmatmul.mubr.bf16.gmra.mrb[0].mxu0 %v4330
      %v4380 = vpop.f32.mrb[0].mxu0
      %v4381 = vadd.f32 0.0, %v4380
      %v4382 = vpop.f32.mrb[0].mxu0
      %v4383 = vpop.f32.mrb[0].mxu0
      %v4384 = vadd.f32 0.0, %v4383
      %v4385 = vpop.f32.mrb[0].mxu0
      %4386 = vmatprep.mubr.bf16.mxu0 0
      %4387 = vmatmul.mubr.bf16.gmra.mrb[0].mxu0 %v4333
      %v4388 = vpop.f32.mrb[0].mxu0
      %v4389 = vadd.f32 0.0, %v4388
      %v4390 = vpop.f32.mrb[0].mxu0
      %v4391 = vpop.f32.mrb[0].mxu0
      %v4392 = vadd.f32 0.0, %v4391
      %v4393 = vpop.f32.mrb[0].mxu0
      %4394 = vmatprep.mubr.bf16.mxu0 0
      %4395 = vmatmul.mubr.bf16.gmra.mrb[0].mxu0 %v4336
      %v4396 = vpop.f32.mrb[0].mxu0
      %v4397 = vadd.f32 0.0, %v4396
      %v4398 = vpop.f32.mrb[0].mxu0
      %v4399 = vpop.f32.mrb[0].mxu0
      %v4400 = vadd.f32 0.0, %v4399
      %v4401 = vpop.f32.mrb[0].mxu0
      %4402 = vdwg.mxu0
      %v4404 = vsel %vm4173, %v4322, 0
      %v4407 = vsel %vm4173, %v4323, 0
      %v4410 = vsel %vm4173, %v4324, 0
      %v4413 = vsel %vm4173, %v4325, 0
      %4415 = vmatprep.subr.bf16.mxu0 0
      %4416 = vmatpush1.bf16.msra.mxu0 %v3990
      %4417 = vmatprep.subr.bf16.mxu0 0
      %4418 = vmatpush1.bf16.msra.mxu0 %v3991
      %4419 = vmatprep.subr.bf16.mxu0 0
      %4420 = vmatpush1.bf16.msra.mxu0 %v3992
      %4421 = vmatprep.subr.bf16.mxu0 0
      %4422 = vmatpush1.bf16.msra.mxu0 %v3993
      %4423 = vmatprep.subr.bf16.mxu0 0
      %4424 = vmatpush1.bf16.msra.mxu0 0
      %4425 = vmatprep.subr.bf16.mxu0 0
      %4426 = vmatpush1.bf16.msra.mxu0 0
      %4427 = vmatprep.subr.bf16.mxu0 0
      %4428 = vmatpush1.bf16.msra.mxu0 0
      %4429 = vmatprep.subr.bf16.mxu0 0
      %4430 = vmatpush1.bf16.msra.mxu0 0
      %4431 = vmatprep.subr.bf16.mxu0 0
      %4432 = vmatpush1.bf16.msra.mxu0 0
      %4433 = vmatprep.subr.bf16.mxu0 0
      %4434 = vmatpush1.bf16.msra.mxu0 0
      %4435 = vmatprep.subr.bf16.mxu0 0
      %4436 = vmatpush1.bf16.msra.mxu0 0
      %4437 = vmatprep.subr.bf16.mxu0 0
      %4438 = vmatpush1.bf16.msra.mxu0 0
      %4439 = vmatprep.subr.bf16.mxu0 0
      %4440 = vmatpush1.bf16.msra.mxu0 0
      %4441 = vmatprep.subr.bf16.mxu0 0
      %4442 = vmatpush1.bf16.msra.mxu0 0
      %4443 = vmatprep.subr.bf16.mxu0 0
      %4444 = vmatpush1.bf16.msra.mxu0 0
      %4445 = vmatprep.subr.bf16.mxu0 0
      %4446 = vmatpush1.bf16.msra.mxu0 0
      %4447 = vmatprep.mubr.bf16.mxu0 0
      %4448 = vmatmul.mubr.bf16.gmra.mrb[0].mxu0 %v4404
      %v4449 = vpop.f32.mrb[0].mxu0
      %v4450 = vadd.f32 0.0, %v4449
      %v4451 = vpop.f32.mrb[0].mxu0
      %v4452 = vpop.f32.mrb[0].mxu0
      %v4453 = vadd.f32 0.0, %v4452
      %v4454 = vpop.f32.mrb[0].mxu0
      %4455 = vmatprep.mubr.bf16.mxu0 0
      %4456 = vmatmul.mubr.bf16.gmra.mrb[0].mxu0 %v4407
      %v4457 = vpop.f32.mrb[0].mxu0
      %v4458 = vadd.f32 0.0, %v4457
      %v4459 = vpop.f32.mrb[0].mxu0
      %v4460 = vpop.f32.mrb[0].mxu0
      %v4461 = vadd.f32 0.0, %v4460
      %v4462 = vpop.f32.mrb[0].mxu0
      %4463 = vmatprep.mubr.bf16.mxu0 0
      %4464 = vmatmul.mubr.bf16.gmra.mrb[0].mxu0 %v4410
      %v4465 = vpop.f32.mrb[0].mxu0
      %v4466 = vadd.f32 0.0, %v4465
      %v4467 = vpop.f32.mrb[0].mxu0
      %v4468 = vpop.f32.mrb[0].mxu0
      %v4469 = vadd.f32 0.0, %v4468
      %v4470 = vpop.f32.mrb[0].mxu0
      %4471 = vmatprep.mubr.bf16.mxu0 0
      %4472 = vmatmul.mubr.bf16.gmra.mrb[0].mxu0 %v4413
      %v4473 = vpop.f32.mrb[0].mxu0
      %v4474 = vadd.f32 0.0, %v4473
      %v4475 = vpop.f32.mrb[0].mxu0
      %v4476 = vpop.f32.mrb[0].mxu0
      %v4477 = vadd.f32 0.0, %v4476
      %v4478 = vpop.f32.mrb[0].mxu0
      %4479 = vdwg.mxu0
      %v4480 = vrcp.pop %v4272
      %v4481 = vrcp.pop %v4275
      %v4482 = vrcp.pop %v4278
      %v4483 = vrcp.pop %v4281
      %v4484 = vrcp.pop %v4284
      %v4485 = vrcp.pop %v4287
      %v4486 = vrcp.pop %v4290
      %v4487 = vrcp.pop %v4293
      %v4488 = vrcp.pop %v4296
      %v4489 = vrcp.pop %v4299
      %v4490 = vrcp.pop %v4302
      %v4491 = vrcp.pop %v4305
      %v4492 = vrcp.pop %v4308
      %v4493 = vrcp.pop %v4311
      %v4494 = vrcp.pop %v4314
      %v4495 = vrcp.pop %v4317
      %v4496 = vmul.f32 %v4373, %v4480
      %v4497 = vmul.f32 %v4376, %v4481
      %v4498 = vmul.f32 %v4381, %v4482
      %v4499 = vmul.f32 %v4384, %v4483
      %v4500 = vmul.f32 %v4389, %v4484
      %v4501 = vmul.f32 %v4392, %v4485
      %v4502 = vmul.f32 %v4397, %v4486
      %v4503 = vmul.f32 %v4400, %v4487
      %v4504 = vmul.f32 %v4450, %v4488
      %v4505 = vmul.f32 %v4453, %v4489
      %v4506 = vmul.f32 %v4458, %v4490
      %v4507 = vmul.f32 %v4461, %v4491
      %v4508 = vmul.f32 %v4466, %v4492
      %v4509 = vmul.f32 %v4469, %v4493
      %v4510 = vmul.f32 %v4474, %v4494
      %v4511 = vmul.f32 %v4477, %v4495
      %v4512 = vcombine.high %v4496, 0.0
      %v4514 = vunpack.c.l.s4 1983009808
      %v4515 = vunpack.c.0.s8 %v4514
      %v4516 = vlaneseq
      %v4517 = vshrl.u32 %v4516, 7
      %v4518 = vsub.s32 %v4515, %v4517
      %v4519 = vrot.slane %v4496, %v4518
      %v4521 = vunpack.c.l.s4 1983009808
      %v4522 = vunpack.c.0.s8 %v4521
      %v4523 = vlaneseq
      %v4524 = vshrl.u32 %v4523, 7
      %v4525 = vsub.s32 %v4522, %v4524
      %v4526 = vrot.slane %v4512, %v4525
      %v4527 = vcombine.high %v4504, 0.0
      %v4529 = vunpack.c.l.s4 1983009808
      %v4530 = vunpack.c.0.s8 %v4529
      %v4531 = vlaneseq
      %v4532 = vshrl.u32 %v4531, 7
      %v4533 = vsub.s32 %v4530, %v4532
      %v4534 = vrot.slane %v4504, %v4533
      %v4536 = vunpack.c.l.s4 1983009808
      %v4537 = vunpack.c.0.s8 %v4536
      %v4538 = vlaneseq
      %v4539 = vshrl.u32 %v4538, 7
      %v4540 = vsub.s32 %v4537, %v4539
      %v4541 = vrot.slane %v4527, %v4540
      %v4542 = vcombine.low %v4519, %v4534
      %v4543 = vcombine.high %v4519, %v4534
      %v4545 = vunpack.c.l.s4 1934713408
      %v4546 = vunpack.c.0.s8 %v4545
      %v4547 = vlaneseq
      %v4548 = vshrl.u32 %v4547, 7
      %v4549 = vsub.s32 %v4546, %v4548
      %v4550 = vrot.slane %v4542, %v4549
      %v4552 = vunpack.c.l.s4 1934713408
      %v4553 = vunpack.c.0.s8 %v4552
      %v4554 = vlaneseq
      %v4555 = vshrl.u32 %v4554, 7
      %v4556 = vsub.s32 %v4553, %v4555
      %v4557 = vrot.slane %v4543, %v4556
      %v4558 = vcombine.low %v4526, %v4541
      %v4559 = vcombine.high %v4526, %v4541
      %v4561 = vunpack.c.l.s4 1934713408
      %v4562 = vunpack.c.0.s8 %v4561
      %v4563 = vlaneseq
      %v4564 = vshrl.u32 %v4563, 7
      %v4565 = vsub.s32 %v4562, %v4564
      %v4566 = vrot.slane %v4558, %v4565
      %v4568 = vunpack.c.l.s4 1934713408
      %v4569 = vunpack.c.0.s8 %v4568
      %v4570 = vlaneseq
      %v4571 = vshrl.u32 %v4570, 7
      %v4572 = vsub.s32 %v4569, %v4571
      %v4573 = vrot.slane %v4559, %v4572
      %v4574 = vcombine.high %v4550, 0.0
      %v4575 = vcombine.high %v4557, 0.0
      %v4576 = vcombine.high %v4566, 0.0
      %v4577 = vcombine.high %v4573, 0.0
      %v4578 = vcombine.high %v4497, 0.0
      %v4580 = vunpack.c.l.s4 1983009808
      %v4581 = vunpack.c.0.s8 %v4580
      %v4582 = vlaneseq
      %v4583 = vshrl.u32 %v4582, 7
      %v4584 = vsub.s32 %v4581, %v4583
      %v4585 = vrot.slane %v4497, %v4584
      %v4587 = vunpack.c.l.s4 1983009808
      %v4588 = vunpack.c.0.s8 %v4587
      %v4589 = vlaneseq
      %v4590 = vshrl.u32 %v4589, 7
      %v4591 = vsub.s32 %v4588, %v4590
      %v4592 = vrot.slane %v4578, %v4591
      %v4593 = vcombine.high %v4505, 0.0
      %v4595 = vunpack.c.l.s4 1983009808
      %v4596 = vunpack.c.0.s8 %v4595
      %v4597 = vlaneseq
      %v4598 = vshrl.u32 %v4597, 7
      %v4599 = vsub.s32 %v4596, %v4598
      %v4600 = vrot.slane %v4505, %v4599
      %v4602 = vunpack.c.l.s4 1983009808
      %v4603 = vunpack.c.0.s8 %v4602
      %v4604 = vlaneseq
      %v4605 = vshrl.u32 %v4604, 7
      %v4606 = vsub.s32 %v4603, %v4605
      %v4607 = vrot.slane %v4593, %v4606
      %v4608 = vcombine.low %v4585, %v4600
      %v4609 = vcombine.high %v4585, %v4600
      %v4611 = vunpack.c.l.s4 1934713408
      %v4612 = vunpack.c.0.s8 %v4611
      %v4613 = vlaneseq
      %v4614 = vshrl.u32 %v4613, 7
      %v4615 = vsub.s32 %v4612, %v4614
      %v4616 = vrot.slane %v4608, %v4615
      %v4618 = vunpack.c.l.s4 1934713408
      %v4619 = vunpack.c.0.s8 %v4618
      %v4620 = vlaneseq
      %v4621 = vshrl.u32 %v4620, 7
      %v4622 = vsub.s32 %v4619, %v4621
      %v4623 = vrot.slane %v4609, %v4622
      %v4624 = vcombine.low %v4592, %v4607
      %v4625 = vcombine.high %v4592, %v4607
      %v4627 = vunpack.c.l.s4 1934713408
      %v4628 = vunpack.c.0.s8 %v4627
      %v4629 = vlaneseq
      %v4630 = vshrl.u32 %v4629, 7
      %v4631 = vsub.s32 %v4628, %v4630
      %v4632 = vrot.slane %v4624, %v4631
      %v4634 = vunpack.c.l.s4 1934713408
      %v4635 = vunpack.c.0.s8 %v4634
      %v4636 = vlaneseq
      %v4637 = vshrl.u32 %v4636, 7
      %v4638 = vsub.s32 %v4635, %v4637
      %v4639 = vrot.slane %v4625, %v4638
      %v4640 = vcombine.high %v4616, 0.0
      %v4641 = vcombine.high %v4623, 0.0
      %v4642 = vcombine.high %v4632, 0.0
      %v4643 = vcombine.high %v4639, 0.0
      %v4644 = vcombine.high %v4498, 0.0
      %v4646 = vunpack.c.l.s4 1983009808
      %v4647 = vunpack.c.0.s8 %v4646
      %v4648 = vlaneseq
      %v4649 = vshrl.u32 %v4648, 7
      %v4650 = vsub.s32 %v4647, %v4649
      %v4651 = vrot.slane %v4498, %v4650
      %v4653 = vunpack.c.l.s4 1983009808
      %v4654 = vunpack.c.0.s8 %v4653
      %v4655 = vlaneseq
      %v4656 = vshrl.u32 %v4655, 7
      %v4657 = vsub.s32 %v4654, %v4656
      %v4658 = vrot.slane %v4644, %v4657
      %v4659 = vcombine.high %v4506, 0.0
      %v4661 = vunpack.c.l.s4 1983009808
      %v4662 = vunpack.c.0.s8 %v4661
      %v4663 = vlaneseq
      %v4664 = vshrl.u32 %v4663, 7
      %v4665 = vsub.s32 %v4662, %v4664
      %v4666 = vrot.slane %v4506, %v4665
      %v4668 = vunpack.c.l.s4 1983009808
      %v4669 = vunpack.c.0.s8 %v4668
      %v4670 = vlaneseq
      %v4671 = vshrl.u32 %v4670, 7
      %v4672 = vsub.s32 %v4669, %v4671
      %v4673 = vrot.slane %v4659, %v4672
      %v4674 = vcombine.low %v4651, %v4666
      %v4675 = vcombine.high %v4651, %v4666
      %v4677 = vunpack.c.l.s4 1934713408
      %v4678 = vunpack.c.0.s8 %v4677
      %v4679 = vlaneseq
      %v4680 = vshrl.u32 %v4679, 7
      %v4681 = vsub.s32 %v4678, %v4680
      %v4682 = vrot.slane %v4674, %v4681
      %v4684 = vunpack.c.l.s4 1934713408
      %v4685 = vunpack.c.0.s8 %v4684
      %v4686 = vlaneseq
      %v4687 = vshrl.u32 %v4686, 7
      %v4688 = vsub.s32 %v4685, %v4687
      %v4689 = vrot.slane %v4675, %v4688
      %v4690 = vcombine.low %v4658, %v4673
      %v4691 = vcombine.high %v4658, %v4673
      %v4693 = vunpack.c.l.s4 1934713408
      %v4694 = vunpack.c.0.s8 %v4693
      %v4695 = vlaneseq
      %v4696 = vshrl.u32 %v4695, 7
      %v4697 = vsub.s32 %v4694, %v4696
      %v4698 = vrot.slane %v4690, %v4697
      %v4700 = vunpack.c.l.s4 1934713408
      %v4701 = vunpack.c.0.s8 %v4700
      %v4702 = vlaneseq
      %v4703 = vshrl.u32 %v4702, 7
      %v4704 = vsub.s32 %v4701, %v4703
      %v4705 = vrot.slane %v4691, %v4704
      %v4706 = vcombine.high %v4682, 0.0
      %v4707 = vcombine.high %v4689, 0.0
      %v4708 = vcombine.high %v4698, 0.0
      %v4709 = vcombine.high %v4705, 0.0
      %v4710 = vcombine.high %v4499, 0.0
      %v4712 = vunpack.c.l.s4 1983009808
      %v4713 = vunpack.c.0.s8 %v4712
      %v4714 = vlaneseq
      %v4715 = vshrl.u32 %v4714, 7
      %v4716 = vsub.s32 %v4713, %v4715
      %v4717 = vrot.slane %v4499, %v4716
      %v4719 = vunpack.c.l.s4 1983009808
      %v4720 = vunpack.c.0.s8 %v4719
      %v4721 = vlaneseq
      %v4722 = vshrl.u32 %v4721, 7
      %v4723 = vsub.s32 %v4720, %v4722
      %v4724 = vrot.slane %v4710, %v4723
      %v4725 = vcombine.high %v4507, 0.0
      %v4727 = vunpack.c.l.s4 1983009808
      %v4728 = vunpack.c.0.s8 %v4727
      %v4729 = vlaneseq
      %v4730 = vshrl.u32 %v4729, 7
      %v4731 = vsub.s32 %v4728, %v4730
      %v4732 = vrot.slane %v4507, %v4731
      %v4734 = vunpack.c.l.s4 1983009808
      %v4735 = vunpack.c.0.s8 %v4734
      %v4736 = vlaneseq
      %v4737 = vshrl.u32 %v4736, 7
      %v4738 = vsub.s32 %v4735, %v4737
      %v4739 = vrot.slane %v4725, %v4738
      %v4740 = vcombine.low %v4717, %v4732
      %v4741 = vcombine.high %v4717, %v4732
      %v4743 = vunpack.c.l.s4 1934713408
      %v4744 = vunpack.c.0.s8 %v4743
      %v4745 = vlaneseq
      %v4746 = vshrl.u32 %v4745, 7
      %v4747 = vsub.s32 %v4744, %v4746
      %v4748 = vrot.slane %v4740, %v4747
      %v4750 = vunpack.c.l.s4 1934713408
      %v4751 = vunpack.c.0.s8 %v4750
      %v4752 = vlaneseq
      %v4753 = vshrl.u32 %v4752, 7
      %v4754 = vsub.s32 %v4751, %v4753
      %v4755 = vrot.slane %v4741, %v4754
      %v4756 = vcombine.low %v4724, %v4739
      %v4757 = vcombine.high %v4724, %v4739
      %v4759 = vunpack.c.l.s4 1934713408
      %v4760 = vunpack.c.0.s8 %v4759
      %v4761 = vlaneseq
      %v4762 = vshrl.u32 %v4761, 7
      %v4763 = vsub.s32 %v4760, %v4762
      %v4764 = vrot.slane %v4756, %v4763
      %v4766 = vunpack.c.l.s4 1934713408
      %v4767 = vunpack.c.0.s8 %v4766
      %v4768 = vlaneseq
      %v4769 = vshrl.u32 %v4768, 7
      %v4770 = vsub.s32 %v4767, %v4769
      %v4771 = vrot.slane %v4757, %v4770
      %v4772 = vcombine.high %v4748, 0.0
      %v4773 = vcombine.high %v4755, 0.0
      %v4774 = vcombine.high %v4764, 0.0
      %v4775 = vcombine.high %v4771, 0.0
      %v4776 = vcombine.high %v4500, 0.0
      %v4778 = vunpack.c.l.s4 1983009808
      %v4779 = vunpack.c.0.s8 %v4778
      %v4780 = vlaneseq
      %v4781 = vshrl.u32 %v4780, 7
      %v4782 = vsub.s32 %v4779, %v4781
      %v4783 = vrot.slane %v4500, %v4782
      %v4785 = vunpack.c.l.s4 1983009808
      %v4786 = vunpack.c.0.s8 %v4785
      %v4787 = vlaneseq
      %v4788 = vshrl.u32 %v4787, 7
      %v4789 = vsub.s32 %v4786, %v4788
      %v4790 = vrot.slane %v4776, %v4789
      %v4791 = vcombine.high %v4508, 0.0
      %v4793 = vunpack.c.l.s4 1983009808
      %v4794 = vunpack.c.0.s8 %v4793
      %v4795 = vlaneseq
      %v4796 = vshrl.u32 %v4795, 7
      %v4797 = vsub.s32 %v4794, %v4796
      %v4798 = vrot.slane %v4508, %v4797
      %v4800 = vunpack.c.l.s4 1983009808
      %v4801 = vunpack.c.0.s8 %v4800
      %v4802 = vlaneseq
      %v4803 = vshrl.u32 %v4802, 7
      %v4804 = vsub.s32 %v4801, %v4803
      %v4805 = vrot.slane %v4791, %v4804
      %v4806 = vcombine.low %v4783, %v4798
      %v4807 = vcombine.high %v4783, %v4798
      %v4809 = vunpack.c.l.s4 1934713408
      %v4810 = vunpack.c.0.s8 %v4809
      %v4811 = vlaneseq
      %v4812 = vshrl.u32 %v4811, 7
      %v4813 = vsub.s32 %v4810, %v4812
      %v4814 = vrot.slane %v4806, %v4813
      %v4816 = vunpack.c.l.s4 1934713408
      %v4817 = vunpack.c.0.s8 %v4816
      %v4818 = vlaneseq
      %v4819 = vshrl.u32 %v4818, 7
      %v4820 = vsub.s32 %v4817, %v4819
      %v4821 = vrot.slane %v4807, %v4820
      %v4822 = vcombine.low %v4790, %v4805
      %v4823 = vcombine.high %v4790, %v4805
      %v4825 = vunpack.c.l.s4 1934713408
      %v4826 = vunpack.c.0.s8 %v4825
      %v4827 = vlaneseq
      %v4828 = vshrl.u32 %v4827, 7
      %v4829 = vsub.s32 %v4826, %v4828
      %v4830 = vrot.slane %v4822, %v4829
      %v4832 = vunpack.c.l.s4 1934713408
      %v4833 = vunpack.c.0.s8 %v4832
      %v4834 = vlaneseq
      %v4835 = vshrl.u32 %v4834, 7
      %v4836 = vsub.s32 %v4833, %v4835
      %v4837 = vrot.slane %v4823, %v4836
      %v4838 = vcombine.high %v4814, 0.0
      %v4839 = vcombine.high %v4821, 0.0
      %v4840 = vcombine.high %v4830, 0.0
      %v4841 = vcombine.high %v4837, 0.0
      %v4842 = vcombine.high %v4501, 0.0
      %v4844 = vunpack.c.l.s4 1983009808
      %v4845 = vunpack.c.0.s8 %v4844
      %v4846 = vlaneseq
      %v4847 = vshrl.u32 %v4846, 7
      %v4848 = vsub.s32 %v4845, %v4847
      %v4849 = vrot.slane %v4501, %v4848
      %v4851 = vunpack.c.l.s4 1983009808
      %v4852 = vunpack.c.0.s8 %v4851
      %v4853 = vlaneseq
      %v4854 = vshrl.u32 %v4853, 7
      %v4855 = vsub.s32 %v4852, %v4854
      %v4856 = vrot.slane %v4842, %v4855
      %v4857 = vcombine.high %v4509, 0.0
      %v4859 = vunpack.c.l.s4 1983009808
      %v4860 = vunpack.c.0.s8 %v4859
      %v4861 = vlaneseq
      %v4862 = vshrl.u32 %v4861, 7
      %v4863 = vsub.s32 %v4860, %v4862
      %v4864 = vrot.slane %v4509, %v4863
      %v4866 = vunpack.c.l.s4 1983009808
      %v4867 = vunpack.c.0.s8 %v4866
      %v4868 = vlaneseq
      %v4869 = vshrl.u32 %v4868, 7
      %v4870 = vsub.s32 %v4867, %v4869
      %v4871 = vrot.slane %v4857, %v4870
      %v4872 = vcombine.low %v4849, %v4864
      %v4873 = vcombine.high %v4849, %v4864
      %v4875 = vunpack.c.l.s4 1934713408
      %v4876 = vunpack.c.0.s8 %v4875
      %v4877 = vlaneseq
      %v4878 = vshrl.u32 %v4877, 7
      %v4879 = vsub.s32 %v4876, %v4878
      %v4880 = vrot.slane %v4872, %v4879
      %v4882 = vunpack.c.l.s4 1934713408
      %v4883 = vunpack.c.0.s8 %v4882
      %v4884 = vlaneseq
      %v4885 = vshrl.u32 %v4884, 7
      %v4886 = vsub.s32 %v4883, %v4885
      %v4887 = vrot.slane %v4873, %v4886
      %v4888 = vcombine.low %v4856, %v4871
      %v4889 = vcombine.high %v4856, %v4871
      %v4891 = vunpack.c.l.s4 1934713408
      %v4892 = vunpack.c.0.s8 %v4891
      %v4893 = vlaneseq
      %v4894 = vshrl.u32 %v4893, 7
      %v4895 = vsub.s32 %v4892, %v4894
      %v4896 = vrot.slane %v4888, %v4895
      %v4898 = vunpack.c.l.s4 1934713408
      %v4899 = vunpack.c.0.s8 %v4898
      %v4900 = vlaneseq
      %v4901 = vshrl.u32 %v4900, 7
      %v4902 = vsub.s32 %v4899, %v4901
      %v4903 = vrot.slane %v4889, %v4902
      %v4904 = vcombine.high %v4880, 0.0
      %v4905 = vcombine.high %v4887, 0.0
      %v4906 = vcombine.high %v4896, 0.0
      %v4907 = vcombine.high %v4903, 0.0
      %v4908 = vcombine.high %v4502, 0.0
      %v4910 = vunpack.c.l.s4 1983009808
      %v4911 = vunpack.c.0.s8 %v4910
      %v4912 = vlaneseq
      %v4913 = vshrl.u32 %v4912, 7
      %v4914 = vsub.s32 %v4911, %v4913
      %v4915 = vrot.slane %v4502, %v4914
      %v4917 = vunpack.c.l.s4 1983009808
      %v4918 = vunpack.c.0.s8 %v4917
      %v4919 = vlaneseq
      %v4920 = vshrl.u32 %v4919, 7
      %v4921 = vsub.s32 %v4918, %v4920
      %v4922 = vrot.slane %v4908, %v4921
      %v4923 = vcombine.high %v4510, 0.0
      %v4925 = vunpack.c.l.s4 1983009808
      %v4926 = vunpack.c.0.s8 %v4925
      %v4927 = vlaneseq
      %v4928 = vshrl.u32 %v4927, 7
      %v4929 = vsub.s32 %v4926, %v4928
      %v4930 = vrot.slane %v4510, %v4929
      %v4932 = vunpack.c.l.s4 1983009808
      %v4933 = vunpack.c.0.s8 %v4932
      %v4934 = vlaneseq
      %v4935 = vshrl.u32 %v4934, 7
      %v4936 = vsub.s32 %v4933, %v4935
      %v4937 = vrot.slane %v4923, %v4936
      %v4938 = vcombine.low %v4915, %v4930
      %v4939 = vcombine.high %v4915, %v4930
      %v4941 = vunpack.c.l.s4 1934713408
      %v4942 = vunpack.c.0.s8 %v4941
      %v4943 = vlaneseq
      %v4944 = vshrl.u32 %v4943, 7
      %v4945 = vsub.s32 %v4942, %v4944
      %v4946 = vrot.slane %v4938, %v4945
      %v4948 = vunpack.c.l.s4 1934713408
      %v4949 = vunpack.c.0.s8 %v4948
      %v4950 = vlaneseq
      %v4951 = vshrl.u32 %v4950, 7
      %v4952 = vsub.s32 %v4949, %v4951
      %v4953 = vrot.slane %v4939, %v4952
      %v4954 = vcombine.low %v4922, %v4937
      %v4955 = vcombine.high %v4922, %v4937
      %v4957 = vunpack.c.l.s4 1934713408
      %v4958 = vunpack.c.0.s8 %v4957
      %v4959 = vlaneseq
      %v4960 = vshrl.u32 %v4959, 7
      %v4961 = vsub.s32 %v4958, %v4960
      %v4962 = vrot.slane %v4954, %v4961
      %v4964 = vunpack.c.l.s4 1934713408
      %v4965 = vunpack.c.0.s8 %v4964
      %v4966 = vlaneseq
      %v4967 = vshrl.u32 %v4966, 7
      %v4968 = vsub.s32 %v4965, %v4967
      %v4969 = vrot.slane %v4955, %v4968
      %v4970 = vcombine.high %v4946, 0.0
      %v4971 = vcombine.high %v4953, 0.0
      %v4972 = vcombine.high %v4962, 0.0
      %v4973 = vcombine.high %v4969, 0.0
      %v4974 = vcombine.high %v4503, 0.0
      %v4976 = vunpack.c.l.s4 1983009808
      %v4977 = vunpack.c.0.s8 %v4976
      %v4978 = vlaneseq
      %v4979 = vshrl.u32 %v4978, 7
      %v4980 = vsub.s32 %v4977, %v4979
      %v4981 = vrot.slane %v4503, %v4980
      %v4983 = vunpack.c.l.s4 1983009808
      %v4984 = vunpack.c.0.s8 %v4983
      %v4985 = vlaneseq
      %v4986 = vshrl.u32 %v4985, 7
      %v4987 = vsub.s32 %v4984, %v4986
      %v4988 = vrot.slane %v4974, %v4987
      %v4989 = vcombine.high %v4511, 0.0
      %v4991 = vunpack.c.l.s4 1983009808
      %v4992 = vunpack.c.0.s8 %v4991
      %v4993 = vlaneseq
      %v4994 = vshrl.u32 %v4993, 7
      %v4995 = vsub.s32 %v4992, %v4994
      %v4996 = vrot.slane %v4511, %v4995
      %v4998 = vunpack.c.l.s4 1983009808
      %v4999 = vunpack.c.0.s8 %v4998
      %v5000 = vlaneseq
      %v5001 = vshrl.u32 %v5000, 7
      %v5002 = vsub.s32 %v4999, %v5001
      %v5003 = vrot.slane %v4989, %v5002
      %v5004 = vcombine.low %v4981, %v4996
      %v5005 = vcombine.high %v4981, %v4996
      %v5007 = vunpack.c.l.s4 1934713408
      %v5008 = vunpack.c.0.s8 %v5007
      %v5009 = vlaneseq
      %v5010 = vshrl.u32 %v5009, 7
      %v5011 = vsub.s32 %v5008, %v5010
      %v5012 = vrot.slane %v5004, %v5011
      %v5014 = vunpack.c.l.s4 1934713408
      %v5015 = vunpack.c.0.s8 %v5014
      %v5016 = vlaneseq
      %v5017 = vshrl.u32 %v5016, 7
      %v5018 = vsub.s32 %v5015, %v5017
      %v5019 = vrot.slane %v5005, %v5018
      %v5020 = vcombine.low %v4988, %v5003
      %v5021 = vcombine.high %v4988, %v5003
      %v5023 = vunpack.c.l.s4 1934713408
      %v5024 = vunpack.c.0.s8 %v5023
      %v5025 = vlaneseq
      %v5026 = vshrl.u32 %v5025, 7
      %v5027 = vsub.s32 %v5024, %v5026
      %v5028 = vrot.slane %v5020, %v5027
      %v5030 = vunpack.c.l.s4 1934713408
      %v5031 = vunpack.c.0.s8 %v5030
      %v5032 = vlaneseq
      %v5033 = vshrl.u32 %v5032, 7
      %v5034 = vsub.s32 %v5031, %v5033
      %v5035 = vrot.slane %v5021, %v5034
      %v5036 = vcombine.high %v5012, 0.0
      %v5037 = vcombine.high %v5019, 0.0
      %v5038 = vcombine.high %v5028, 0.0
      %v5039 = vcombine.high %v5035, 0.0
      %v5040 = vcombine.low %v4550, %v4557
      %v5042 = vunpack.c.l.s4 1983009808
      %v5043 = vunpack.c.0.s8 %v5042
      %v5044 = vlaneseq
      %v5045 = vshrl.u32 %v5044, 7
      %v5046 = vsub.s32 %v5043, %v5045
      %v5047 = vrot.slane %v5040, %v5046
      %v5048 = vcombine.low %v4574, %v4575
      %v5050 = vunpack.c.l.s4 1983009808
      %v5051 = vunpack.c.0.s8 %v5050
      %v5052 = vlaneseq
      %v5053 = vshrl.u32 %v5052, 7
      %v5054 = vsub.s32 %v5051, %v5053
      %v5055 = vrot.slane %v5048, %v5054
      %v5056 = vcombine.low %v4566, %v4573
      %v5058 = vunpack.c.l.s4 1983009808
      %v5059 = vunpack.c.0.s8 %v5058
      %v5060 = vlaneseq
      %v5061 = vshrl.u32 %v5060, 7
      %v5062 = vsub.s32 %v5059, %v5061
      %v5063 = vrot.slane %v5056, %v5062
      %v5064 = vcombine.low %v4576, %v4577
      %v5066 = vunpack.c.l.s4 1983009808
      %v5067 = vunpack.c.0.s8 %v5066
      %v5068 = vlaneseq
      %v5069 = vshrl.u32 %v5068, 7
      %v5070 = vsub.s32 %v5067, %v5069
      %v5071 = vrot.slane %v5064, %v5070
      %v5072 = vcombine.low %v5047, %v5055
      %v5074 = vunpack.c.l.s4 1934713408
      %v5075 = vunpack.c.0.s8 %v5074
      %v5076 = vlaneseq
      %v5077 = vshrl.u32 %v5076, 7
      %v5078 = vsub.s32 %v5075, %v5077
      %v5079 = vrot.slane %v5072, %v5078
      %v5080 = vcombine.low %v5063, %v5071
      %v5082 = vunpack.c.l.s4 1934713408
      %v5083 = vunpack.c.0.s8 %v5082
      %v5084 = vlaneseq
      %v5085 = vshrl.u32 %v5084, 7
      %v5086 = vsub.s32 %v5083, %v5085
      %v5087 = vrot.slane %v5080, %v5086
      %v5088 = vcombine.low %v5079, %v5087
      %v5089 = vcombine.high %v5079, %v5087
      %v5090 = vcombine.low %v4616, %v4623
      %v5092 = vunpack.c.l.s4 1983009808
      %v5093 = vunpack.c.0.s8 %v5092
      %v5094 = vlaneseq
      %v5095 = vshrl.u32 %v5094, 7
      %v5096 = vsub.s32 %v5093, %v5095
      %v5097 = vrot.slane %v5090, %v5096
      %v5098 = vcombine.low %v4640, %v4641
      %v5100 = vunpack.c.l.s4 1983009808
      %v5101 = vunpack.c.0.s8 %v5100
      %v5102 = vlaneseq
      %v5103 = vshrl.u32 %v5102, 7
      %v5104 = vsub.s32 %v5101, %v5103
      %v5105 = vrot.slane %v5098, %v5104
      %v5106 = vcombine.low %v4632, %v4639
      %v5108 = vunpack.c.l.s4 1983009808
      %v5109 = vunpack.c.0.s8 %v5108
      %v5110 = vlaneseq
      %v5111 = vshrl.u32 %v5110, 7
      %v5112 = vsub.s32 %v5109, %v5111
      %v5113 = vrot.slane %v5106, %v5112
      %v5114 = vcombine.low %v4642, %v4643
      %v5116 = vunpack.c.l.s4 1983009808
      %v5117 = vunpack.c.0.s8 %v5116
      %v5118 = vlaneseq
      %v5119 = vshrl.u32 %v5118, 7
      %v5120 = vsub.s32 %v5117, %v5119
      %v5121 = vrot.slane %v5114, %v5120
      %v5122 = vcombine.low %v5097, %v5105
      %v5124 = vunpack.c.l.s4 1934713408
      %v5125 = vunpack.c.0.s8 %v5124
      %v5126 = vlaneseq
      %v5127 = vshrl.u32 %v5126, 7
      %v5128 = vsub.s32 %v5125, %v5127
      %v5129 = vrot.slane %v5122, %v5128
      %v5130 = vcombine.low %v5113, %v5121
      %v5132 = vunpack.c.l.s4 1934713408
      %v5133 = vunpack.c.0.s8 %v5132
      %v5134 = vlaneseq
      %v5135 = vshrl.u32 %v5134, 7
      %v5136 = vsub.s32 %v5133, %v5135
      %v5137 = vrot.slane %v5130, %v5136
      %v5138 = vcombine.low %v5129, %v5137
      %v5139 = vcombine.high %v5129, %v5137
      %v5140 = vcombine.low %v4682, %v4689
      %v5142 = vunpack.c.l.s4 1983009808
      %v5143 = vunpack.c.0.s8 %v5142
      %v5144 = vlaneseq
      %v5145 = vshrl.u32 %v5144, 7
      %v5146 = vsub.s32 %v5143, %v5145
      %v5147 = vrot.slane %v5140, %v5146
      %v5148 = vcombine.low %v4706, %v4707
      %v5150 = vunpack.c.l.s4 1983009808
      %v5151 = vunpack.c.0.s8 %v5150
      %v5152 = vlaneseq
      %v5153 = vshrl.u32 %v5152, 7
      %v5154 = vsub.s32 %v5151, %v5153
      %v5155 = vrot.slane %v5148, %v5154
      %v5156 = vcombine.low %v4698, %v4705
      %v5158 = vunpack.c.l.s4 1983009808
      %v5159 = vunpack.c.0.s8 %v5158
      %v5160 = vlaneseq
      %v5161 = vshrl.u32 %v5160, 7
      %v5162 = vsub.s32 %v5159, %v5161
      %v5163 = vrot.slane %v5156, %v5162
      %v5164 = vcombine.low %v4708, %v4709
      %v5166 = vunpack.c.l.s4 1983009808
      %v5167 = vunpack.c.0.s8 %v5166
      %v5168 = vlaneseq
      %v5169 = vshrl.u32 %v5168, 7
      %v5170 = vsub.s32 %v5167, %v5169
      %v5171 = vrot.slane %v5164, %v5170
      %v5172 = vcombine.low %v5147, %v5155
      %v5174 = vunpack.c.l.s4 1934713408
      %v5175 = vunpack.c.0.s8 %v5174
      %v5176 = vlaneseq
      %v5177 = vshrl.u32 %v5176, 7
      %v5178 = vsub.s32 %v5175, %v5177
      %v5179 = vrot.slane %v5172, %v5178
      %v5180 = vcombine.low %v5163, %v5171
      %v5182 = vunpack.c.l.s4 1934713408
      %v5183 = vunpack.c.0.s8 %v5182
      %v5184 = vlaneseq
      %v5185 = vshrl.u32 %v5184, 7
      %v5186 = vsub.s32 %v5183, %v5185
      %v5187 = vrot.slane %v5180, %v5186
      %v5188 = vcombine.low %v5179, %v5187
      %v5189 = vcombine.high %v5179, %v5187
      %v5190 = vcombine.low %v4748, %v4755
      %v5192 = vunpack.c.l.s4 1983009808
      %v5193 = vunpack.c.0.s8 %v5192
      %v5194 = vlaneseq
      %v5195 = vshrl.u32 %v5194, 7
      %v5196 = vsub.s32 %v5193, %v5195
      %v5197 = vrot.slane %v5190, %v5196
      %v5198 = vcombine.low %v4772, %v4773
      %v5200 = vunpack.c.l.s4 1983009808
      %v5201 = vunpack.c.0.s8 %v5200
      %v5202 = vlaneseq
      %v5203 = vshrl.u32 %v5202, 7
      %v5204 = vsub.s32 %v5201, %v5203
      %v5205 = vrot.slane %v5198, %v5204
      %v5206 = vcombine.low %v4764, %v4771
      %v5208 = vunpack.c.l.s4 1983009808
      %v5209 = vunpack.c.0.s8 %v5208
      %v5210 = vlaneseq
      %v5211 = vshrl.u32 %v5210, 7
      %v5212 = vsub.s32 %v5209, %v5211
      %v5213 = vrot.slane %v5206, %v5212
      %v5214 = vcombine.low %v4774, %v4775
      %v5216 = vunpack.c.l.s4 1983009808
      %v5217 = vunpack.c.0.s8 %v5216
      %v5218 = vlaneseq
      %v5219 = vshrl.u32 %v5218, 7
      %v5220 = vsub.s32 %v5217, %v5219
      %v5221 = vrot.slane %v5214, %v5220
      %v5222 = vcombine.low %v5197, %v5205
      %v5224 = vunpack.c.l.s4 1934713408
      %v5225 = vunpack.c.0.s8 %v5224
      %v5226 = vlaneseq
      %v5227 = vshrl.u32 %v5226, 7
      %v5228 = vsub.s32 %v5225, %v5227
      %v5229 = vrot.slane %v5222, %v5228
      %v5230 = vcombine.low %v5213, %v5221
      %v5232 = vunpack.c.l.s4 1934713408
      %v5233 = vunpack.c.0.s8 %v5232
      %v5234 = vlaneseq
      %v5235 = vshrl.u32 %v5234, 7
      %v5236 = vsub.s32 %v5233, %v5235
      %v5237 = vrot.slane %v5230, %v5236
      %v5238 = vcombine.low %v5229, %v5237
      %v5239 = vcombine.high %v5229, %v5237
      %v5240 = vcombine.low %v4814, %v4821
      %v5242 = vunpack.c.l.s4 1983009808
      %v5243 = vunpack.c.0.s8 %v5242
      %v5244 = vlaneseq
      %v5245 = vshrl.u32 %v5244, 7
      %v5246 = vsub.s32 %v5243, %v5245
      %v5247 = vrot.slane %v5240, %v5246
      %v5248 = vcombine.low %v4838, %v4839
      %v5250 = vunpack.c.l.s4 1983009808
      %v5251 = vunpack.c.0.s8 %v5250
      %v5252 = vlaneseq
      %v5253 = vshrl.u32 %v5252, 7
      %v5254 = vsub.s32 %v5251, %v5253
      %v5255 = vrot.slane %v5248, %v5254
      %v5256 = vcombine.low %v4830, %v4837
      %v5258 = vunpack.c.l.s4 1983009808
      %v5259 = vunpack.c.0.s8 %v5258
      %v5260 = vlaneseq
      %v5261 = vshrl.u32 %v5260, 7
      %v5262 = vsub.s32 %v5259, %v5261
      %v5263 = vrot.slane %v5256, %v5262
      %v5264 = vcombine.low %v4840, %v4841
      %v5266 = vunpack.c.l.s4 1983009808
      %v5267 = vunpack.c.0.s8 %v5266
      %v5268 = vlaneseq
      %v5269 = vshrl.u32 %v5268, 7
      %v5270 = vsub.s32 %v5267, %v5269
      %v5271 = vrot.slane %v5264, %v5270
      %v5272 = vcombine.low %v5247, %v5255
      %v5274 = vunpack.c.l.s4 1934713408
      %v5275 = vunpack.c.0.s8 %v5274
      %v5276 = vlaneseq
      %v5277 = vshrl.u32 %v5276, 7
      %v5278 = vsub.s32 %v5275, %v5277
      %v5279 = vrot.slane %v5272, %v5278
      %v5280 = vcombine.low %v5263, %v5271
      %v5282 = vunpack.c.l.s4 1934713408
      %v5283 = vunpack.c.0.s8 %v5282
      %v5284 = vlaneseq
      %v5285 = vshrl.u32 %v5284, 7
      %v5286 = vsub.s32 %v5283, %v5285
      %v5287 = vrot.slane %v5280, %v5286
      %v5288 = vcombine.low %v5279, %v5287
      %v5289 = vcombine.high %v5279, %v5287
      %v5290 = vcombine.low %v4880, %v4887
      %v5292 = vunpack.c.l.s4 1983009808
      %v5293 = vunpack.c.0.s8 %v5292
      %v5294 = vlaneseq
      %v5295 = vshrl.u32 %v5294, 7
      %v5296 = vsub.s32 %v5293, %v5295
      %v5297 = vrot.slane %v5290, %v5296
      %v5298 = vcombine.low %v4904, %v4905
      %v5300 = vunpack.c.l.s4 1983009808
      %v5301 = vunpack.c.0.s8 %v5300
      %v5302 = vlaneseq
      %v5303 = vshrl.u32 %v5302, 7
      %v5304 = vsub.s32 %v5301, %v5303
      %v5305 = vrot.slane %v5298, %v5304
      %v5306 = vcombine.low %v4896, %v4903
      %v5308 = vunpack.c.l.s4 1983009808
      %v5309 = vunpack.c.0.s8 %v5308
      %v5310 = vlaneseq
      %v5311 = vshrl.u32 %v5310, 7
      %v5312 = vsub.s32 %v5309, %v5311
      %v5313 = vrot.slane %v5306, %v5312
      %v5314 = vcombine.low %v4906, %v4907
      %v5316 = vunpack.c.l.s4 1983009808
      %v5317 = vunpack.c.0.s8 %v5316
      %v5318 = vlaneseq
      %v5319 = vshrl.u32 %v5318, 7
      %v5320 = vsub.s32 %v5317, %v5319
      %v5321 = vrot.slane %v5314, %v5320
      %v5322 = vcombine.low %v5297, %v5305
      %v5324 = vunpack.c.l.s4 1934713408
      %v5325 = vunpack.c.0.s8 %v5324
      %v5326 = vlaneseq
      %v5327 = vshrl.u32 %v5326, 7
      %v5328 = vsub.s32 %v5325, %v5327
      %v5329 = vrot.slane %v5322, %v5328
      %v5330 = vcombine.low %v5313, %v5321
      %v5332 = vunpack.c.l.s4 1934713408
      %v5333 = vunpack.c.0.s8 %v5332
      %v5334 = vlaneseq
      %v5335 = vshrl.u32 %v5334, 7
      %v5336 = vsub.s32 %v5333, %v5335
      %v5337 = vrot.slane %v5330, %v5336
      %v5338 = vcombine.low %v5329, %v5337
      %v5339 = vcombine.high %v5329, %v5337
      %v5340 = vcombine.low %v4946, %v4953
      %v5342 = vunpack.c.l.s4 1983009808
      %v5343 = vunpack.c.0.s8 %v5342
      %v5344 = vlaneseq
      %v5345 = vshrl.u32 %v5344, 7
      %v5346 = vsub.s32 %v5343, %v5345
      %v5347 = vrot.slane %v5340, %v5346
      %v5348 = vcombine.low %v4970, %v4971
      %v5350 = vunpack.c.l.s4 1983009808
      %v5351 = vunpack.c.0.s8 %v5350
      %v5352 = vlaneseq
      %v5353 = vshrl.u32 %v5352, 7
      %v5354 = vsub.s32 %v5351, %v5353
      %v5355 = vrot.slane %v5348, %v5354
      %v5356 = vcombine.low %v4962, %v4969
      %v5358 = vunpack.c.l.s4 1983009808
      %v5359 = vunpack.c.0.s8 %v5358
      %v5360 = vlaneseq
      %v5361 = vshrl.u32 %v5360, 7
      %v5362 = vsub.s32 %v5359, %v5361
      %v5363 = vrot.slane %v5356, %v5362
      %v5364 = vcombine.low %v4972, %v4973
      %v5366 = vunpack.c.l.s4 1983009808
      %v5367 = vunpack.c.0.s8 %v5366
      %v5368 = vlaneseq
      %v5369 = vshrl.u32 %v5368, 7
      %v5370 = vsub.s32 %v5367, %v5369
      %v5371 = vrot.slane %v5364, %v5370
      %v5372 = vcombine.low %v5347, %v5355
      %v5374 = vunpack.c.l.s4 1934713408
      %v5375 = vunpack.c.0.s8 %v5374
      %v5376 = vlaneseq
      %v5377 = vshrl.u32 %v5376, 7
      %v5378 = vsub.s32 %v5375, %v5377
      %v5379 = vrot.slane %v5372, %v5378
      %v5380 = vcombine.low %v5363, %v5371
      %v5382 = vunpack.c.l.s4 1934713408
      %v5383 = vunpack.c.0.s8 %v5382
      %v5384 = vlaneseq
      %v5385 = vshrl.u32 %v5384, 7
      %v5386 = vsub.s32 %v5383, %v5385
      %v5387 = vrot.slane %v5380, %v5386
      %v5388 = vcombine.low %v5379, %v5387
      %v5389 = vcombine.high %v5379, %v5387
      %v5390 = vcombine.low %v5012, %v5019
      %v5392 = vunpack.c.l.s4 1983009808
      %v5393 = vunpack.c.0.s8 %v5392
      %v5394 = vlaneseq
      %v5395 = vshrl.u32 %v5394, 7
      %v5396 = vsub.s32 %v5393, %v5395
      %v5397 = vrot.slane %v5390, %v5396
      %v5398 = vcombine.low %v5036, %v5037
      %v5400 = vunpack.c.l.s4 1983009808
      %v5401 = vunpack.c.0.s8 %v5400
      %v5402 = vlaneseq
      %v5403 = vshrl.u32 %v5402, 7
      %v5404 = vsub.s32 %v5401, %v5403
      %v5405 = vrot.slane %v5398, %v5404
      %v5406 = vcombine.low %v5028, %v5035
      %v5408 = vunpack.c.l.s4 1983009808
      %v5409 = vunpack.c.0.s8 %v5408
      %v5410 = vlaneseq
      %v5411 = vshrl.u32 %v5410, 7
      %v5412 = vsub.s32 %v5409, %v5411
      %v5413 = vrot.slane %v5406, %v5412
      %v5414 = vcombine.low %v5038, %v5039
      %v5416 = vunpack.c.l.s4 1983009808
      %v5417 = vunpack.c.0.s8 %v5416
      %v5418 = vlaneseq
      %v5419 = vshrl.u32 %v5418, 7
      %v5420 = vsub.s32 %v5417, %v5419
      %v5421 = vrot.slane %v5414, %v5420
      %v5422 = vcombine.low %v5397, %v5405
      %v5424 = vunpack.c.l.s4 1934713408
      %v5425 = vunpack.c.0.s8 %v5424
      %v5426 = vlaneseq
      %v5427 = vshrl.u32 %v5426, 7
      %v5428 = vsub.s32 %v5425, %v5427
      %v5429 = vrot.slane %v5422, %v5428
      %v5430 = vcombine.low %v5413, %v5421
      %v5432 = vunpack.c.l.s4 1934713408
      %v5433 = vunpack.c.0.s8 %v5432
      %v5434 = vlaneseq
      %v5435 = vshrl.u32 %v5434, 7
      %v5436 = vsub.s32 %v5433, %v5435
      %v5437 = vrot.slane %v5430, %v5436
      %v5438 = vcombine.low %v5429, %v5437
      %v5439 = vcombine.high %v5429, %v5437
      %5448 = vrot.lane.b32.xlu0 %v5089, 16
      %v5449 = vpop.permute.xlu0 %5448
      %5450 = vrot.lane.b32.xlu0 %v5139, 16
      %v5451 = vpop.permute.xlu0 %5450
      %5452 = vrot.lane.b32.xlu0 %v5189, 16
      %v5453 = vpop.permute.xlu0 %5452
      %5454 = vrot.lane.b32.xlu0 %v5239, 16
      %v5455 = vpop.permute.xlu0 %5454
      %5456 = vrot.lane.b32.xlu0 %v5289, 16
      %v5457 = vpop.permute.xlu0 %5456
      %5458 = vrot.lane.b32.xlu0 %v5339, 16
      %v5459 = vpop.permute.xlu0 %5458
      %5460 = vrot.lane.b32.xlu0 %v5389, 16
      %v5461 = vpop.permute.xlu0 %5460
      %5462 = vrot.lane.b32.xlu0 %v5439, 16
      %v5463 = vpop.permute.xlu0 %5462
      %v5472 = vsel %vm3994, %v5088, %v5449
      %v5473 = vsel %vm3994, %v5138, %v5451
      %v5474 = vsel %vm3994, %v5188, %v5453
      %v5475 = vsel %vm3994, %v5238, %v5455
      %v5476 = vsel %vm3994, %v5288, %v5457
      %v5477 = vsel %vm3994, %v5338, %v5459
      %v5478 = vsel %vm3994, %v5388, %v5461
      %v5479 = vsel %vm3994, %v5438, %v5463
      %v5480 = vpack.c.bf16 %v5473, %v5472
      %v5481 = vpack.c.bf16 %v5475, %v5474
      %v5482 = vpack.c.bf16 %v5477, %v5476
      %v5483 = vpack.c.bf16 %v5479, %v5478
      %v5484 = vld [vmem:[%s10] sm:$0xf]
      %v5485 = vld [vmem:[%s10 + $0x4] sm:$0xf]
      %v5486 = vld [vmem:[%s10 + $0x8] sm:$0xf]
      %v5487 = vld [vmem:[%s10 + $0xc] sm:$0xf]
      %v5488 = vld [vmem:[%s11] sm:$0x1]
      %v5490 = vlaneseq
      %v5491 = vshrl.u32 %v5490, 7
      %v5492 = vsub.s32 0, %v5491
      %v5493 = vrot.slane %v5488, %v5492
      %v5499 = vunpack.c.l.b16 %v5484
      %v5500 = vunpack.c.l.b16 %v5485
      %v5501 = vunpack.c.l.b16 %v5486
      %v5502 = vunpack.c.l.b16 %v5487
      %v5503 = vpack.c.b16 %v5500, %v5499
      %v5504 = vpack.c.b16 %v5502, %v5501
      %v5508 = vsel %vm2932, %v5480, 0
      %v5511 = vsel %vm2932, %v5481, 0
      %v5514 = vsel %vm2932, %v5482, 0
      %v5517 = vsel %vm2932, %v5483, 0
      %5519 = vmatprep.subr.bf16.mxu0 0
      %5520 = vmatpush1.bf16.msra.mxu0 %v5503
      %5521 = vmatprep.subr.bf16.mxu0 0
      %5522 = vmatpush1.bf16.msra.mxu0 %v5504
      %5523 = vmatprep.subr.bf16.mxu0 0
      %5524 = vmatpush1.bf16.msra.mxu0 0
      %5525 = vmatprep.subr.bf16.mxu0 0
      %5526 = vmatpush1.bf16.msra.mxu0 0
      %5527 = vmatprep.subr.bf16.mxu0 0
      %5528 = vmatpush1.bf16.msra.mxu0 0
      %5529 = vmatprep.subr.bf16.mxu0 0
      %5530 = vmatpush1.bf16.msra.mxu0 0
      %5531 = vmatprep.subr.bf16.mxu0 0
      %5532 = vmatpush1.bf16.msra.mxu0 0
      %5533 = vmatprep.subr.bf16.mxu0 0
      %5534 = vmatpush1.bf16.msra.mxu0 0
      %5535 = vmatprep.subr.bf16.mxu0 0
      %5536 = vmatpush1.bf16.msra.mxu0 0
      %5537 = vmatprep.subr.bf16.mxu0 0
      %5538 = vmatpush1.bf16.msra.mxu0 0
      %5539 = vmatprep.subr.bf16.mxu0 0
      %5540 = vmatpush1.bf16.msra.mxu0 0
      %5541 = vmatprep.subr.bf16.mxu0 0
      %5542 = vmatpush1.bf16.msra.mxu0 0
      %5543 = vmatprep.subr.bf16.mxu0 0
      %5544 = vmatpush1.bf16.msra.mxu0 0
      %5545 = vmatprep.subr.bf16.mxu0 0
      %5546 = vmatpush1.bf16.msra.mxu0 0
      %5547 = vmatprep.subr.bf16.mxu0 0
      %5548 = vmatpush1.bf16.msra.mxu0 0
      %5549 = vmatprep.subr.bf16.mxu0 0
      %5550 = vmatpush1.bf16.msra.mxu0 0
      %5551 = vmatprep.mubr.bf16.mxu0 0
      %5552 = vmatmul.mubr.bf16.gmra.mrb[0].mxu0 %v5508
      %v5553 = vpop.f32.mrb[0].mxu0
      %v5554 = vadd.f32 %v5493, %v5553
      %v5555 = vpop.f32.mrb[0].mxu0
      %v5556 = vpop.f32.mrb[0].mxu0
      %v5557 = vadd.f32 %v5493, %v5556
      %v5558 = vpop.f32.mrb[0].mxu0
      %5559 = vmatprep.mubr.bf16.mxu0 0
      %5560 = vmatmul.mubr.bf16.gmra.mrb[0].mxu0 %v5511
      %v5561 = vpop.f32.mrb[0].mxu0
      %v5562 = vadd.f32 %v5493, %v5561
      %v5563 = vpop.f32.mrb[0].mxu0
      %v5564 = vpop.f32.mrb[0].mxu0
      %v5565 = vadd.f32 %v5493, %v5564
      %v5566 = vpop.f32.mrb[0].mxu0
      %5567 = vmatprep.mubr.bf16.mxu0 0
      %5568 = vmatmul.mubr.bf16.gmra.mrb[0].mxu0 %v5514
      %v5569 = vpop.f32.mrb[0].mxu0
      %v5570 = vadd.f32 %v5493, %v5569
      %v5571 = vpop.f32.mrb[0].mxu0
      %v5572 = vpop.f32.mrb[0].mxu0
      %v5573 = vadd.f32 %v5493, %v5572
      %v5574 = vpop.f32.mrb[0].mxu0
      %5575 = vmatprep.mubr.bf16.mxu0 0
      %5576 = vmatmul.mubr.bf16.gmra.mrb[0].mxu0 %v5517
      %v5577 = vpop.f32.mrb[0].mxu0
      %v5578 = vadd.f32 %v5493, %v5577
      %v5579 = vpop.f32.mrb[0].mxu0
      %v5580 = vpop.f32.mrb[0].mxu0
      %v5581 = vadd.f32 %v5493, %v5580
      %v5582 = vpop.f32.mrb[0].mxu0
      %5583 = vdwg.mxu0
      %5584 = vst.msk [vmem:[%s471] sm:$0xff] %vm2932, %v5554
      %5585 = vst.msk [vmem:[%s471 + $0x8] sm:$0xff] %vm2932, %v5557
      %5586 = vst.msk [vmem:[%s471 + $0x10] sm:$0xff] %vm2932, %v5562
      %5587 = vst.msk [vmem:[%s471 + $0x18] sm:$0xff] %vm2932, %v5565
      %5588 = vst.msk [vmem:[%s471 + $0x20] sm:$0xff] %vm2932, %v5570
      %5589 = vst.msk [vmem:[%s471 + $0x28] sm:$0xff] %vm2932, %v5573
      %5590 = vst.msk [vmem:[%s471 + $0x30] sm:$0xff] %vm2932, %v5578
      %5591 = vst.msk [vmem:[%s471 + $0x38] sm:$0xff] %vm2932, %v5581
      %s5592 = smul.u32 8, %s28
      %p5593 = scmp.lt.s32.totalorder %s27, 1
      %s5594 = scalar_select %p5593, %s27, 1
      %p5595 = scmp.lt.s32.totalorder %s5592, 31
      %s5596 = scalar_select %p5595, %s5592, 31
      %s5597 = smul.addr %s5594, 32
      %s5598 = sadd.s32 %s5596, %s5597
      %s5599 = smul.addr %s5598, 8
      %s5600 = scalar_lea.vmem %s12, %s5599
      // Predicated region
      $region73: #{tpu_custom_call.1} parent=67 // pred_check
        %p5601 = pneg %p319
      $region74: #{tpu_custom_call.1} parent=67 // pred_check_branch
        %5603 = sbr.rel (%p5601) target = $region76
      $region75: #{tpu_custom_call.1} parent=67 // pred_region
        %s5604 = smul.u32 8, %s28
      $region76: #{tpu_custom_call.1} parent=67 // pred_fallthru
        _
    $region68: #{tpu_custom_call.1} parent=5 // pred_fallthru
      _
    %p5605 = scmp.le.s32.totalorder 2, %s18
    // Predicated region
    $region77: #{tpu_custom_call.1} parent=5 // pred_check
      %p5606 = pneg %p5605
    $region78: #{tpu_custom_call.1} parent=5 // pred_check_branch
      %5608 = sbr.rel (%p5606) target = $region80
    $region79: #{tpu_custom_call.1} parent=5 // pred_region
      %s5609 = ssub.s32 %s18, 2
      // Predicated region
      $region81: #{tpu_custom_call.1} parent=79 // pred_check
        %p5610 = pneg %p325
      $region82: #{tpu_custom_call.1} parent=79 // pred_check_branch
        %5612 = sbr.rel (%p5610) target = $region84
      $region83: #{tpu_custom_call.1} parent=79 // pred_region
        %s5613 = smul.u32 8, %s30
        %p5614 = scmp.lt.s32.totalorder %s29, 1
        %s5615 = scalar_select %p5614, %s29, 1
        %p5616 = scmp.lt.s32.totalorder %s5613, 31
        %s5617 = scalar_select %p5616, %s5613, 31
        %s5618 = smul.addr %s5615, 32
        %s5619 = sadd.s32 %s5617, %s5618
        %s5620 = smul.addr %s5619, 8
        %s5621 = scalar_lea.vmem %s12, %s5620
      $region84: #{tpu_custom_call.1} parent=79 // pred_fallthru
        _
    $region80: #{tpu_custom_call.1} parent=5 // pred_fallthru
      _
  $region6: #{tpu_custom_call.1} parent=0 // loop_footer
    %s22 = sadd.s32 1, %s18
  $region7: #{tpu_custom_call.1} parent=0 // loop_footer_branch
    %17 = sbr.rel target = $region3
  $region8: #{tpu_custom_call.1} parent=0 // loop_exit
    _

</llo_original>
